<compile_context>
chip_gen: v7x
topology: tpu7x:2x2x1
jax: 0.10.0
libtpu: 0.0.40
codegen_flags: <defaults>
</compile_context>

<pallas_src>
import functools

import jax
import jax.numpy as jnp
import numpy as np
from jax.experimental import pallas as pl
from jax.experimental.pallas import tpu as pltpu


def _round_up(x, m):
    return ((x + m - 1) // m) * m


def _vmem_limit_bytes():
    cap = 128 * 1024 * 1024
    try:
        info = pltpu.get_tpu_info()
        cap = int(getattr(info, "vmem_capacity_bytes", cap) or cap)
    except Exception:
        pass
    # <= 3/4 of physical VMEM (48 MiB on v7x), capped at 64 MiB on v5e/v6e.
    return int(min(64 * 1024 * 1024, (cap * 3) // 4))


def _attention_kernel(dec_ref, enc_ref, len_ref,
                      wq_ref, bq_ref, wk_ref, bk_ref, wv_ref, bv_ref,
                      *rest,
                      num_head, dim, v_dim, inv_temp, has_merge, mxu_dtype):
    if has_merge:
        wm_ref, bm_ref, attn_ref, ctx_ref = rest
    else:
        attn_ref, ctx_ref = rest

    f32 = jnp.float32

    dec = dec_ref[...]                                     # [B, Qp]
    enc = enc_ref[...]                                     # [B, Tp, Vp]
    B, Tp, Vp = enc.shape
    enc2d = enc.reshape(B * Tp, Vp)                        # regroup leading dims only

    # --- q / k / v projections: full-width MXU matmuls (all heads, all rows). -----
    q_all = jnp.tanh(jnp.dot(dec, wq_ref[...], preferred_element_type=f32)
                     + bq_ref[...])                        # [B, HD]
    k_all = jnp.tanh(jnp.dot(enc2d, wk_ref[...], preferred_element_type=f32)
                     + bk_ref[...])                        # [B*Tp, HD]
    v_all = jnp.tanh(jnp.dot(enc2d, wv_ref[...], preferred_element_type=f32)
                     + bv_ref[...])                        # [B*Tp, HV]
    HD = q_all.shape[-1]
    HV = v_all.shape[-1]

    # Fold 1/temperature into the (tiny) post-tanh query.
    q_all = q_all * jnp.float32(inv_temp)

    # --- energy: block-diagonal per-head query, ONE batched matmul. ---------------
    col = jax.lax.broadcasted_iota(jnp.int32, (num_head, HD), 1)
    row = jax.lax.broadcasted_iota(jnp.int32, (num_head, HD), 0)
    lo = row * dim
    q_head_mask = (col >= lo) & (col < lo + dim)           # [H, HD], per-head columns
    q_bd = jnp.where(q_head_mask[None], q_all[:, None, :], 0.0)   # [B, H, HD]

    k3 = k_all.reshape(B, Tp, HD)
    energy = jnp.einsum("bhd,btd->bht",
                        q_bd.astype(mxu_dtype), k3.astype(mxu_dtype),
                        preferred_element_type=f32)        # [B, H, Tp]

    # --- masked softmax over timesteps (finite fill -> no NaN on empty rows). -----
    t_idx = jax.lax.broadcasted_iota(jnp.int32, (B, num_head, Tp), 2)
    length = len_ref[...]                                  # [B, 1] int32
    valid = t_idx < length[:, :, None]
    energy = jnp.where(valid, energy, jnp.float32(-1e30))
    m = jnp.max(energy, axis=-1, keepdims=True)
    p = jnp.exp(energy - m)
    denom = jnp.sum(p, axis=-1, keepdims=True)
    attn = p * pl.reciprocal(denom, approx=True)           # [B, H, Tp]

    # --- context: ONE batched matmul, then keep per-head block-diagonal columns. --
    v3 = v_all.reshape(B, Tp, HV)
    ctx_full = jnp.einsum("bht,btv->bhv",
                          attn.astype(mxu_dtype), v3.astype(mxu_dtype),
                          preferred_element_type=f32)      # [B, H, HV]
    vcol = jax.lax.broadcasted_iota(jnp.int32, (num_head, HV), 1)
    vrow = jax.lax.broadcasted_iota(jnp.int32, (num_head, HV), 0)
    vlo = vrow * v_dim
    v_head_mask = (vcol >= vlo) & (vcol < vlo + v_dim)     # [H, HV]
    ctx_cat = jnp.sum(jnp.where(v_head_mask[None], ctx_full, 0.0), axis=1)  # [B, HV]

    if has_merge:
        ctx = (jnp.dot(ctx_cat, wm_ref[...], preferred_element_type=f32)
               + bm_ref[...])                              # [B, Vp]
    else:
        ctx = ctx_cat                                      # num_head == 1: no merge_head

    attn_ref[...] = attn.astype(attn_ref.dtype)
    ctx_ref[...] = ctx.astype(ctx_ref.dtype)


def pack_params(params, *, q_dim, v_dim, dim, num_head, use_bf16=True):
    """Zero-pad weights to 128-lane totals (heads stay packed at true-dim
    granularity).  Call once per model; hoist out of the per-decode-step path."""
    hd_p = _round_up(num_head * dim, 128)
    hv_p = _round_up(num_head * v_dim, 128)
    q_p = _round_up(q_dim, 128)
    v_p = _round_up(v_dim, 128)
    w_dt = jnp.bfloat16 if use_bf16 else jnp.float32

    def pad_w(w, rows, cols, dt):
        out = jnp.zeros((rows, cols), jnp.float32)
        out = out.at[:w.shape[0], :w.shape[1]].set(w.astype(jnp.float32))
        return out.astype(dt)

    def pad_b(b, cols):
        out = jnp.zeros((1, cols), jnp.float32)
        return out.at[0, :b.shape[0]].set(b.astype(jnp.float32))

    packed = {
        "wq": pad_w(params["wq"], q_p, hd_p, w_dt), "bq": pad_b(params["bq"], hd_p),
        "wk": pad_w(params["wk"], v_p, hd_p, w_dt), "bk": pad_b(params["bk"], hd_p),
        "wv": pad_w(params["wv"], v_p, hv_p, w_dt), "bv": pad_b(params["bv"], hv_p),
    }
    if num_head > 1:
        packed["wm"] = pad_w(params["wm"], hv_p, v_p, jnp.float32)  # merge stays f32
        packed["bm"] = pad_b(params["bm"], v_p)
    return packed


def pack_encoder(enc_feat, *, b_blk=8, use_bf16=True):
    """Zero-pad encoder features to [bs_pad, ts_pad, v_dim_pad].  Call once per
    utterance and reuse for every decode step."""
    bs, ts, v_dim = enc_feat.shape
    bs_p = _round_up(max(bs, 1), b_blk)
    ts_p = _round_up(ts, 128)
    v_p = _round_up(v_dim, 128)
    dt = jnp.bfloat16 if use_bf16 else jnp.float32
    enc_p = jnp.zeros((bs_p, ts_p, v_p), dt)
    return enc_p.at[:bs, :ts, :v_dim].set(enc_feat.astype(dt))


def attention_forward(dec_state, enc_packed, enc_len, packed_params, *,
                      ts, v_dim, q_dim, dim, num_head, temperature,
                      use_bf16=True, b_blk=8):
    bs = dec_state.shape[0]
    bs_p, ts_p, v_p = enc_packed.shape
    assert bs_p % b_blk == 0, "pack_encoder and attention_forward must agree on b_blk"
    q_p = _round_up(q_dim, 128)
    hd_p = packed_params["wq"].shape[1]
    hv_p = packed_params["wv"].shape[1]
    has_merge = num_head > 1

    act_dt = jnp.bfloat16 if use_bf16 else jnp.float32
    mxu_dt = jnp.bfloat16 if use_bf16 else jnp.float32

    # Per-step padding (tiny): decoder state and lengths only.
    dec_p = jnp.zeros((bs_p, q_p), act_dt).at[:bs, :q_dim].set(dec_state.astype(act_dt))
    len_p = jnp.zeros((bs_p, 1), jnp.int32).at[:bs, 0].set(enc_len.astype(jnp.int32))

    kernel = functools.partial(
        _attention_kernel, num_head=num_head, dim=dim, v_dim=v_dim,
        inv_temp=1.0 / float(temperature), has_merge=has_merge, mxu_dtype=mxu_dt)

    def blk2(b):
        return (b, 0)

    def blk3(b):
        return (b, 0, 0)

    def const2(b):
        return (0, 0)

    def w_spec(shape):   # constant-index, VMEM-resident, single buffer
        return pl.BlockSpec(shape, const2, pipeline_mode=pl.Buffered(1))

    in_specs = [
        pl.BlockSpec((b_blk, q_p), blk2),             # dec
        pl.BlockSpec((b_blk, ts_p, v_p), blk3),       # enc
        pl.BlockSpec((b_blk, 1), blk2),               # enc_len
        w_spec((q_p, hd_p)), w_spec((1, hd_p)),       # wq, bq
        w_spec((v_p, hd_p)), w_spec((1, hd_p)),       # wk, bk
        w_spec((v_p, hv_p)), w_spec((1, hv_p)),       # wv, bv
    ]
    args = [dec_p, enc_packed, len_p,
            packed_params["wq"], packed_params["bq"],
            packed_params["wk"], packed_params["bk"],
            packed_params["wv"], packed_params["bv"]]
    if has_merge:
        in_specs += [w_spec((hv_p, v_p)), w_spec((1, v_p))]
        args += [packed_params["wm"], packed_params["bm"]]

    out_specs = (pl.BlockSpec((b_blk, num_head, ts_p), blk3),
                 pl.BlockSpec((b_blk, v_p), blk2))
    out_shape = (jax.ShapeDtypeStruct((bs_p, num_head, ts_p), jnp.float32),
                 jax.ShapeDtypeStruct((bs_p, v_p), jnp.float32))

    in_bytes = sum(int(np.prod(a.shape)) * a.dtype.itemsize for a in args)
    out_bytes = sum(int(np.prod(s.shape)) * 4 for s in out_shape)
    flops = bs_p * (2 * q_p * hd_p + 2 * ts_p * v_p * (hd_p + hv_p)
                    + 2 * num_head * ts_p * (hd_p + hv_p))
    if has_merge:
        flops += bs_p * 2 * hv_p * v_p
    transcendentals = bs_p * (hd_p + ts_p * (hd_p + hv_p) + num_head * ts_p)
    cost = pl.CostEstimate(flops=int(flops), transcendentals=int(transcendentals),
                           bytes_accessed=int(in_bytes + out_bytes))

    attn_p, ctx_p = pl.pallas_call(
        kernel,
        grid=(bs_p // b_blk,),
        in_specs=in_specs,
        out_specs=out_specs,
        out_shape=out_shape,
        compiler_params=pltpu.CompilerParams(
            dimension_semantics=("parallel",),
            vmem_limit_bytes=_vmem_limit_bytes()),
        cost_estimate=cost,
    )(*args)

    attn = attn_p[:bs, :, :ts]      # drop batch / timestep padding
    ctx = ctx_p[:bs, :v_dim]        # drop batch / feature padding
    return attn, ctx                # matches PyTorch (attn, context)


def _reference(dec_state, enc_feat, enc_len, params, *, dim, num_head, temperature):
    bs, ts, v_dim = enc_feat.shape
    q = jnp.tanh(dec_state @ params["wq"] + params["bq"]).reshape(bs, num_head, dim)
    k = jnp.tanh(enc_feat @ params["wk"] + params["bk"])
    k = k.reshape(bs, ts, num_head, dim).transpose(0, 2, 1, 3)
    v = jnp.tanh(enc_feat @ params["wv"] + params["bv"])
    v = v.reshape(bs, ts, num_head, v_dim).transpose(0, 2, 1, 3)
    energy = jnp.einsum("bhd,bhtd->bht", q, k) / temperature
    mask = jnp.arange(ts)[None, None, :] < enc_len[:, None, None]
    energy = jnp.where(mask, energy, -jnp.inf)
    attn = jax.nn.softmax(energy, axis=-1)
    ctx = jnp.einsum("bht,bhtd->bhd", attn, v).reshape(bs, num_head * v_dim)
    if num_head > 1:                # PyTorch module only has merge_head for H > 1
        ctx = ctx @ params["wm"] + params["bm"]
    return attn, ctx


if __name__ == "__main__":
    bs, ts = 2, 8
    v_dim, q_dim, dim, num_head = 32, 32, 16, 2
    temperature = 0.5

    key = jax.random.PRNGKey(0)
    ks = jax.random.split(key, 10)

    dec_state = jax.random.normal(ks[0], (bs, q_dim), jnp.float32)
    enc_feat = jax.random.normal(ks[1], (bs, ts, v_dim), jnp.float32)
    enc_len = jnp.array([ts, ts - 3], dtype=jnp.int32)

    params = {
        "wq": 0.3 * jax.random.normal(ks[2], (q_dim, dim * num_head), jnp.float32),
        "bq": 0.1 * jax.random.normal(ks[3], (dim * num_head,), jnp.float32),
        "wk": 0.3 * jax.random.normal(ks[4], (v_dim, dim * num_head), jnp.float32),
        "bk": 0.1 * jax.random.normal(ks[5], (dim * num_head,), jnp.float32),
        "wv": 0.3 * jax.random.normal(ks[6], (v_dim, v_dim * num_head), jnp.float32),
        "bv": 0.1 * jax.random.normal(ks[7], (v_dim * num_head,), jnp.float32),
        "wm": 0.3 * jax.random.normal(ks[8], (v_dim * num_head, v_dim), jnp.float32),
        "bm": 0.1 * jax.random.normal(ks[9], (v_dim,), jnp.float32),
    }

    # --- float32 path vs exact float32 reference ----------------------------------
    packed32 = pack_params(params, q_dim=q_dim, v_dim=v_dim, dim=dim,
                           num_head=num_head, use_bf16=False)
    enc32 = pack_encoder(enc_feat, use_bf16=False)
    attn, ctx = attention_forward(dec_state, enc32, enc_len, packed32,
                                  ts=ts, v_dim=v_dim, q_dim=q_dim, dim=dim,
                                  num_head=num_head, temperature=temperature,
                                  use_bf16=False)
    jax.block_until_ready((attn, ctx))
    attn_ref, ctx_ref = _reference(dec_state, enc_feat, enc_len, params,
                                   dim=dim, num_head=num_head, temperature=temperature)
    np.testing.assert_allclose(np.asarray(attn), np.asarray(attn_ref),
                               rtol=1e-2, atol=1e-2)
    np.testing.assert_allclose(np.asarray(ctx), np.asarray(ctx_ref),
                               rtol=1e-2, atol=1e-2)

    # --- bf16 MXU-operand path vs reference fed the same bf16-rounded operands ----
    packed16 = pack_params(params, q_dim=q_dim, v_dim=v_dim, dim=dim,
                           num_head=num_head, use_bf16=True)
    enc16 = pack_encoder(enc_feat, use_bf16=True)
    attn_b, ctx_b = attention_forward(dec_state, enc16, enc_len, packed16,
                                      ts=ts, v_dim=v_dim, q_dim=q_dim, dim=dim,
                                      num_head=num_head, temperature=temperature,
                                      use_bf16=True)
    jax.block_until_ready((attn_b, ctx_b))
    rd = lambda a: a.astype(jnp.bfloat16).astype(jnp.float32)
    params_b = {k: (rd(v) if k in ("wq", "wk", "wv") else v) for k, v in params.items()}
    attn_ref_b, ctx_ref_b = _reference(rd(dec_state), rd(enc_feat), enc_len, params_b,
                                       dim=dim, num_head=num_head,
                                       temperature=temperature)
    np.testing.assert_allclose(np.asarray(attn_b), np.asarray(attn_ref_b),
                               rtol=2e-2, atol=2e-2)
    np.testing.assert_allclose(np.asarray(ctx_b), np.asarray(ctx_ref_b),
                               rtol=2e-2, atol=2e-2)

    # --- num_head == 1 path (merge_head statically skipped, matches PyTorch) ------
    params1 = {
        "wq": 0.3 * jax.random.normal(ks[2], (q_dim, dim), jnp.float32),
        "bq": 0.1 * jax.random.normal(ks[3], (dim,), jnp.float32),
        "wk": 0.3 * jax.random.normal(ks[4], (v_dim, dim), jnp.float32),
        "bk": 0.1 * jax.random.normal(ks[5], (dim,), jnp.float32),
        "wv": 0.3 * jax.random.normal(ks[6], (v_dim, v_dim), jnp.float32),
        "bv": 0.1 * jax.random.normal(ks[7], (v_dim,), jnp.float32),
    }
    packed1 = pack_params(params1, q_dim=q_dim, v_dim=v_dim, dim=dim,
                          num_head=1, use_bf16=False)
    attn1, ctx1 = attention_forward(dec_state, enc32, enc_len, packed1,
                                    ts=ts, v_dim=v_dim, q_dim=q_dim, dim=dim,
                                    num_head=1, temperature=temperature,
                                    use_bf16=False)
    jax.block_until_ready((attn1, ctx1))
    attn1_ref, ctx1_ref = _reference(dec_state, enc_feat, enc_len, params1,
                                     dim=dim, num_head=1, temperature=temperature)
    np.testing.assert_allclose(np.asarray(attn1), np.asarray(attn1_ref),
                               rtol=1e-2, atol=1e-2)
    np.testing.assert_allclose(np.asarray(ctx1), np.asarray(ctx1_ref),
                               rtol=1e-2, atol=1e-2)

    assert attn.shape == (bs, num_head, ts)
    assert ctx.shape == (bs, v_dim)
    assert attn1.shape == (bs, 1, ts)
    assert ctx1.shape == (bs, v_dim)
    print("KERNEL_OK")
</pallas_src>

<mosaic_0001>
module attributes {stable_mosaic.version = 11 : i64} {
  func.func @_attention_kernel(%arg0: i32, %arg1: memref<8x128xf32, #tpu.memory_space<vmem>>, %arg2: memref<8x128x128xf32, #tpu.memory_space<vmem>>, %arg3: memref<8x1xi32, #tpu.memory_space<vmem>>, %arg4: memref<128x128xf32, #tpu.memory_space<vmem>>, %arg5: memref<1x128xf32, #tpu.memory_space<vmem>>, %arg6: memref<128x128xf32, #tpu.memory_space<vmem>>, %arg7: memref<1x128xf32, #tpu.memory_space<vmem>>, %arg8: memref<128x128xf32, #tpu.memory_space<vmem>>, %arg9: memref<1x128xf32, #tpu.memory_space<vmem>>, %arg10: memref<128x128xf32, #tpu.memory_space<vmem>>, %arg11: memref<1x128xf32, #tpu.memory_space<vmem>>, %arg12: memref<8x2x128xf32, #tpu.memory_space<vmem>>, %arg13: memref<8x128xf32, #tpu.memory_space<vmem>>) attributes {dimension_semantics = [#tpu.dimension_semantics<parallel>], iteration_bounds = array<i64: 1>, scalar_prefetch = 0 : i64, scratch_operands = 0 : i64, tpu.core_type = #tpu.core_type<tc>, window_params = [{transform_indices = @transform_0, window_bounds = array<i64: 8, 128>}, {transform_indices = @transform_1, window_bounds = array<i64: 8, 128, 128>}, {transform_indices = @transform_2, window_bounds = array<i64: 8, 1>}, {pipeline_mode = #tpu.pipeline_mode<synchronous>, transform_indices = @transform_3, window_bounds = array<i64: 128, 128>}, {pipeline_mode = #tpu.pipeline_mode<synchronous>, transform_indices = @transform_4, window_bounds = array<i64: 1, 128>}, {pipeline_mode = #tpu.pipeline_mode<synchronous>, transform_indices = @transform_5, window_bounds = array<i64: 128, 128>}, {pipeline_mode = #tpu.pipeline_mode<synchronous>, transform_indices = @transform_6, window_bounds = array<i64: 1, 128>}, {pipeline_mode = #tpu.pipeline_mode<synchronous>, transform_indices = @transform_7, window_bounds = array<i64: 128, 128>}, {pipeline_mode = #tpu.pipeline_mode<synchronous>, transform_indices = @transform_8, window_bounds = array<i64: 1, 128>}, {pipeline_mode = #tpu.pipeline_mode<synchronous>, transform_indices = @transform_9, window_bounds = array<i64: 128, 128>}, {pipeline_mode = #tpu.pipeline_mode<synchronous>, transform_indices = @transform_10, window_bounds = array<i64: 1, 128>}, {transform_indices = @transform_11, window_bounds = array<i64: 8, 2, 128>}, {transform_indices = @transform_12, window_bounds = array<i64: 8, 128>}]} {
    %c0 = arith.constant 0 : index
    %c0_0 = arith.constant 0 : index
    %0 = vector.load %arg1[%c0, %c0_0] : memref<8x128xf32, #tpu.memory_space<vmem>>, vector<8x128xf32>
    %c0_1 = arith.constant 0 : index
    %c0_2 = arith.constant 0 : index
    %c0_3 = arith.constant 0 : index
    %1 = vector.load %arg2[%c0_1, %c0_2, %c0_3] : memref<8x128x128xf32, #tpu.memory_space<vmem>>, vector<8x128x128xf32>
    %2 = vector.shape_cast %1 : vector<8x128x128xf32> to vector<1024x128xf32>
    %c0_4 = arith.constant 0 : index
    %c0_5 = arith.constant 0 : index
    %3 = vector.load %arg4[%c0_4, %c0_5] : memref<128x128xf32, #tpu.memory_space<vmem>>, vector<128x128xf32>
    %cst = arith.constant dense<0.000000e+00> : vector<8x128xf32>
    %4 = tpu.matmul %0, %3, %cst {dimension_numbers = #tpu.dot_dimension_numbers<[1], [0], [0], [1], [0, 0, 1, 1], [], []>} : vector<8x128xf32>, vector<128x128xf32>, vector<8x128xf32> -> vector<8x128xf32>
    %c0_6 = arith.constant 0 : index
    %c0_7 = arith.constant 0 : index
    %5 = vector.load %arg5[%c0_6, %c0_7] : memref<1x128xf32, #tpu.memory_space<vmem>>, vector<1x128xf32>
    %6 = vector.broadcast %5 : vector<1x128xf32> to vector<8x128xf32>
    %7 = arith.addf %4, %6 : vector<8x128xf32>
    %8 = math.tanh %7 : vector<8x128xf32>
    %c0_8 = arith.constant 0 : index
    %c0_9 = arith.constant 0 : index
    %9 = vector.load %arg6[%c0_8, %c0_9] : memref<128x128xf32, #tpu.memory_space<vmem>>, vector<128x128xf32>
    %cst_10 = arith.constant dense<0.000000e+00> : vector<1024x128xf32>
    %10 = tpu.matmul %2, %9, %cst_10 {dimension_numbers = #tpu.dot_dimension_numbers<[1], [0], [0], [1], [0, 0, 1, 1], [], []>} : vector<1024x128xf32>, vector<128x128xf32>, vector<1024x128xf32> -> vector<1024x128xf32>
    %c0_11 = arith.constant 0 : index
    %c0_12 = arith.constant 0 : index
    %11 = vector.load %arg7[%c0_11, %c0_12] : memref<1x128xf32, #tpu.memory_space<vmem>>, vector<1x128xf32>
    %12 = vector.broadcast %11 : vector<1x128xf32> to vector<1024x128xf32>
    %13 = arith.addf %10, %12 : vector<1024x128xf32>
    %14 = math.tanh %13 : vector<1024x128xf32>
    %c0_13 = arith.constant 0 : index
    %c0_14 = arith.constant 0 : index
    %15 = vector.load %arg8[%c0_13, %c0_14] : memref<128x128xf32, #tpu.memory_space<vmem>>, vector<128x128xf32>
    %cst_15 = arith.constant dense<0.000000e+00> : vector<1024x128xf32>
    %16 = tpu.matmul %2, %15, %cst_15 {dimension_numbers = #tpu.dot_dimension_numbers<[1], [0], [0], [1], [0, 0, 1, 1], [], []>} : vector<1024x128xf32>, vector<128x128xf32>, vector<1024x128xf32> -> vector<1024x128xf32>
    %c0_16 = arith.constant 0 : index
    %c0_17 = arith.constant 0 : index
    %17 = vector.load %arg9[%c0_16, %c0_17] : memref<1x128xf32, #tpu.memory_space<vmem>>, vector<1x128xf32>
    %18 = vector.broadcast %17 : vector<1x128xf32> to vector<1024x128xf32>
    %19 = arith.addf %16, %18 : vector<1024x128xf32>
    %20 = math.tanh %19 : vector<1024x128xf32>
    %cst_18 = arith.constant 2.000000e+00 : f32
    %21 = vector.broadcast %cst_18 : f32 to vector<8x128xf32>
    %22 = arith.mulf %8, %21 : vector<8x128xf32>
    %23 = tpu.iota {dimensions = array<i32: 1>} : vector<2x128xi32>
    %24 = tpu.iota {dimensions = array<i32: 0>} : vector<2x128xi32>
    %c16_i32 = arith.constant 16 : i32
    %25 = vector.broadcast %c16_i32 : i32 to vector<2x128xi32>
    %26 = arith.muli %24, %25 : vector<2x128xi32>
    %27 = arith.cmpi sge, %23, %26 : vector<2x128xi32>
    %c16_i32_19 = arith.constant 16 : i32
    %28 = vector.broadcast %c16_i32_19 : i32 to vector<2x128xi32>
    %29 = arith.addi %26, %28 : vector<2x128xi32>
    %30 = arith.cmpi slt, %23, %29 : vector<2x128xi32>
    %31 = arith.andi %27, %30 : vector<2x128xi1>
    %32 = vector.shape_cast %31 : vector<2x128xi1> to vector<1x2x128xi1>
    %33 = vector.shape_cast %22 : vector<8x128xf32> to vector<8x1x128xf32>
    %cst_20 = arith.constant 0.000000e+00 : f32
    %34 = vector.shape_cast %32 : vector<1x2x128xi1> to vector<1x2x128xi1>
    %35 = vector.broadcast %34 : vector<1x2x128xi1> to vector<8x2x128xi1>
    %36 = vector.shape_cast %33 : vector<8x1x128xf32> to vector<8x1x128xf32>
    %37 = vector.broadcast %36 : vector<8x1x128xf32> to vector<8x2x128xf32>
    %38 = vector.broadcast %cst_20 : f32 to vector<8x2x128xf32>
    %39 = arith.select %35, %37, %38 : vector<8x2x128xi1>, vector<8x2x128xf32>
    %40 = vector.shape_cast %14 : vector<1024x128xf32> to vector<8x128x128xf32>
    "tpu.trace_start"() <{level = 10 : i32, message = "bhd,btd->bht"}> : () -> ()
    %cst_21 = arith.constant dense<0.000000e+00> : vector<8x2x128xf32>
    %41 = tpu.matmul %39, %40, %cst_21 {dimension_numbers = #tpu.dot_dimension_numbers<[2], [2], [1], [1], [0, 0, 0, 1, 1, 1], [0], [0]>} : vector<8x2x128xf32>, vector<8x128x128xf32>, vector<8x2x128xf32> -> vector<8x2x128xf32>
    "tpu.trace_stop"() : () -> ()
    %42 = tpu.iota {dimensions = array<i32: 2>} : vector<8x2x128xi32>
    %c0_22 = arith.constant 0 : index
    %c0_23 = arith.constant 0 : index
    %43 = vector.load %arg3[%c0_22, %c0_23] : memref<8x1xi32, #tpu.memory_space<vmem>>, vector<8x1xi32>
    %44 = vector.shape_cast %43 : vector<8x1xi32> to vector<8x1x1xi32>
    %45 = vector.broadcast %44 : vector<8x1x1xi32> to vector<8x2x128xi32>
    %46 = arith.cmpi slt, %42, %45 : vector<8x2x128xi32>
    %cst_24 = arith.constant -1.000000e+30 : f32
    %47 = vector.broadcast %cst_24 : f32 to vector<8x2x128xf32>
    %48 = arith.select %46, %41, %47 : vector<8x2x128xi1>, vector<8x2x128xf32>
    %cst_25 = arith.constant dense<0xFF800000> : vector<8x2xf32>
    %49 = vector.multi_reduction <maximumf>, %48, %cst_25 [2] : vector<8x2x128xf32> to vector<8x2xf32>
    %50 = vector.shape_cast %49 : vector<8x2xf32> to vector<8x2x1xf32>
    %51 = vector.broadcast %50 : vector<8x2x1xf32> to vector<8x2x128xf32>
    %52 = arith.subf %48, %51 : vector<8x2x128xf32>
    %53 = math.exp %52 : vector<8x2x128xf32>
    %cst_26 = arith.constant dense<0.000000e+00> : vector<8x2xf32>
    %54 = vector.multi_reduction <add>, %53, %cst_26 [2] : vector<8x2x128xf32> to vector<8x2xf32>
    %55 = vector.shape_cast %54 : vector<8x2xf32> to vector<8x2x1xf32>
    %56 = tpu.reciprocal %55 {approx = true} : vector<8x2x1xf32> -> vector<8x2x1xf32>
    %57 = vector.broadcast %56 : vector<8x2x1xf32> to vector<8x2x128xf32>
    %58 = arith.mulf %53, %57 : vector<8x2x128xf32>
    %59 = vector.shape_cast %20 : vector<1024x128xf32> to vector<8x128x128xf32>
    "tpu.trace_start"() <{level = 10 : i32, message = "bht,btv->bhv"}> : () -> ()
    %cst_27 = arith.constant dense<0.000000e+00> : vector<8x2x128xf32>
    %60 = tpu.matmul %58, %59, %cst_27 {dimension_numbers = #tpu.dot_dimension_numbers<[2], [1], [1], [2], [0, 0, 0, 1, 1, 2], [0], [0]>} : vector<8x2x128xf32>, vector<8x128x128xf32>, vector<8x2x128xf32> -> vector<8x2x128xf32>
    "tpu.trace_stop"() : () -> ()
    %61 = tpu.iota {dimensions = array<i32: 1>} : vector<2x128xi32>
    %62 = tpu.iota {dimensions = array<i32: 0>} : vector<2x128xi32>
    %c32_i32 = arith.constant 32 : i32
    %63 = vector.broadcast %c32_i32 : i32 to vector<2x128xi32>
    %64 = arith.muli %62, %63 : vector<2x128xi32>
    %65 = arith.cmpi sge, %61, %64 : vector<2x128xi32>
    %c32_i32_28 = arith.constant 32 : i32
    %66 = vector.broadcast %c32_i32_28 : i32 to vector<2x128xi32>
    %67 = arith.addi %64, %66 : vector<2x128xi32>
    %68 = arith.cmpi slt, %61, %67 : vector<2x128xi32>
    %69 = arith.andi %65, %68 : vector<2x128xi1>
    %70 = vector.shape_cast %69 : vector<2x128xi1> to vector<1x2x128xi1>
    %cst_29 = arith.constant 0.000000e+00 : f32
    %71 = vector.shape_cast %70 : vector<1x2x128xi1> to vector<1x2x128xi1>
    %72 = vector.broadcast %71 : vector<1x2x128xi1> to vector<8x2x128xi1>
    %73 = vector.broadcast %cst_29 : f32 to vector<8x2x128xf32>
    %74 = arith.select %72, %60, %73 : vector<8x2x128xi1>, vector<8x2x128xf32>
    %cst_30 = arith.constant dense<0.000000e+00> : vector<8x128xf32>
    %75 = vector.multi_reduction <add>, %74, %cst_30 [1] : vector<8x2x128xf32> to vector<8x128xf32>
    %c0_31 = arith.constant 0 : index
    %c0_32 = arith.constant 0 : index
    %76 = vector.load %arg10[%c0_31, %c0_32] : memref<128x128xf32, #tpu.memory_space<vmem>>, vector<128x128xf32>
    %cst_33 = arith.constant dense<0.000000e+00> : vector<8x128xf32>
    %77 = tpu.matmul %75, %76, %cst_33 {dimension_numbers = #tpu.dot_dimension_numbers<[1], [0], [0], [1], [0, 0, 1, 1], [], []>} : vector<8x128xf32>, vector<128x128xf32>, vector<8x128xf32> -> vector<8x128xf32>
    %c0_34 = arith.constant 0 : index
    %c0_35 = arith.constant 0 : index
    %78 = vector.load %arg11[%c0_34, %c0_35] : memref<1x128xf32, #tpu.memory_space<vmem>>, vector<1x128xf32>
    %79 = vector.broadcast %78 : vector<1x128xf32> to vector<8x128xf32>
    %80 = arith.addf %77, %79 : vector<8x128xf32>
    %c0_36 = arith.constant 0 : index
    %c0_37 = arith.constant 0 : index
    %c0_38 = arith.constant 0 : index
    %81 = vector.load %arg12[%c0_36, %c0_37, %c0_38] : memref<8x2x128xf32, #tpu.memory_space<vmem>>, vector<8x2x128xf32>
    tpu.vector_store %arg12[%c0_36, %c0_37, %c0_38], %58 {strides = array<i32>} : memref<8x2x128xf32, #tpu.memory_space<vmem>>, vector<8x2x128xf32>,
    %c0_39 = arith.constant 0 : index
    %c0_40 = arith.constant 0 : index
    %82 = vector.load %arg13[%c0_39, %c0_40] : memref<8x128xf32, #tpu.memory_space<vmem>>, vector<8x128xf32>
    tpu.vector_store %arg13[%c0_39, %c0_40], %80 {strides = array<i32>} : memref<8x128xf32, #tpu.memory_space<vmem>>, vector<8x128xf32>,
    return
  }
  func.func @transform_0(%arg0: i32) -> (i32, i32) {
    %c0_i32 = arith.constant 0 : i32
    %c0_i32_0 = arith.constant 0 : i32
    return %arg0, %c0_i32 : i32, i32
  }
  func.func @transform_1(%arg0: i32) -> (i32, i32, i32) {
    %c0_i32 = arith.constant 0 : i32
    %c0_i32_0 = arith.constant 0 : i32
    %c0_i32_1 = arith.constant 0 : i32
    return %arg0, %c0_i32, %c0_i32_0 : i32, i32, i32
  }
  func.func @transform_2(%arg0: i32) -> (i32, i32) {
    %c0_i32 = arith.constant 0 : i32
    %c0_i32_0 = arith.constant 0 : i32
    return %arg0, %c0_i32 : i32, i32
  }
  func.func @transform_3(%arg0: i32) -> (i32, i32) {
    %c0_i32 = arith.constant 0 : i32
    %c0_i32_0 = arith.constant 0 : i32
    %c0_i32_1 = arith.constant 0 : i32
    return %c0_i32, %c0_i32_0 : i32, i32
  }
  func.func @transform_4(%arg0: i32) -> (i32, i32) {
    %c0_i32 = arith.constant 0 : i32
    %c0_i32_0 = arith.constant 0 : i32
    %c0_i32_1 = arith.constant 0 : i32
    return %c0_i32, %c0_i32_0 : i32, i32
  }
  func.func @transform_5(%arg0: i32) -> (i32, i32) {
    %c0_i32 = arith.constant 0 : i32
    %c0_i32_0 = arith.constant 0 : i32
    %c0_i32_1 = arith.constant 0 : i32
    return %c0_i32, %c0_i32_0 : i32, i32
  }
  func.func @transform_6(%arg0: i32) -> (i32, i32) {
    %c0_i32 = arith.constant 0 : i32
    %c0_i32_0 = arith.constant 0 : i32
    %c0_i32_1 = arith.constant 0 : i32
    return %c0_i32, %c0_i32_0 : i32, i32
  }
  func.func @transform_7(%arg0: i32) -> (i32, i32) {
    %c0_i32 = arith.constant 0 : i32
    %c0_i32_0 = arith.constant 0 : i32
    %c0_i32_1 = arith.constant 0 : i32
    return %c0_i32, %c0_i32_0 : i32, i32
  }
  func.func @transform_8(%arg0: i32) -> (i32, i32) {
    %c0_i32 = arith.constant 0 : i32
    %c0_i32_0 = arith.constant 0 : i32
    %c0_i32_1 = arith.constant 0 : i32
    return %c0_i32, %c0_i32_0 : i32, i32
  }
  func.func @transform_9(%arg0: i32) -> (i32, i32) {
    %c0_i32 = arith.constant 0 : i32
    %c0_i32_0 = arith.constant 0 : i32
    %c0_i32_1 = arith.constant 0 : i32
    return %c0_i32, %c0_i32_0 : i32, i32
  }
  func.func @transform_10(%arg0: i32) -> (i32, i32) {
    %c0_i32 = arith.constant 0 : i32
    %c0_i32_0 = arith.constant 0 : i32
    %c0_i32_1 = arith.constant 0 : i32
    return %c0_i32, %c0_i32_0 : i32, i32
  }
  func.func @transform_11(%arg0: i32) -> (i32, i32, i32) {
    %c0_i32 = arith.constant 0 : i32
    %c0_i32_0 = arith.constant 0 : i32
    %c0_i32_1 = arith.constant 0 : i32
    return %arg0, %c0_i32, %c0_i32_0 : i32, i32, i32
  }
  func.func @transform_12(%arg0: i32) -> (i32, i32) {
    %c0_i32 = arith.constant 0 : i32
    %c0_i32_0 = arith.constant 0 : i32
    return %arg0, %c0_i32 : i32, i32
  }
}

</mosaic_0001>

<llo_original>
// kernel: tpu_custom_call.1
$region0: #{tpu_custom_call.1}
  #allocation0 [shape = 'u32[]', space=smem, size = 0x4, offset = 0x4, fixed_abs, tag = 'smem constant byte address 0x4 - core index']
  #allocation1 [shape = 'u32[144,128]{1,0:T(1,128)}', space=vmem, size = 0x12000, scoped, tag = 'internal scratch']
  %s0 = inlined_call_operand.hbm [shape: f32[8,128], index: 0, kind: input, shape index: {}]
  %s1 = inlined_call_operand.hbm [shape: f32[8,128,128], index: 1, kind: input, shape index: {}]
  %s2 = inlined_call_operand.hbm [shape: s32[8,1], index: 2, kind: input, shape index: {}]
  %s3 = inlined_call_operand.hbm [shape: f32[128,128], index: 3, kind: input, shape index: {}]
  %s4 = inlined_call_operand.hbm [shape: f32[1,128], index: 4, kind: input, shape index: {}]
  %s5 = inlined_call_operand.hbm [shape: f32[128,128], index: 5, kind: input, shape index: {}]
  %s6 = inlined_call_operand.hbm [shape: f32[1,128], index: 6, kind: input, shape index: {}]
  %s7 = inlined_call_operand.hbm [shape: f32[128,128], index: 7, kind: input, shape index: {}]
  %s8 = inlined_call_operand.hbm [shape: f32[1,128], index: 8, kind: input, shape index: {}]
  %s9 = inlined_call_operand.hbm [shape: f32[128,128], index: 9, kind: input, shape index: {}]
  %s10 = inlined_call_operand.hbm [shape: f32[1,128], index: 10, kind: input, shape index: {}]
  %s11 = inlined_call_operand.hbm [shape: f32[8,2,128], index: 11, kind: output, shape index: {0}]
  %s12 = inlined_call_operand.hbm [shape: f32[8,128], index: 12, kind: output, shape index: {1}]
  %13 = xla_tuple %s11, %s12
  %s14 = sld [smem:[#allocation0]]
  $region106: #{tpu_custom_call.1} parent=0
    _
  %s16 = ssub.s32 1, %s14
  %s17 = scalar_select 0, %s16, %s14
  $region1: #{tpu_custom_call.1} parent=0
    #allocation2 [shape = 'u8[4096]{0}', space=vmem, size = 0x1000, scoped, tag = 'input window, operand 0, single buffered']
    #allocation3 [shape = 's32[1]{0}', space=sflag, size = 0x4, scoped, tag = 'scoped memory for tpu_custom_call.1']
    #allocation4 [shape = 's32[1]{0}', space=sflag, size = 0x4, scoped, tag = 'scoped memory for tpu_custom_call.1']
    #allocation5 [shape = 'u8[524288]{0}', space=vmem, size = 0x80000, scoped, tag = 'input window, operand 1, single buffered']
    #allocation6 [shape = 's32[1]{0}', space=sflag, size = 0x4, scoped, tag = 'scoped memory for tpu_custom_call.1']
    #allocation7 [shape = 'u8[4096]{0}', space=vmem, size = 0x1000, scoped, tag = 'input window, operand 2, single buffered']
    #allocation8 [shape = 'u8[65536]{0}', space=vmem, size = 0x10000, scoped, tag = 'input window, operand 3, single buffered']
    #allocation9 [shape = 's32[1]{0}', space=sflag, size = 0x4, scoped, tag = 'scoped memory for tpu_custom_call.1']
    #allocation10 [shape = 'u8[512]{0}', space=vmem, size = 0x400, scoped, tag = 'input window, operand 4, single buffered']
    #allocation11 [shape = 'u8[65536]{0}', space=vmem, size = 0x10000, scoped, tag = 'input window, operand 5, single buffered']
    #allocation12 [shape = 's32[1]{0}', space=sflag, size = 0x4, scoped, tag = 'scoped memory for tpu_custom_call.1']
    #allocation13 [shape = 'u8[512]{0}', space=vmem, size = 0x400, scoped, tag = 'input window, operand 6, single buffered']
    #allocation14 [shape = 'u8[65536]{0}', space=vmem, size = 0x10000, scoped, tag = 'input window, operand 7, single buffered']
    #allocation15 [shape = 's32[1]{0}', space=sflag, size = 0x4, scoped, tag = 'scoped memory for tpu_custom_call.1']
    #allocation16 [shape = 'u8[512]{0}', space=vmem, size = 0x400, scoped, tag = 'input window, operand 8, single buffered']
    #allocation17 [shape = 'u8[65536]{0}', space=vmem, size = 0x10000, scoped, tag = 'input window, operand 9, single buffered']
    #allocation18 [shape = 's32[1]{0}', space=sflag, size = 0x4, scoped, tag = 'scoped memory for tpu_custom_call.1']
    #allocation19 [shape = 'u8[512]{0}', space=vmem, size = 0x400, scoped, tag = 'input window, operand 10, single buffered']
    #allocation20 [shape = 'u8[8192]{0}', space=vmem, size = 0x2000, scoped, tag = 'output window, operand 0, single buffered']
    #allocation21 [shape = 'u8[4096]{0}', space=vmem, size = 0x1000, scoped, tag = 'output window, operand 1, single buffered']
    #allocation22 [shape = 's32[1]{0}', space=sflag, size = 0x4, scoped, tag = 'scoped memory for tpu_custom_call.1']
    %18 = vsyncpa [#allocation3], 0
    %19 = vsyncpa [#allocation6], 0
    %20 = vsyncpa [#allocation9], 0
    %21 = vsyncpa [#allocation12], 0
    %22 = vsyncpa [#allocation15], 0
    %23 = vsyncpa [#allocation18], 0
    %24 = vsyncpa [#allocation4], 0
    %25 = vsyncpa [#allocation22], 0
    // Predicated region
    $region2: #{tpu_custom_call.1} parent=1 // pred_check
      _
    $region3: #{tpu_custom_call.1} parent=1 // pred_check_branch
      %27 = sbr.rel (0) target = $region5
    $region4: #{tpu_custom_call.1} parent=1 // pred_region
      %s29 = ssub.s32 128, 128
      %30 = vsyncadd [#allocation3], %s29
      %s32 = sshll.u32 [#allocation2], 4
      %s33 = int_to_ptr.vmem [resolvable:$true] %s32
      %35 = dma.hbm_to_vmem [thread:$0]  %s0, 128, %s33, [#allocation3]
    $region5: #{tpu_custom_call.1} parent=1 // pred_fallthru
      _
    // Predicated region
    $region6: #{tpu_custom_call.1} parent=1 // pred_check
      _
    $region7: #{tpu_custom_call.1} parent=1 // pred_check_branch
      %37 = sbr.rel (0) target = $region9
    $region8: #{tpu_custom_call.1} parent=1 // pred_region
      %s39 = ssub.s32 16384, 16384
      %40 = vsyncadd [#allocation6], %s39
      %s41 = sshll.u32 [#allocation5], 4
      %s42 = int_to_ptr.vmem [resolvable:$true] %s41
      %47 = dma.hbm_to_vmem [thread:$0]  %s1, 16384, %s42, [#allocation6], 128, 128, 8
    $region9: #{tpu_custom_call.1} parent=1 // pred_fallthru
      _
    // Predicated region
    $region10: #{tpu_custom_call.1} parent=1 // pred_check
      _
    $region11: #{tpu_custom_call.1} parent=1 // pred_check_branch
      %49 = sbr.rel (0) target = $region13
    $region12: #{tpu_custom_call.1} parent=1 // pred_region
      %s51 = ssub.s32 128, 128
      %52 = vsyncadd [#allocation6], %s51
      %s54 = sshll.u32 [#allocation7], 4
      %s55 = int_to_ptr.vmem [resolvable:$true] %s54
      %57 = dma.hbm_to_vmem [thread:$0]  %s2, 128, %s55, [#allocation6]
    $region13: #{tpu_custom_call.1} parent=1 // pred_fallthru
      _
    // Predicated region
    $region14: #{tpu_custom_call.1} parent=1 // pred_check
      _
    $region15: #{tpu_custom_call.1} parent=1 // pred_check_branch
      %59 = sbr.rel (0) target = $region17
    $region16: #{tpu_custom_call.1} parent=1 // pred_region
      %s61 = ssub.s32 2048, 2048
      %62 = vsyncadd [#allocation9], %s61
      %s63 = sshll.u32 [#allocation8], 4
      %s64 = int_to_ptr.vmem [resolvable:$true] %s63
      %69 = dma.hbm_to_vmem [thread:$0]  %s3, 2048, %s64, [#allocation9], 128, 128, 8
    $region17: #{tpu_custom_call.1} parent=1 // pred_fallthru
      _
    // Predicated region
    $region18: #{tpu_custom_call.1} parent=1 // pred_check
      _
    $region19: #{tpu_custom_call.1} parent=1 // pred_check_branch
      %71 = sbr.rel (0) target = $region21
    $region20: #{tpu_custom_call.1} parent=1 // pred_region
      %s73 = ssub.s32 16, 16
      %74 = vsyncadd [#allocation9], %s73
      %s76 = sshll.u32 [#allocation10], 4
      %s77 = int_to_ptr.vmem [resolvable:$true] %s76
      %79 = dma.hbm_to_vmem [thread:$0]  %s4, 16, %s77, [#allocation9]
    $region21: #{tpu_custom_call.1} parent=1 // pred_fallthru
      _
    // Predicated region
    $region22: #{tpu_custom_call.1} parent=1 // pred_check
      _
    $region23: #{tpu_custom_call.1} parent=1 // pred_check_branch
      %81 = sbr.rel (0) target = $region25
    $region24: #{tpu_custom_call.1} parent=1 // pred_region
      %s83 = ssub.s32 2048, 2048
      %84 = vsyncadd [#allocation12], %s83
      %s85 = sshll.u32 [#allocation11], 4
      %s86 = int_to_ptr.vmem [resolvable:$true] %s85
      %91 = dma.hbm_to_vmem [thread:$0]  %s5, 2048, %s86, [#allocation12], 128, 128, 8
    $region25: #{tpu_custom_call.1} parent=1 // pred_fallthru
      _
    // Predicated region
    $region26: #{tpu_custom_call.1} parent=1 // pred_check
      _
    $region27: #{tpu_custom_call.1} parent=1 // pred_check_branch
      %93 = sbr.rel (0) target = $region29
    $region28: #{tpu_custom_call.1} parent=1 // pred_region
      %s95 = ssub.s32 16, 16
      %96 = vsyncadd [#allocation12], %s95
      %s98 = sshll.u32 [#allocation13], 4
      %s99 = int_to_ptr.vmem [resolvable:$true] %s98
      %101 = dma.hbm_to_vmem [thread:$0]  %s6, 16, %s99, [#allocation12]
    $region29: #{tpu_custom_call.1} parent=1 // pred_fallthru
      _
    // Predicated region
    $region30: #{tpu_custom_call.1} parent=1 // pred_check
      _
    $region31: #{tpu_custom_call.1} parent=1 // pred_check_branch
      %103 = sbr.rel (0) target = $region33
    $region32: #{tpu_custom_call.1} parent=1 // pred_region
      %s105 = ssub.s32 2048, 2048
      %106 = vsyncadd [#allocation15], %s105
      %s107 = sshll.u32 [#allocation14], 4
      %s108 = int_to_ptr.vmem [resolvable:$true] %s107
      %113 = dma.hbm_to_vmem [thread:$0]  %s7, 2048, %s108, [#allocation15], 128, 128, 8
    $region33: #{tpu_custom_call.1} parent=1 // pred_fallthru
      _
    // Predicated region
    $region34: #{tpu_custom_call.1} parent=1 // pred_check
      _
    $region35: #{tpu_custom_call.1} parent=1 // pred_check_branch
      %115 = sbr.rel (0) target = $region37
    $region36: #{tpu_custom_call.1} parent=1 // pred_region
      %s117 = ssub.s32 16, 16
      %118 = vsyncadd [#allocation15], %s117
      %s120 = sshll.u32 [#allocation16], 4
      %s121 = int_to_ptr.vmem [resolvable:$true] %s120
      %123 = dma.hbm_to_vmem [thread:$0]  %s8, 16, %s121, [#allocation15]
    $region37: #{tpu_custom_call.1} parent=1 // pred_fallthru
      _
    // Predicated region
    $region38: #{tpu_custom_call.1} parent=1 // pred_check
      _
    $region39: #{tpu_custom_call.1} parent=1 // pred_check_branch
      %125 = sbr.rel (0) target = $region41
    $region40: #{tpu_custom_call.1} parent=1 // pred_region
      %s127 = ssub.s32 2048, 2048
      %128 = vsyncadd [#allocation18], %s127
      %s129 = sshll.u32 [#allocation17], 4
      %s130 = int_to_ptr.vmem [resolvable:$true] %s129
      %135 = dma.hbm_to_vmem [thread:$0]  %s9, 2048, %s130, [#allocation18], 128, 128, 8
    $region41: #{tpu_custom_call.1} parent=1 // pred_fallthru
      _
    // Predicated region
    $region42: #{tpu_custom_call.1} parent=1 // pred_check
      _
    $region43: #{tpu_custom_call.1} parent=1 // pred_check_branch
      %137 = sbr.rel (0) target = $region45
    $region44: #{tpu_custom_call.1} parent=1 // pred_region
      %s139 = ssub.s32 16, 16
      %140 = vsyncadd [#allocation18], %s139
      %s142 = sshll.u32 [#allocation19], 4
      %s143 = int_to_ptr.vmem [resolvable:$true] %s142
      %145 = dma.hbm_to_vmem [thread:$0]  %s10, 16, %s143, [#allocation18]
    $region45: #{tpu_custom_call.1} parent=1 // pred_fallthru
      _
    // Predicated region
    $region46: #{tpu_custom_call.1} parent=1 // pred_check
      _
    $region47: #{tpu_custom_call.1} parent=1 // pred_check_branch
      %147 = sbr.rel (0) target = $region49
    $region48: #{tpu_custom_call.1} parent=1 // pred_region
      %148 = dma.done [#allocation3], 128
    $region49: #{tpu_custom_call.1} parent=1 // pred_fallthru
      _
    // Predicated region
    $region50: #{tpu_custom_call.1} parent=1 // pred_check
      _
    $region51: #{tpu_custom_call.1} parent=1 // pred_check_branch
      %150 = sbr.rel (0) target = $region53
    $region52: #{tpu_custom_call.1} parent=1 // pred_region
      %151 = dma.done [#allocation6], 16384
    $region53: #{tpu_custom_call.1} parent=1 // pred_fallthru
      _
    // Predicated region
    $region54: #{tpu_custom_call.1} parent=1 // pred_check
      _
    $region55: #{tpu_custom_call.1} parent=1 // pred_check_branch
      %153 = sbr.rel (0) target = $region57
    $region56: #{tpu_custom_call.1} parent=1 // pred_region
      %154 = dma.done [#allocation6], 128
    $region57: #{tpu_custom_call.1} parent=1 // pred_fallthru
      _
    // Predicated region
    $region58: #{tpu_custom_call.1} parent=1 // pred_check
      _
    $region59: #{tpu_custom_call.1} parent=1 // pred_check_branch
      %156 = sbr.rel (0) target = $region61
    $region60: #{tpu_custom_call.1} parent=1 // pred_region
      %157 = dma.done [#allocation9], 2048
    $region61: #{tpu_custom_call.1} parent=1 // pred_fallthru
      _
    // Predicated region
    $region62: #{tpu_custom_call.1} parent=1 // pred_check
      _
    $region63: #{tpu_custom_call.1} parent=1 // pred_check_branch
      %159 = sbr.rel (0) target = $region65
    $region64: #{tpu_custom_call.1} parent=1 // pred_region
      %160 = dma.done [#allocation9], 16
    $region65: #{tpu_custom_call.1} parent=1 // pred_fallthru
      _
    // Predicated region
    $region66: #{tpu_custom_call.1} parent=1 // pred_check
      _
    $region67: #{tpu_custom_call.1} parent=1 // pred_check_branch
      %162 = sbr.rel (0) target = $region69
    $region68: #{tpu_custom_call.1} parent=1 // pred_region
      %163 = dma.done [#allocation12], 2048
    $region69: #{tpu_custom_call.1} parent=1 // pred_fallthru
      _
    // Predicated region
    $region70: #{tpu_custom_call.1} parent=1 // pred_check
      _
    $region71: #{tpu_custom_call.1} parent=1 // pred_check_branch
      %165 = sbr.rel (0) target = $region73
    $region72: #{tpu_custom_call.1} parent=1 // pred_region
      %166 = dma.done [#allocation12], 16
    $region73: #{tpu_custom_call.1} parent=1 // pred_fallthru
      _
    // Predicated region
    $region74: #{tpu_custom_call.1} parent=1 // pred_check
      _
    $region75: #{tpu_custom_call.1} parent=1 // pred_check_branch
      %168 = sbr.rel (0) target = $region77
    $region76: #{tpu_custom_call.1} parent=1 // pred_region
      %169 = dma.done [#allocation15], 2048
    $region77: #{tpu_custom_call.1} parent=1 // pred_fallthru
      _
    // Predicated region
    $region78: #{tpu_custom_call.1} parent=1 // pred_check
      _
    $region79: #{tpu_custom_call.1} parent=1 // pred_check_branch
      %171 = sbr.rel (0) target = $region81
    $region80: #{tpu_custom_call.1} parent=1 // pred_region
      %172 = dma.done [#allocation15], 16
    $region81: #{tpu_custom_call.1} parent=1 // pred_fallthru
      _
    // Predicated region
    $region82: #{tpu_custom_call.1} parent=1 // pred_check
      _
    $region83: #{tpu_custom_call.1} parent=1 // pred_check_branch
      %174 = sbr.rel (0) target = $region85
    $region84: #{tpu_custom_call.1} parent=1 // pred_region
      %175 = dma.done [#allocation18], 2048
    $region85: #{tpu_custom_call.1} parent=1 // pred_fallthru
      _
    // Predicated region
    $region86: #{tpu_custom_call.1} parent=1 // pred_check
      _
    $region87: #{tpu_custom_call.1} parent=1 // pred_check_branch
      %177 = sbr.rel (0) target = $region89
    $region88: #{tpu_custom_call.1} parent=1 // pred_region
      %178 = dma.done [#allocation18], 16
    $region89: #{tpu_custom_call.1} parent=1 // pred_fallthru
      _
    %v179 = vld [vmem:[#allocation2] sm:$0xff]
    %v180 = vld [vmem:[#allocation5] sm:$0xff]
    %v181 = vld [vmem:[#allocation5 + $0x8] sm:$0xff]
    %v182 = vld [vmem:[#allocation5 + $0x10] sm:$0xff]
    %v183 = vld [vmem:[#allocation5 + $0x18] sm:$0xff]
    %v184 = vld [vmem:[#allocation5 + $0x20] sm:$0xff]
    %v185 = vld [vmem:[#allocation5 + $0x28] sm:$0xff]
    %v186 = vld [vmem:[#allocation5 + $0x30] sm:$0xff]
    %v187 = vld [vmem:[#allocation5 + $0x38] sm:$0xff]
    %v188 = vld [vmem:[#allocation5 + $0x40] sm:$0xff]
    %v189 = vld [vmem:[#allocation5 + $0x48] sm:$0xff]
    %v190 = vld [vmem:[#allocation5 + $0x50] sm:$0xff]
    %v191 = vld [vmem:[#allocation5 + $0x58] sm:$0xff]
    %v192 = vld [vmem:[#allocation5 + $0x60] sm:$0xff]
    %v193 = vld [vmem:[#allocation5 + $0x68] sm:$0xff]
    %v194 = vld [vmem:[#allocation5 + $0x70] sm:$0xff]
    %v195 = vld [vmem:[#allocation5 + $0x78] sm:$0xff]
    %v196 = vld [vmem:[#allocation5 + $0x80] sm:$0xff]
    %v197 = vld [vmem:[#allocation5 + $0x88] sm:$0xff]
    %v198 = vld [vmem:[#allocation5 + $0x90] sm:$0xff]
    %v199 = vld [vmem:[#allocation5 + $0x98] sm:$0xff]
    %v200 = vld [vmem:[#allocation5 + $0xa0] sm:$0xff]
    %v201 = vld [vmem:[#allocation5 + $0xa8] sm:$0xff]
    %v202 = vld [vmem:[#allocation5 + $0xb0] sm:$0xff]
    %v203 = vld [vmem:[#allocation5 + $0xb8] sm:$0xff]
    %v204 = vld [vmem:[#allocation5 + $0xc0] sm:$0xff]
    %v205 = vld [vmem:[#allocation5 + $0xc8] sm:$0xff]
    %v206 = vld [vmem:[#allocation5 + $0xd0] sm:$0xff]
    %v207 = vld [vmem:[#allocation5 + $0xd8] sm:$0xff]
    %v208 = vld [vmem:[#allocation5 + $0xe0] sm:$0xff]
    %v209 = vld [vmem:[#allocation5 + $0xe8] sm:$0xff]
    %v210 = vld [vmem:[#allocation5 + $0xf0] sm:$0xff]
    %v211 = vld [vmem:[#allocation5 + $0xf8] sm:$0xff]
    %v212 = vld [vmem:[#allocation5 + $0x100] sm:$0xff]
    %v213 = vld [vmem:[#allocation5 + $0x108] sm:$0xff]
    %v214 = vld [vmem:[#allocation5 + $0x110] sm:$0xff]
    %v215 = vld [vmem:[#allocation5 + $0x118] sm:$0xff]
    %v216 = vld [vmem:[#allocation5 + $0x120] sm:$0xff]
    %v217 = vld [vmem:[#allocation5 + $0x128] sm:$0xff]
    %v218 = vld [vmem:[#allocation5 + $0x130] sm:$0xff]
    %v219 = vld [vmem:[#allocation5 + $0x138] sm:$0xff]
    %v220 = vld [vmem:[#allocation5 + $0x140] sm:$0xff]
    %v221 = vld [vmem:[#allocation5 + $0x148] sm:$0xff]
    %v222 = vld [vmem:[#allocation5 + $0x150] sm:$0xff]
    %v223 = vld [vmem:[#allocation5 + $0x158] sm:$0xff]
    %v224 = vld [vmem:[#allocation5 + $0x160] sm:$0xff]
    %v225 = vld [vmem:[#allocation5 + $0x168] sm:$0xff]
    %v226 = vld [vmem:[#allocation5 + $0x170] sm:$0xff]
    %v227 = vld [vmem:[#allocation5 + $0x178] sm:$0xff]
    %v228 = vld [vmem:[#allocation5 + $0x180] sm:$0xff]
    %v229 = vld [vmem:[#allocation5 + $0x188] sm:$0xff]
    %v230 = vld [vmem:[#allocation5 + $0x190] sm:$0xff]
    %v231 = vld [vmem:[#allocation5 + $0x198] sm:$0xff]
    %v232 = vld [vmem:[#allocation5 + $0x1a0] sm:$0xff]
    %v233 = vld [vmem:[#allocation5 + $0x1a8] sm:$0xff]
    %v234 = vld [vmem:[#allocation5 + $0x1b0] sm:$0xff]
    %v235 = vld [vmem:[#allocation5 + $0x1b8] sm:$0xff]
    %v236 = vld [vmem:[#allocation5 + $0x1c0] sm:$0xff]
    %v237 = vld [vmem:[#allocation5 + $0x1c8] sm:$0xff]
    %v238 = vld [vmem:[#allocation5 + $0x1d0] sm:$0xff]
    %v239 = vld [vmem:[#allocation5 + $0x1d8] sm:$0xff]
    %v240 = vld [vmem:[#allocation5 + $0x1e0] sm:$0xff]
    %v241 = vld [vmem:[#allocation5 + $0x1e8] sm:$0xff]
    %v242 = vld [vmem:[#allocation5 + $0x1f0] sm:$0xff]
    %v243 = vld [vmem:[#allocation5 + $0x1f8] sm:$0xff]
    %v244 = vld [vmem:[#allocation5 + $0x200] sm:$0xff]
    %v245 = vld [vmem:[#allocation5 + $0x208] sm:$0xff]
    %v246 = vld [vmem:[#allocation5 + $0x210] sm:$0xff]
    %v247 = vld [vmem:[#allocation5 + $0x218] sm:$0xff]
    %v248 = vld [vmem:[#allocation5 + $0x220] sm:$0xff]
    %v249 = vld [vmem:[#allocation5 + $0x228] sm:$0xff]
    %v250 = vld [vmem:[#allocation5 + $0x230] sm:$0xff]
    %v251 = vld [vmem:[#allocation5 + $0x238] sm:$0xff]
    %v252 = vld [vmem:[#allocation5 + $0x240] sm:$0xff]
    %v253 = vld [vmem:[#allocation5 + $0x248] sm:$0xff]
    %v254 = vld [vmem:[#allocation5 + $0x250] sm:$0xff]
    %v255 = vld [vmem:[#allocation5 + $0x258] sm:$0xff]
    %v256 = vld [vmem:[#allocation5 + $0x260] sm:$0xff]
    %v257 = vld [vmem:[#allocation5 + $0x268] sm:$0xff]
    %v258 = vld [vmem:[#allocation5 + $0x270] sm:$0xff]
    %v259 = vld [vmem:[#allocation5 + $0x278] sm:$0xff]
    %v260 = vld [vmem:[#allocation5 + $0x280] sm:$0xff]
    %v261 = vld [vmem:[#allocation5 + $0x288] sm:$0xff]
    %v262 = vld [vmem:[#allocation5 + $0x290] sm:$0xff]
    %v263 = vld [vmem:[#allocation5 + $0x298] sm:$0xff]
    %v264 = vld [vmem:[#allocation5 + $0x2a0] sm:$0xff]
    %v265 = vld [vmem:[#allocation5 + $0x2a8] sm:$0xff]
    %v266 = vld [vmem:[#allocation5 + $0x2b0] sm:$0xff]
    %v267 = vld [vmem:[#allocation5 + $0x2b8] sm:$0xff]
    %v268 = vld [vmem:[#allocation5 + $0x2c0] sm:$0xff]
    %v269 = vld [vmem:[#allocation5 + $0x2c8] sm:$0xff]
    %v270 = vld [vmem:[#allocation5 + $0x2d0] sm:$0xff]
    %v271 = vld [vmem:[#allocation5 + $0x2d8] sm:$0xff]
    %v272 = vld [vmem:[#allocation5 + $0x2e0] sm:$0xff]
    %v273 = vld [vmem:[#allocation5 + $0x2e8] sm:$0xff]
    %v274 = vld [vmem:[#allocation5 + $0x2f0] sm:$0xff]
    %v275 = vld [vmem:[#allocation5 + $0x2f8] sm:$0xff]
    %v276 = vld [vmem:[#allocation5 + $0x300] sm:$0xff]
    %v277 = vld [vmem:[#allocation5 + $0x308] sm:$0xff]
    %v278 = vld [vmem:[#allocation5 + $0x310] sm:$0xff]
    %v279 = vld [vmem:[#allocation5 + $0x318] sm:$0xff]
    %v280 = vld [vmem:[#allocation5 + $0x320] sm:$0xff]
    %v281 = vld [vmem:[#allocation5 + $0x328] sm:$0xff]
    %v282 = vld [vmem:[#allocation5 + $0x330] sm:$0xff]
    %v283 = vld [vmem:[#allocation5 + $0x338] sm:$0xff]
    %v284 = vld [vmem:[#allocation5 + $0x340] sm:$0xff]
    %v285 = vld [vmem:[#allocation5 + $0x348] sm:$0xff]
    %v286 = vld [vmem:[#allocation5 + $0x350] sm:$0xff]
    %v287 = vld [vmem:[#allocation5 + $0x358] sm:$0xff]
    %v288 = vld [vmem:[#allocation5 + $0x360] sm:$0xff]
    %v289 = vld [vmem:[#allocation5 + $0x368] sm:$0xff]
    %v290 = vld [vmem:[#allocation5 + $0x370] sm:$0xff]
    %v291 = vld [vmem:[#allocation5 + $0x378] sm:$0xff]
    %v292 = vld [vmem:[#allocation5 + $0x380] sm:$0xff]
    %v293 = vld [vmem:[#allocation5 + $0x388] sm:$0xff]
    %v294 = vld [vmem:[#allocation5 + $0x390] sm:$0xff]
    %v295 = vld [vmem:[#allocation5 + $0x398] sm:$0xff]
    %v296 = vld [vmem:[#allocation5 + $0x3a0] sm:$0xff]
    %v297 = vld [vmem:[#allocation5 + $0x3a8] sm:$0xff]
    %v298 = vld [vmem:[#allocation5 + $0x3b0] sm:$0xff]
    %v299 = vld [vmem:[#allocation5 + $0x3b8] sm:$0xff]
    %v300 = vld [vmem:[#allocation5 + $0x3c0] sm:$0xff]
    %v301 = vld [vmem:[#allocation5 + $0x3c8] sm:$0xff]
    %v302 = vld [vmem:[#allocation5 + $0x3d0] sm:$0xff]
    %v303 = vld [vmem:[#allocation5 + $0x3d8] sm:$0xff]
    %v304 = vld [vmem:[#allocation5 + $0x3e0] sm:$0xff]
    %v305 = vld [vmem:[#allocation5 + $0x3e8] sm:$0xff]
    %v306 = vld [vmem:[#allocation5 + $0x3f0] sm:$0xff]
    %v307 = vld [vmem:[#allocation5 + $0x3f8] sm:$0xff]
    %v308 = vld [vmem:[#allocation8] sm:$0xff]
    %v309 = vld [vmem:[#allocation8 + $0x8] sm:$0xff]
    %v310 = vld [vmem:[#allocation8 + $0x10] sm:$0xff]
    %v311 = vld [vmem:[#allocation8 + $0x18] sm:$0xff]
    %v312 = vld [vmem:[#allocation8 + $0x20] sm:$0xff]
    %v313 = vld [vmem:[#allocation8 + $0x28] sm:$0xff]
    %v314 = vld [vmem:[#allocation8 + $0x30] sm:$0xff]
    %v315 = vld [vmem:[#allocation8 + $0x38] sm:$0xff]
    %v316 = vld [vmem:[#allocation8 + $0x40] sm:$0xff]
    %v317 = vld [vmem:[#allocation8 + $0x48] sm:$0xff]
    %v318 = vld [vmem:[#allocation8 + $0x50] sm:$0xff]
    %v319 = vld [vmem:[#allocation8 + $0x58] sm:$0xff]
    %v320 = vld [vmem:[#allocation8 + $0x60] sm:$0xff]
    %v321 = vld [vmem:[#allocation8 + $0x68] sm:$0xff]
    %v322 = vld [vmem:[#allocation8 + $0x70] sm:$0xff]
    %v323 = vld [vmem:[#allocation8 + $0x78] sm:$0xff]
    %v324 = vld [vmem:[#allocation10] sm:$0x1]
    %v326 = vlaneseq
    %v327 = vshrl.u32 %v326, 7
    %v328 = vsub.s32 0, %v327
    %v329 = vrot.slane %v324, %v328
    %331 = vmatprep.subr.mxu0 0.0
    %332 = vmatpush1.msra.mxu0 %v308
    %333 = vmatprep.subr.mxu0 0.0
    %334 = vmatpush1.msra.mxu0 %v309
    %335 = vmatprep.subr.mxu0 0.0
    %336 = vmatpush1.msra.mxu0 %v310
    %337 = vmatprep.subr.mxu0 0.0
    %338 = vmatpush1.msra.mxu0 %v311
    %339 = vmatprep.subr.mxu0 0.0
    %340 = vmatpush1.msra.mxu0 %v312
    %341 = vmatprep.subr.mxu0 0.0
    %342 = vmatpush1.msra.mxu0 %v313
    %343 = vmatprep.subr.mxu0 0.0
    %344 = vmatpush1.msra.mxu0 %v314
    %345 = vmatprep.subr.mxu0 0.0
    %346 = vmatpush1.msra.mxu0 %v315
    %347 = vmatprep.subr.mxu0 0.0
    %348 = vmatpush1.msra.mxu0 %v316
    %349 = vmatprep.subr.mxu0 0.0
    %350 = vmatpush1.msra.mxu0 %v317
    %351 = vmatprep.subr.mxu0 0.0
    %352 = vmatpush1.msra.mxu0 %v318
    %353 = vmatprep.subr.mxu0 0.0
    %354 = vmatpush1.msra.mxu0 %v319
    %355 = vmatprep.subr.mxu0 0.0
    %356 = vmatpush1.msra.mxu0 %v320
    %357 = vmatprep.subr.mxu0 0.0
    %358 = vmatpush1.msra.mxu0 %v321
    %359 = vmatprep.subr.mxu0 0.0
    %360 = vmatpush1.msra.mxu0 %v322
    %361 = vmatprep.subr.mxu0 0.0
    %362 = vmatpush1.msra.mxu0 %v323
    %363 = vmatprep.subr.mxu0 0.0
    %364 = vmatpush1.msra.mxu0 0.0
    %365 = vmatprep.subr.mxu0 0.0
    %366 = vmatpush1.msra.mxu0 0.0
    %367 = vmatprep.subr.mxu0 0.0
    %368 = vmatpush1.msra.mxu0 0.0
    %369 = vmatprep.subr.mxu0 0.0
    %370 = vmatpush1.msra.mxu0 0.0
    %371 = vmatprep.subr.mxu0 0.0
    %372 = vmatpush1.msra.mxu0 0.0
    %373 = vmatprep.subr.mxu0 0.0
    %374 = vmatpush1.msra.mxu0 0.0
    %375 = vmatprep.subr.mxu0 0.0
    %376 = vmatpush1.msra.mxu0 0.0
    %377 = vmatprep.subr.mxu0 0.0
    %378 = vmatpush1.msra.mxu0 0.0
    %379 = vmatprep.subr.mxu0 0.0
    %380 = vmatpush1.msra.mxu0 0.0
    %381 = vmatprep.subr.mxu0 0.0
    %382 = vmatpush1.msra.mxu0 0.0
    %383 = vmatprep.subr.mxu0 0.0
    %384 = vmatpush1.msra.mxu0 0.0
    %385 = vmatprep.subr.mxu0 0.0
    %386 = vmatpush1.msra.mxu0 0.0
    %387 = vmatprep.subr.mxu0 0.0
    %388 = vmatpush1.msra.mxu0 0.0
    %389 = vmatprep.subr.mxu0 0.0
    %390 = vmatpush1.msra.mxu0 0.0
    %391 = vmatprep.subr.mxu0 0.0
    %392 = vmatpush1.msra.mxu0 0.0
    %393 = vmatprep.subr.mxu0 0.0
    %394 = vmatpush1.msra.mxu0 0.0
    %395 = vmatprep.mubr.f32.mxu0 0.0
    %396 = vmatmul.mubr.f32.gmra.mrb[0].mxu0 %v179
    %v397 = vpop.f32.mrb[0].mxu0
    %v398 = vadd.f32 %v329, %v397
    %v399 = vpop.f32.mrb[0].mxu0
    %400 = vdwg.mxu0
    %v401 = vtanh.pop %v398
    %v402 = vld [vmem:[#allocation11] sm:$0xff]
    %v403 = vld [vmem:[#allocation11 + $0x8] sm:$0xff]
    %v404 = vld [vmem:[#allocation11 + $0x10] sm:$0xff]
    %v405 = vld [vmem:[#allocation11 + $0x18] sm:$0xff]
    %v406 = vld [vmem:[#allocation11 + $0x20] sm:$0xff]
    %v407 = vld [vmem:[#allocation11 + $0x28] sm:$0xff]
    %v408 = vld [vmem:[#allocation11 + $0x30] sm:$0xff]
    %v409 = vld [vmem:[#allocation11 + $0x38] sm:$0xff]
    %v410 = vld [vmem:[#allocation11 + $0x40] sm:$0xff]
    %v411 = vld [vmem:[#allocation11 + $0x48] sm:$0xff]
    %v412 = vld [vmem:[#allocation11 + $0x50] sm:$0xff]
    %v413 = vld [vmem:[#allocation11 + $0x58] sm:$0xff]
    %v414 = vld [vmem:[#allocation11 + $0x60] sm:$0xff]
    %v415 = vld [vmem:[#allocation11 + $0x68] sm:$0xff]
    %v416 = vld [vmem:[#allocation11 + $0x70] sm:$0xff]
    %v417 = vld [vmem:[#allocation11 + $0x78] sm:$0xff]
    %v418 = vld [vmem:[#allocation13] sm:$0x1]
    %v420 = vlaneseq
    %v421 = vshrl.u32 %v420, 7
    %v422 = vsub.s32 0, %v421
    %v423 = vrot.slane %v418, %v422
    %425 = vmatprep.subr.mxu0 0.0
    %426 = vmatpush1.msra.mxu0 %v402
    %427 = vmatprep.subr.mxu0 0.0
    %428 = vmatpush1.msra.mxu0 %v403
    %429 = vmatprep.subr.mxu0 0.0
    %430 = vmatpush1.msra.mxu0 %v404
    %431 = vmatprep.subr.mxu0 0.0
    %432 = vmatpush1.msra.mxu0 %v405
    %433 = vmatprep.subr.mxu0 0.0
    %434 = vmatpush1.msra.mxu0 %v406
    %435 = vmatprep.subr.mxu0 0.0
    %436 = vmatpush1.msra.mxu0 %v407
    %437 = vmatprep.subr.mxu0 0.0
    %438 = vmatpush1.msra.mxu0 %v408
    %439 = vmatprep.subr.mxu0 0.0
    %440 = vmatpush1.msra.mxu0 %v409
    %441 = vmatprep.subr.mxu0 0.0
    %442 = vmatpush1.msra.mxu0 %v410
    %443 = vmatprep.subr.mxu0 0.0
    %444 = vmatpush1.msra.mxu0 %v411
    %445 = vmatprep.subr.mxu0 0.0
    %446 = vmatpush1.msra.mxu0 %v412
    %447 = vmatprep.subr.mxu0 0.0
    %448 = vmatpush1.msra.mxu0 %v413
    %449 = vmatprep.subr.mxu0 0.0
    %450 = vmatpush1.msra.mxu0 %v414
    %451 = vmatprep.subr.mxu0 0.0
    %452 = vmatpush1.msra.mxu0 %v415
    %453 = vmatprep.subr.mxu0 0.0
    %454 = vmatpush1.msra.mxu0 %v416
    %455 = vmatprep.subr.mxu0 0.0
    %456 = vmatpush1.msra.mxu0 %v417
    %457 = vmatprep.subr.mxu0 0.0
    %458 = vmatpush1.msra.mxu0 0.0
    %459 = vmatprep.subr.mxu0 0.0
    %460 = vmatpush1.msra.mxu0 0.0
    %461 = vmatprep.subr.mxu0 0.0
    %462 = vmatpush1.msra.mxu0 0.0
    %463 = vmatprep.subr.mxu0 0.0
    %464 = vmatpush1.msra.mxu0 0.0
    %465 = vmatprep.subr.mxu0 0.0
    %466 = vmatpush1.msra.mxu0 0.0
    %467 = vmatprep.subr.mxu0 0.0
    %468 = vmatpush1.msra.mxu0 0.0
    %469 = vmatprep.subr.mxu0 0.0
    %470 = vmatpush1.msra.mxu0 0.0
    %471 = vmatprep.subr.mxu0 0.0
    %472 = vmatpush1.msra.mxu0 0.0
    %473 = vmatprep.subr.mxu0 0.0
    %474 = vmatpush1.msra.mxu0 0.0
    %475 = vmatprep.subr.mxu0 0.0
    %476 = vmatpush1.msra.mxu0 0.0
    %477 = vmatprep.subr.mxu0 0.0
    %478 = vmatpush1.msra.mxu0 0.0
    %479 = vmatprep.subr.mxu0 0.0
    %480 = vmatpush1.msra.mxu0 0.0
    %481 = vmatprep.subr.mxu0 0.0
    %482 = vmatpush1.msra.mxu0 0.0
    %483 = vmatprep.subr.mxu0 0.0
    %484 = vmatpush1.msra.mxu0 0.0
    %485 = vmatprep.subr.mxu0 0.0
    %486 = vmatpush1.msra.mxu0 0.0
    %487 = vmatprep.subr.mxu0 0.0
    %488 = vmatpush1.msra.mxu0 0.0
    %489 = vmatprep.mubr.f32.mxu0 0.0
    %490 = vmatmul.mubr.f32.gmra.mrb[0].mxu0 %v180
    %v491 = vpop.f32.mrb[0].mxu0
    %v492 = vadd.f32 %v423, %v491
    %v493 = vpop.f32.mrb[0].mxu0
    %494 = vmatprep.mubr.f32.mxu0 0.0
    %495 = vmatmul.mubr.f32.gmra.mrb[0].mxu0 %v181
    %v496 = vpop.f32.mrb[0].mxu0
    %v497 = vadd.f32 %v423, %v496
    %v498 = vpop.f32.mrb[0].mxu0
    %499 = vmatprep.mubr.f32.mxu0 0.0
    %500 = vmatmul.mubr.f32.gmra.mrb[0].mxu0 %v182
    %v501 = vpop.f32.mrb[0].mxu0
    %v502 = vadd.f32 %v423, %v501
    %v503 = vpop.f32.mrb[0].mxu0
    %504 = vmatprep.mubr.f32.mxu0 0.0
    %505 = vmatmul.mubr.f32.gmra.mrb[0].mxu0 %v183
    %v506 = vpop.f32.mrb[0].mxu0
    %v507 = vadd.f32 %v423, %v506
    %v508 = vpop.f32.mrb[0].mxu0
    %509 = vmatprep.mubr.f32.mxu0 0.0
    %510 = vmatmul.mubr.f32.gmra.mrb[0].mxu0 %v184
    %v511 = vpop.f32.mrb[0].mxu0
    %v512 = vadd.f32 %v423, %v511
    %v513 = vpop.f32.mrb[0].mxu0
    %514 = vmatprep.mubr.f32.mxu0 0.0
    %515 = vmatmul.mubr.f32.gmra.mrb[0].mxu0 %v185
    %v516 = vpop.f32.mrb[0].mxu0
    %v517 = vadd.f32 %v423, %v516
    %v518 = vpop.f32.mrb[0].mxu0
    %519 = vmatprep.mubr.f32.mxu0 0.0
    %520 = vmatmul.mubr.f32.gmra.mrb[0].mxu0 %v186
    %v521 = vpop.f32.mrb[0].mxu0
    %v522 = vadd.f32 %v423, %v521
    %v523 = vpop.f32.mrb[0].mxu0
    %524 = vmatprep.mubr.f32.mxu0 0.0
    %525 = vmatmul.mubr.f32.gmra.mrb[0].mxu0 %v187
    %v526 = vpop.f32.mrb[0].mxu0
    %v527 = vadd.f32 %v423, %v526
    %v528 = vpop.f32.mrb[0].mxu0
    %529 = vmatprep.mubr.f32.mxu0 0.0
    %530 = vmatmul.mubr.f32.gmra.mrb[0].mxu0 %v188
    %v531 = vpop.f32.mrb[0].mxu0
    %v532 = vadd.f32 %v423, %v531
    %v533 = vpop.f32.mrb[0].mxu0
    %534 = vmatprep.mubr.f32.mxu0 0.0
    %535 = vmatmul.mubr.f32.gmra.mrb[0].mxu0 %v189
    %v536 = vpop.f32.mrb[0].mxu0
    %v537 = vadd.f32 %v423, %v536
    %v538 = vpop.f32.mrb[0].mxu0
    %539 = vmatprep.mubr.f32.mxu0 0.0
    %540 = vmatmul.mubr.f32.gmra.mrb[0].mxu0 %v190
    %v541 = vpop.f32.mrb[0].mxu0
    %v542 = vadd.f32 %v423, %v541
    %v543 = vpop.f32.mrb[0].mxu0
    %544 = vmatprep.mubr.f32.mxu0 0.0
    %545 = vmatmul.mubr.f32.gmra.mrb[0].mxu0 %v191
    %v546 = vpop.f32.mrb[0].mxu0
    %v547 = vadd.f32 %v423, %v546
    %v548 = vpop.f32.mrb[0].mxu0
    %549 = vmatprep.mubr.f32.mxu0 0.0
    %550 = vmatmul.mubr.f32.gmra.mrb[0].mxu0 %v192
    %v551 = vpop.f32.mrb[0].mxu0
    %v552 = vadd.f32 %v423, %v551
    %v553 = vpop.f32.mrb[0].mxu0
    %554 = vmatprep.mubr.f32.mxu0 0.0
    %555 = vmatmul.mubr.f32.gmra.mrb[0].mxu0 %v193
    %v556 = vpop.f32.mrb[0].mxu0
    %v557 = vadd.f32 %v423, %v556
    %v558 = vpop.f32.mrb[0].mxu0
    %559 = vmatprep.mubr.f32.mxu0 0.0
    %560 = vmatmul.mubr.f32.gmra.mrb[0].mxu0 %v194
    %v561 = vpop.f32.mrb[0].mxu0
    %v562 = vadd.f32 %v423, %v561
    %v563 = vpop.f32.mrb[0].mxu0
    %564 = vmatprep.mubr.f32.mxu0 0.0
    %565 = vmatmul.mubr.f32.gmra.mrb[0].mxu0 %v195
    %v566 = vpop.f32.mrb[0].mxu0
    %v567 = vadd.f32 %v423, %v566
    %v568 = vpop.f32.mrb[0].mxu0
    %569 = vmatprep.mubr.f32.mxu0 0.0
    %570 = vmatmul.mubr.f32.gmra.mrb[0].mxu0 %v196
    %v571 = vpop.f32.mrb[0].mxu0
    %v572 = vadd.f32 %v423, %v571
    %v573 = vpop.f32.mrb[0].mxu0
    %574 = vmatprep.mubr.f32.mxu0 0.0
    %575 = vmatmul.mubr.f32.gmra.mrb[0].mxu0 %v197
    %v576 = vpop.f32.mrb[0].mxu0
    %v577 = vadd.f32 %v423, %v576
    %v578 = vpop.f32.mrb[0].mxu0
    %579 = vmatprep.mubr.f32.mxu0 0.0
    %580 = vmatmul.mubr.f32.gmra.mrb[0].mxu0 %v198
    %v581 = vpop.f32.mrb[0].mxu0
    %v582 = vadd.f32 %v423, %v581
    %v583 = vpop.f32.mrb[0].mxu0
    %584 = vmatprep.mubr.f32.mxu0 0.0
    %585 = vmatmul.mubr.f32.gmra.mrb[0].mxu0 %v199
    %v586 = vpop.f32.mrb[0].mxu0
    %v587 = vadd.f32 %v423, %v586
    %v588 = vpop.f32.mrb[0].mxu0
    %589 = vmatprep.mubr.f32.mxu0 0.0
    %590 = vmatmul.mubr.f32.gmra.mrb[0].mxu0 %v200
    %v591 = vpop.f32.mrb[0].mxu0
    %v592 = vadd.f32 %v423, %v591
    %v593 = vpop.f32.mrb[0].mxu0
    %594 = vmatprep.mubr.f32.mxu0 0.0
    %595 = vmatmul.mubr.f32.gmra.mrb[0].mxu0 %v201
    %v596 = vpop.f32.mrb[0].mxu0
    %v597 = vadd.f32 %v423, %v596
    %v598 = vpop.f32.mrb[0].mxu0
    %599 = vmatprep.mubr.f32.mxu0 0.0
    %600 = vmatmul.mubr.f32.gmra.mrb[0].mxu0 %v202
    %v601 = vpop.f32.mrb[0].mxu0
    %v602 = vadd.f32 %v423, %v601
    %v603 = vpop.f32.mrb[0].mxu0
    %604 = vmatprep.mubr.f32.mxu0 0.0
    %605 = vmatmul.mubr.f32.gmra.mrb[0].mxu0 %v203
    %v606 = vpop.f32.mrb[0].mxu0
    %v607 = vadd.f32 %v423, %v606
    %v608 = vpop.f32.mrb[0].mxu0
    %609 = vmatprep.mubr.f32.mxu0 0.0
    %610 = vmatmul.mubr.f32.gmra.mrb[0].mxu0 %v204
    %v611 = vpop.f32.mrb[0].mxu0
    %v612 = vadd.f32 %v423, %v611
    %v613 = vpop.f32.mrb[0].mxu0
    %614 = vmatprep.mubr.f32.mxu0 0.0
    %615 = vmatmul.mubr.f32.gmra.mrb[0].mxu0 %v205
    %v616 = vpop.f32.mrb[0].mxu0
    %v617 = vadd.f32 %v423, %v616
    %v618 = vpop.f32.mrb[0].mxu0
    %619 = vmatprep.mubr.f32.mxu0 0.0
    %620 = vmatmul.mubr.f32.gmra.mrb[0].mxu0 %v206
    %v621 = vpop.f32.mrb[0].mxu0
    %v622 = vadd.f32 %v423, %v621
    %v623 = vpop.f32.mrb[0].mxu0
    %624 = vmatprep.mubr.f32.mxu0 0.0
    %625 = vmatmul.mubr.f32.gmra.mrb[0].mxu0 %v207
    %v626 = vpop.f32.mrb[0].mxu0
    %v627 = vadd.f32 %v423, %v626
    %v628 = vpop.f32.mrb[0].mxu0
    %629 = vmatprep.mubr.f32.mxu0 0.0
    %630 = vmatmul.mubr.f32.gmra.mrb[0].mxu0 %v208
    %v631 = vpop.f32.mrb[0].mxu0
    %v632 = vadd.f32 %v423, %v631
    %v633 = vpop.f32.mrb[0].mxu0
    %634 = vmatprep.mubr.f32.mxu0 0.0
    %635 = vmatmul.mubr.f32.gmra.mrb[0].mxu0 %v209
    %v636 = vpop.f32.mrb[0].mxu0
    %v637 = vadd.f32 %v423, %v636
    %v638 = vpop.f32.mrb[0].mxu0
    %639 = vmatprep.mubr.f32.mxu0 0.0
    %640 = vmatmul.mubr.f32.gmra.mrb[0].mxu0 %v210
    %v641 = vpop.f32.mrb[0].mxu0
    %v642 = vadd.f32 %v423, %v641
    %v643 = vpop.f32.mrb[0].mxu0
    %644 = vmatprep.mubr.f32.mxu0 0.0
    %645 = vmatmul.mubr.f32.gmra.mrb[0].mxu0 %v211
    %v646 = vpop.f32.mrb[0].mxu0
    %v647 = vadd.f32 %v423, %v646
    %v648 = vpop.f32.mrb[0].mxu0
    %649 = vmatprep.mubr.f32.mxu0 0.0
    %650 = vmatmul.mubr.f32.gmra.mrb[0].mxu0 %v212
    %v651 = vpop.f32.mrb[0].mxu0
    %v652 = vadd.f32 %v423, %v651
    %v653 = vpop.f32.mrb[0].mxu0
    %654 = vmatprep.mubr.f32.mxu0 0.0
    %655 = vmatmul.mubr.f32.gmra.mrb[0].mxu0 %v213
    %v656 = vpop.f32.mrb[0].mxu0
    %v657 = vadd.f32 %v423, %v656
    %v658 = vpop.f32.mrb[0].mxu0
    %659 = vmatprep.mubr.f32.mxu0 0.0
    %660 = vmatmul.mubr.f32.gmra.mrb[0].mxu0 %v214
    %v661 = vpop.f32.mrb[0].mxu0
    %v662 = vadd.f32 %v423, %v661
    %v663 = vpop.f32.mrb[0].mxu0
    %664 = vmatprep.mubr.f32.mxu0 0.0
    %665 = vmatmul.mubr.f32.gmra.mrb[0].mxu0 %v215
    %v666 = vpop.f32.mrb[0].mxu0
    %v667 = vadd.f32 %v423, %v666
    %v668 = vpop.f32.mrb[0].mxu0
    %669 = vmatprep.mubr.f32.mxu0 0.0
    %670 = vmatmul.mubr.f32.gmra.mrb[0].mxu0 %v216
    %v671 = vpop.f32.mrb[0].mxu0
    %v672 = vadd.f32 %v423, %v671
    %v673 = vpop.f32.mrb[0].mxu0
    %674 = vmatprep.mubr.f32.mxu0 0.0
    %675 = vmatmul.mubr.f32.gmra.mrb[0].mxu0 %v217
    %v676 = vpop.f32.mrb[0].mxu0
    %v677 = vadd.f32 %v423, %v676
    %v678 = vpop.f32.mrb[0].mxu0
    %679 = vmatprep.mubr.f32.mxu0 0.0
    %680 = vmatmul.mubr.f32.gmra.mrb[0].mxu0 %v218
    %v681 = vpop.f32.mrb[0].mxu0
    %v682 = vadd.f32 %v423, %v681
    %v683 = vpop.f32.mrb[0].mxu0
    %684 = vmatprep.mubr.f32.mxu0 0.0
    %685 = vmatmul.mubr.f32.gmra.mrb[0].mxu0 %v219
    %v686 = vpop.f32.mrb[0].mxu0
    %v687 = vadd.f32 %v423, %v686
    %v688 = vpop.f32.mrb[0].mxu0
    %689 = vmatprep.mubr.f32.mxu0 0.0
    %690 = vmatmul.mubr.f32.gmra.mrb[0].mxu0 %v220
    %v691 = vpop.f32.mrb[0].mxu0
    %v692 = vadd.f32 %v423, %v691
    %v693 = vpop.f32.mrb[0].mxu0
    %694 = vmatprep.mubr.f32.mxu0 0.0
    %695 = vmatmul.mubr.f32.gmra.mrb[0].mxu0 %v221
    %v696 = vpop.f32.mrb[0].mxu0
    %v697 = vadd.f32 %v423, %v696
    %v698 = vpop.f32.mrb[0].mxu0
    %699 = vmatprep.mubr.f32.mxu0 0.0
    %700 = vmatmul.mubr.f32.gmra.mrb[0].mxu0 %v222
    %v701 = vpop.f32.mrb[0].mxu0
    %v702 = vadd.f32 %v423, %v701
    %v703 = vpop.f32.mrb[0].mxu0
    %704 = vmatprep.mubr.f32.mxu0 0.0
    %705 = vmatmul.mubr.f32.gmra.mrb[0].mxu0 %v223
    %v706 = vpop.f32.mrb[0].mxu0
    %v707 = vadd.f32 %v423, %v706
    %v708 = vpop.f32.mrb[0].mxu0
    %709 = vmatprep.mubr.f32.mxu0 0.0
    %710 = vmatmul.mubr.f32.gmra.mrb[0].mxu0 %v224
    %v711 = vpop.f32.mrb[0].mxu0
    %v712 = vadd.f32 %v423, %v711
    %v713 = vpop.f32.mrb[0].mxu0
    %714 = vmatprep.mubr.f32.mxu0 0.0
    %715 = vmatmul.mubr.f32.gmra.mrb[0].mxu0 %v225
    %v716 = vpop.f32.mrb[0].mxu0
    %v717 = vadd.f32 %v423, %v716
    %v718 = vpop.f32.mrb[0].mxu0
    %719 = vmatprep.mubr.f32.mxu0 0.0
    %720 = vmatmul.mubr.f32.gmra.mrb[0].mxu0 %v226
    %v721 = vpop.f32.mrb[0].mxu0
    %v722 = vadd.f32 %v423, %v721
    %v723 = vpop.f32.mrb[0].mxu0
    %724 = vmatprep.mubr.f32.mxu0 0.0
    %725 = vmatmul.mubr.f32.gmra.mrb[0].mxu0 %v227
    %v726 = vpop.f32.mrb[0].mxu0
    %v727 = vadd.f32 %v423, %v726
    %v728 = vpop.f32.mrb[0].mxu0
    %729 = vmatprep.mubr.f32.mxu0 0.0
    %730 = vmatmul.mubr.f32.gmra.mrb[0].mxu0 %v228
    %v731 = vpop.f32.mrb[0].mxu0
    %v732 = vadd.f32 %v423, %v731
    %v733 = vpop.f32.mrb[0].mxu0
    %734 = vmatprep.mubr.f32.mxu0 0.0
    %735 = vmatmul.mubr.f32.gmra.mrb[0].mxu0 %v229
    %v736 = vpop.f32.mrb[0].mxu0
    %v737 = vadd.f32 %v423, %v736
    %v738 = vpop.f32.mrb[0].mxu0
    %739 = vmatprep.mubr.f32.mxu0 0.0
    %740 = vmatmul.mubr.f32.gmra.mrb[0].mxu0 %v230
    %v741 = vpop.f32.mrb[0].mxu0
    %v742 = vadd.f32 %v423, %v741
    %v743 = vpop.f32.mrb[0].mxu0
    %744 = vmatprep.mubr.f32.mxu0 0.0
    %745 = vmatmul.mubr.f32.gmra.mrb[0].mxu0 %v231
    %v746 = vpop.f32.mrb[0].mxu0
    %v747 = vadd.f32 %v423, %v746
    %v748 = vpop.f32.mrb[0].mxu0
    %749 = vmatprep.mubr.f32.mxu0 0.0
    %750 = vmatmul.mubr.f32.gmra.mrb[0].mxu0 %v232
    %v751 = vpop.f32.mrb[0].mxu0
    %v752 = vadd.f32 %v423, %v751
    %v753 = vpop.f32.mrb[0].mxu0
    %754 = vmatprep.mubr.f32.mxu0 0.0
    %755 = vmatmul.mubr.f32.gmra.mrb[0].mxu0 %v233
    %v756 = vpop.f32.mrb[0].mxu0
    %v757 = vadd.f32 %v423, %v756
    %v758 = vpop.f32.mrb[0].mxu0
    %759 = vmatprep.mubr.f32.mxu0 0.0
    %760 = vmatmul.mubr.f32.gmra.mrb[0].mxu0 %v234
    %v761 = vpop.f32.mrb[0].mxu0
    %v762 = vadd.f32 %v423, %v761
    %v763 = vpop.f32.mrb[0].mxu0
    %764 = vmatprep.mubr.f32.mxu0 0.0
    %765 = vmatmul.mubr.f32.gmra.mrb[0].mxu0 %v235
    %v766 = vpop.f32.mrb[0].mxu0
    %v767 = vadd.f32 %v423, %v766
    %v768 = vpop.f32.mrb[0].mxu0
    %769 = vmatprep.mubr.f32.mxu0 0.0
    %770 = vmatmul.mubr.f32.gmra.mrb[0].mxu0 %v236
    %v771 = vpop.f32.mrb[0].mxu0
    %v772 = vadd.f32 %v423, %v771
    %v773 = vpop.f32.mrb[0].mxu0
    %774 = vmatprep.mubr.f32.mxu0 0.0
    %775 = vmatmul.mubr.f32.gmra.mrb[0].mxu0 %v237
    %v776 = vpop.f32.mrb[0].mxu0
    %v777 = vadd.f32 %v423, %v776
    %v778 = vpop.f32.mrb[0].mxu0
    %779 = vmatprep.mubr.f32.mxu0 0.0
    %780 = vmatmul.mubr.f32.gmra.mrb[0].mxu0 %v238
    %v781 = vpop.f32.mrb[0].mxu0
    %v782 = vadd.f32 %v423, %v781
    %v783 = vpop.f32.mrb[0].mxu0
    %784 = vmatprep.mubr.f32.mxu0 0.0
    %785 = vmatmul.mubr.f32.gmra.mrb[0].mxu0 %v239
    %v786 = vpop.f32.mrb[0].mxu0
    %v787 = vadd.f32 %v423, %v786
    %v788 = vpop.f32.mrb[0].mxu0
    %789 = vmatprep.mubr.f32.mxu0 0.0
    %790 = vmatmul.mubr.f32.gmra.mrb[0].mxu0 %v240
    %v791 = vpop.f32.mrb[0].mxu0
    %v792 = vadd.f32 %v423, %v791
    %v793 = vpop.f32.mrb[0].mxu0
    %794 = vmatprep.mubr.f32.mxu0 0.0
    %795 = vmatmul.mubr.f32.gmra.mrb[0].mxu0 %v241
    %v796 = vpop.f32.mrb[0].mxu0
    %v797 = vadd.f32 %v423, %v796
    %v798 = vpop.f32.mrb[0].mxu0
    %799 = vmatprep.mubr.f32.mxu0 0.0
    %800 = vmatmul.mubr.f32.gmra.mrb[0].mxu0 %v242
    %v801 = vpop.f32.mrb[0].mxu0
    %v802 = vadd.f32 %v423, %v801
    %v803 = vpop.f32.mrb[0].mxu0
    %804 = vmatprep.mubr.f32.mxu0 0.0
    %805 = vmatmul.mubr.f32.gmra.mrb[0].mxu0 %v243
    %v806 = vpop.f32.mrb[0].mxu0
    %v807 = vadd.f32 %v423, %v806
    %v808 = vpop.f32.mrb[0].mxu0
    %809 = vmatprep.mubr.f32.mxu0 0.0
    %810 = vmatmul.mubr.f32.gmra.mrb[0].mxu0 %v244
    %v811 = vpop.f32.mrb[0].mxu0
    %v812 = vadd.f32 %v423, %v811
    %v813 = vpop.f32.mrb[0].mxu0
    %814 = vmatprep.mubr.f32.mxu0 0.0
    %815 = vmatmul.mubr.f32.gmra.mrb[0].mxu0 %v245
    %v816 = vpop.f32.mrb[0].mxu0
    %v817 = vadd.f32 %v423, %v816
    %v818 = vpop.f32.mrb[0].mxu0
    %819 = vmatprep.mubr.f32.mxu0 0.0
    %820 = vmatmul.mubr.f32.gmra.mrb[0].mxu0 %v246
    %v821 = vpop.f32.mrb[0].mxu0
    %v822 = vadd.f32 %v423, %v821
    %v823 = vpop.f32.mrb[0].mxu0
    %824 = vmatprep.mubr.f32.mxu0 0.0
    %825 = vmatmul.mubr.f32.gmra.mrb[0].mxu0 %v247
    %v826 = vpop.f32.mrb[0].mxu0
    %v827 = vadd.f32 %v423, %v826
    %v828 = vpop.f32.mrb[0].mxu0
    %829 = vmatprep.mubr.f32.mxu0 0.0
    %830 = vmatmul.mubr.f32.gmra.mrb[0].mxu0 %v248
    %v831 = vpop.f32.mrb[0].mxu0
    %v832 = vadd.f32 %v423, %v831
    %v833 = vpop.f32.mrb[0].mxu0
    %834 = vmatprep.mubr.f32.mxu0 0.0
    %835 = vmatmul.mubr.f32.gmra.mrb[0].mxu0 %v249
    %v836 = vpop.f32.mrb[0].mxu0
    %v837 = vadd.f32 %v423, %v836
    %v838 = vpop.f32.mrb[0].mxu0
    %839 = vmatprep.mubr.f32.mxu0 0.0
    %840 = vmatmul.mubr.f32.gmra.mrb[0].mxu0 %v250
    %v841 = vpop.f32.mrb[0].mxu0
    %v842 = vadd.f32 %v423, %v841
    %v843 = vpop.f32.mrb[0].mxu0
    %844 = vmatprep.mubr.f32.mxu0 0.0
    %845 = vmatmul.mubr.f32.gmra.mrb[0].mxu0 %v251
    %v846 = vpop.f32.mrb[0].mxu0
    %v847 = vadd.f32 %v423, %v846
    %v848 = vpop.f32.mrb[0].mxu0
    %849 = vmatprep.mubr.f32.mxu0 0.0
    %850 = vmatmul.mubr.f32.gmra.mrb[0].mxu0 %v252
    %v851 = vpop.f32.mrb[0].mxu0
    %v852 = vadd.f32 %v423, %v851
    %v853 = vpop.f32.mrb[0].mxu0
    %854 = vmatprep.mubr.f32.mxu0 0.0
    %855 = vmatmul.mubr.f32.gmra.mrb[0].mxu0 %v253
    %v856 = vpop.f32.mrb[0].mxu0
    %v857 = vadd.f32 %v423, %v856
    %v858 = vpop.f32.mrb[0].mxu0
    %859 = vmatprep.mubr.f32.mxu0 0.0
    %860 = vmatmul.mubr.f32.gmra.mrb[0].mxu0 %v254
    %v861 = vpop.f32.mrb[0].mxu0
    %v862 = vadd.f32 %v423, %v861
    %v863 = vpop.f32.mrb[0].mxu0
    %864 = vmatprep.mubr.f32.mxu0 0.0
    %865 = vmatmul.mubr.f32.gmra.mrb[0].mxu0 %v255
    %v866 = vpop.f32.mrb[0].mxu0
    %v867 = vadd.f32 %v423, %v866
    %v868 = vpop.f32.mrb[0].mxu0
    %869 = vmatprep.mubr.f32.mxu0 0.0
    %870 = vmatmul.mubr.f32.gmra.mrb[0].mxu0 %v256
    %v871 = vpop.f32.mrb[0].mxu0
    %v872 = vadd.f32 %v423, %v871
    %v873 = vpop.f32.mrb[0].mxu0
    %874 = vmatprep.mubr.f32.mxu0 0.0
    %875 = vmatmul.mubr.f32.gmra.mrb[0].mxu0 %v257
    %v876 = vpop.f32.mrb[0].mxu0
    %v877 = vadd.f32 %v423, %v876
    %v878 = vpop.f32.mrb[0].mxu0
    %879 = vmatprep.mubr.f32.mxu0 0.0
    %880 = vmatmul.mubr.f32.gmra.mrb[0].mxu0 %v258
    %v881 = vpop.f32.mrb[0].mxu0
    %v882 = vadd.f32 %v423, %v881
    %v883 = vpop.f32.mrb[0].mxu0
    %884 = vmatprep.mubr.f32.mxu0 0.0
    %885 = vmatmul.mubr.f32.gmra.mrb[0].mxu0 %v259
    %v886 = vpop.f32.mrb[0].mxu0
    %v887 = vadd.f32 %v423, %v886
    %v888 = vpop.f32.mrb[0].mxu0
    %889 = vmatprep.mubr.f32.mxu0 0.0
    %890 = vmatmul.mubr.f32.gmra.mrb[0].mxu0 %v260
    %v891 = vpop.f32.mrb[0].mxu0
    %v892 = vadd.f32 %v423, %v891
    %v893 = vpop.f32.mrb[0].mxu0
    %894 = vmatprep.mubr.f32.mxu0 0.0
    %895 = vmatmul.mubr.f32.gmra.mrb[0].mxu0 %v261
    %v896 = vpop.f32.mrb[0].mxu0
    %v897 = vadd.f32 %v423, %v896
    %v898 = vpop.f32.mrb[0].mxu0
    %899 = vmatprep.mubr.f32.mxu0 0.0
    %900 = vmatmul.mubr.f32.gmra.mrb[0].mxu0 %v262
    %v901 = vpop.f32.mrb[0].mxu0
    %v902 = vadd.f32 %v423, %v901
    %v903 = vpop.f32.mrb[0].mxu0
    %904 = vmatprep.mubr.f32.mxu0 0.0
    %905 = vmatmul.mubr.f32.gmra.mrb[0].mxu0 %v263
    %v906 = vpop.f32.mrb[0].mxu0
    %v907 = vadd.f32 %v423, %v906
    %v908 = vpop.f32.mrb[0].mxu0
    %909 = vmatprep.mubr.f32.mxu0 0.0
    %910 = vmatmul.mubr.f32.gmra.mrb[0].mxu0 %v264
    %v911 = vpop.f32.mrb[0].mxu0
    %v912 = vadd.f32 %v423, %v911
    %v913 = vpop.f32.mrb[0].mxu0
    %914 = vmatprep.mubr.f32.mxu0 0.0
    %915 = vmatmul.mubr.f32.gmra.mrb[0].mxu0 %v265
    %v916 = vpop.f32.mrb[0].mxu0
    %v917 = vadd.f32 %v423, %v916
    %v918 = vpop.f32.mrb[0].mxu0
    %919 = vmatprep.mubr.f32.mxu0 0.0
    %920 = vmatmul.mubr.f32.gmra.mrb[0].mxu0 %v266
    %v921 = vpop.f32.mrb[0].mxu0
    %v922 = vadd.f32 %v423, %v921
    %v923 = vpop.f32.mrb[0].mxu0
    %924 = vmatprep.mubr.f32.mxu0 0.0
    %925 = vmatmul.mubr.f32.gmra.mrb[0].mxu0 %v267
    %v926 = vpop.f32.mrb[0].mxu0
    %v927 = vadd.f32 %v423, %v926
    %v928 = vpop.f32.mrb[0].mxu0
    %929 = vmatprep.mubr.f32.mxu0 0.0
    %930 = vmatmul.mubr.f32.gmra.mrb[0].mxu0 %v268
    %v931 = vpop.f32.mrb[0].mxu0
    %v932 = vadd.f32 %v423, %v931
    %v933 = vpop.f32.mrb[0].mxu0
    %934 = vmatprep.mubr.f32.mxu0 0.0
    %935 = vmatmul.mubr.f32.gmra.mrb[0].mxu0 %v269
    %v936 = vpop.f32.mrb[0].mxu0
    %v937 = vadd.f32 %v423, %v936
    %v938 = vpop.f32.mrb[0].mxu0
    %939 = vmatprep.mubr.f32.mxu0 0.0
    %940 = vmatmul.mubr.f32.gmra.mrb[0].mxu0 %v270
    %v941 = vpop.f32.mrb[0].mxu0
    %v942 = vadd.f32 %v423, %v941
    %v943 = vpop.f32.mrb[0].mxu0
    %944 = vmatprep.mubr.f32.mxu0 0.0
    %945 = vmatmul.mubr.f32.gmra.mrb[0].mxu0 %v271
    %v946 = vpop.f32.mrb[0].mxu0
    %v947 = vadd.f32 %v423, %v946
    %v948 = vpop.f32.mrb[0].mxu0
    %949 = vmatprep.mubr.f32.mxu0 0.0
    %950 = vmatmul.mubr.f32.gmra.mrb[0].mxu0 %v272
    %v951 = vpop.f32.mrb[0].mxu0
    %v952 = vadd.f32 %v423, %v951
    %v953 = vpop.f32.mrb[0].mxu0
    %954 = vmatprep.mubr.f32.mxu0 0.0
    %955 = vmatmul.mubr.f32.gmra.mrb[0].mxu0 %v273
    %v956 = vpop.f32.mrb[0].mxu0
    %v957 = vadd.f32 %v423, %v956
    %v958 = vpop.f32.mrb[0].mxu0
    %959 = vmatprep.mubr.f32.mxu0 0.0
    %960 = vmatmul.mubr.f32.gmra.mrb[0].mxu0 %v274
    %v961 = vpop.f32.mrb[0].mxu0
    %v962 = vadd.f32 %v423, %v961
    %v963 = vpop.f32.mrb[0].mxu0
    %964 = vmatprep.mubr.f32.mxu0 0.0
    %965 = vmatmul.mubr.f32.gmra.mrb[0].mxu0 %v275
    %v966 = vpop.f32.mrb[0].mxu0
    %v967 = vadd.f32 %v423, %v966
    %v968 = vpop.f32.mrb[0].mxu0
    %969 = vmatprep.mubr.f32.mxu0 0.0
    %970 = vmatmul.mubr.f32.gmra.mrb[0].mxu0 %v276
    %v971 = vpop.f32.mrb[0].mxu0
    %v972 = vadd.f32 %v423, %v971
    %v973 = vpop.f32.mrb[0].mxu0
    %974 = vmatprep.mubr.f32.mxu0 0.0
    %975 = vmatmul.mubr.f32.gmra.mrb[0].mxu0 %v277
    %v976 = vpop.f32.mrb[0].mxu0
    %v977 = vadd.f32 %v423, %v976
    %v978 = vpop.f32.mrb[0].mxu0
    %979 = vmatprep.mubr.f32.mxu0 0.0
    %980 = vmatmul.mubr.f32.gmra.mrb[0].mxu0 %v278
    %v981 = vpop.f32.mrb[0].mxu0
    %v982 = vadd.f32 %v423, %v981
    %v983 = vpop.f32.mrb[0].mxu0
    %984 = vmatprep.mubr.f32.mxu0 0.0
    %985 = vmatmul.mubr.f32.gmra.mrb[0].mxu0 %v279
    %v986 = vpop.f32.mrb[0].mxu0
    %v987 = vadd.f32 %v423, %v986
    %v988 = vpop.f32.mrb[0].mxu0
    %989 = vmatprep.mubr.f32.mxu0 0.0
    %990 = vmatmul.mubr.f32.gmra.mrb[0].mxu0 %v280
    %v991 = vpop.f32.mrb[0].mxu0
    %v992 = vadd.f32 %v423, %v991
    %v993 = vpop.f32.mrb[0].mxu0
    %994 = vmatprep.mubr.f32.mxu0 0.0
    %995 = vmatmul.mubr.f32.gmra.mrb[0].mxu0 %v281
    %v996 = vpop.f32.mrb[0].mxu0
    %v997 = vadd.f32 %v423, %v996
    %v998 = vpop.f32.mrb[0].mxu0
    %999 = vmatprep.mubr.f32.mxu0 0.0
    %1000 = vmatmul.mubr.f32.gmra.mrb[0].mxu0 %v282
    %v1001 = vpop.f32.mrb[0].mxu0
    %v1002 = vadd.f32 %v423, %v1001
    %v1003 = vpop.f32.mrb[0].mxu0
    %1004 = vmatprep.mubr.f32.mxu0 0.0
    %1005 = vmatmul.mubr.f32.gmra.mrb[0].mxu0 %v283
    %v1006 = vpop.f32.mrb[0].mxu0
    %v1007 = vadd.f32 %v423, %v1006
    %v1008 = vpop.f32.mrb[0].mxu0
    %1009 = vmatprep.mubr.f32.mxu0 0.0
    %1010 = vmatmul.mubr.f32.gmra.mrb[0].mxu0 %v284
    %v1011 = vpop.f32.mrb[0].mxu0
    %v1012 = vadd.f32 %v423, %v1011
    %v1013 = vpop.f32.mrb[0].mxu0
    %1014 = vmatprep.mubr.f32.mxu0 0.0
    %1015 = vmatmul.mubr.f32.gmra.mrb[0].mxu0 %v285
    %v1016 = vpop.f32.mrb[0].mxu0
    %v1017 = vadd.f32 %v423, %v1016
    %v1018 = vpop.f32.mrb[0].mxu0
    %1019 = vmatprep.mubr.f32.mxu0 0.0
    %1020 = vmatmul.mubr.f32.gmra.mrb[0].mxu0 %v286
    %v1021 = vpop.f32.mrb[0].mxu0
    %v1022 = vadd.f32 %v423, %v1021
    %v1023 = vpop.f32.mrb[0].mxu0
    %1024 = vmatprep.mubr.f32.mxu0 0.0
    %1025 = vmatmul.mubr.f32.gmra.mrb[0].mxu0 %v287
    %v1026 = vpop.f32.mrb[0].mxu0
    %v1027 = vadd.f32 %v423, %v1026
    %v1028 = vpop.f32.mrb[0].mxu0
    %1029 = vmatprep.mubr.f32.mxu0 0.0
    %1030 = vmatmul.mubr.f32.gmra.mrb[0].mxu0 %v288
    %v1031 = vpop.f32.mrb[0].mxu0
    %v1032 = vadd.f32 %v423, %v1031
    %v1033 = vpop.f32.mrb[0].mxu0
    %1034 = vmatprep.mubr.f32.mxu0 0.0
    %1035 = vmatmul.mubr.f32.gmra.mrb[0].mxu0 %v289
    %v1036 = vpop.f32.mrb[0].mxu0
    %v1037 = vadd.f32 %v423, %v1036
    %v1038 = vpop.f32.mrb[0].mxu0
    %1039 = vmatprep.mubr.f32.mxu0 0.0
    %1040 = vmatmul.mubr.f32.gmra.mrb[0].mxu0 %v290
    %v1041 = vpop.f32.mrb[0].mxu0
    %v1042 = vadd.f32 %v423, %v1041
    %v1043 = vpop.f32.mrb[0].mxu0
    %1044 = vmatprep.mubr.f32.mxu0 0.0
    %1045 = vmatmul.mubr.f32.gmra.mrb[0].mxu0 %v291
    %v1046 = vpop.f32.mrb[0].mxu0
    %v1047 = vadd.f32 %v423, %v1046
    %v1048 = vpop.f32.mrb[0].mxu0
    %1049 = vmatprep.mubr.f32.mxu0 0.0
    %1050 = vmatmul.mubr.f32.gmra.mrb[0].mxu0 %v292
    %v1051 = vpop.f32.mrb[0].mxu0
    %v1052 = vadd.f32 %v423, %v1051
    %v1053 = vpop.f32.mrb[0].mxu0
    %1054 = vmatprep.mubr.f32.mxu0 0.0
    %1055 = vmatmul.mubr.f32.gmra.mrb[0].mxu0 %v293
    %v1056 = vpop.f32.mrb[0].mxu0
    %v1057 = vadd.f32 %v423, %v1056
    %v1058 = vpop.f32.mrb[0].mxu0
    %1059 = vmatprep.mubr.f32.mxu0 0.0
    %1060 = vmatmul.mubr.f32.gmra.mrb[0].mxu0 %v294
    %v1061 = vpop.f32.mrb[0].mxu0
    %v1062 = vadd.f32 %v423, %v1061
    %v1063 = vpop.f32.mrb[0].mxu0
    %1064 = vmatprep.mubr.f32.mxu0 0.0
    %1065 = vmatmul.mubr.f32.gmra.mrb[0].mxu0 %v295
    %v1066 = vpop.f32.mrb[0].mxu0
    %v1067 = vadd.f32 %v423, %v1066
    %v1068 = vpop.f32.mrb[0].mxu0
    %1069 = vmatprep.mubr.f32.mxu0 0.0
    %1070 = vmatmul.mubr.f32.gmra.mrb[0].mxu0 %v296
    %v1071 = vpop.f32.mrb[0].mxu0
    %v1072 = vadd.f32 %v423, %v1071
    %v1073 = vpop.f32.mrb[0].mxu0
    %1074 = vmatprep.mubr.f32.mxu0 0.0
    %1075 = vmatmul.mubr.f32.gmra.mrb[0].mxu0 %v297
    %v1076 = vpop.f32.mrb[0].mxu0
    %v1077 = vadd.f32 %v423, %v1076
    %v1078 = vpop.f32.mrb[0].mxu0
    %1079 = vmatprep.mubr.f32.mxu0 0.0
    %1080 = vmatmul.mubr.f32.gmra.mrb[0].mxu0 %v298
    %v1081 = vpop.f32.mrb[0].mxu0
    %v1082 = vadd.f32 %v423, %v1081
    %v1083 = vpop.f32.mrb[0].mxu0
    %1084 = vmatprep.mubr.f32.mxu0 0.0
    %1085 = vmatmul.mubr.f32.gmra.mrb[0].mxu0 %v299
    %v1086 = vpop.f32.mrb[0].mxu0
    %v1087 = vadd.f32 %v423, %v1086
    %v1088 = vpop.f32.mrb[0].mxu0
    %1089 = vmatprep.mubr.f32.mxu0 0.0
    %1090 = vmatmul.mubr.f32.gmra.mrb[0].mxu0 %v300
    %v1091 = vpop.f32.mrb[0].mxu0
    %v1092 = vadd.f32 %v423, %v1091
    %v1093 = vpop.f32.mrb[0].mxu0
    %1094 = vmatprep.mubr.f32.mxu0 0.0
    %1095 = vmatmul.mubr.f32.gmra.mrb[0].mxu0 %v301
    %v1096 = vpop.f32.mrb[0].mxu0
    %v1097 = vadd.f32 %v423, %v1096
    %v1098 = vpop.f32.mrb[0].mxu0
    %1099 = vmatprep.mubr.f32.mxu0 0.0
    %1100 = vmatmul.mubr.f32.gmra.mrb[0].mxu0 %v302
    %v1101 = vpop.f32.mrb[0].mxu0
    %v1102 = vadd.f32 %v423, %v1101
    %v1103 = vpop.f32.mrb[0].mxu0
    %1104 = vmatprep.mubr.f32.mxu0 0.0
    %1105 = vmatmul.mubr.f32.gmra.mrb[0].mxu0 %v303
    %v1106 = vpop.f32.mrb[0].mxu0
    %v1107 = vadd.f32 %v423, %v1106
    %v1108 = vpop.f32.mrb[0].mxu0
    %1109 = vmatprep.mubr.f32.mxu0 0.0
    %1110 = vmatmul.mubr.f32.gmra.mrb[0].mxu0 %v304
    %v1111 = vpop.f32.mrb[0].mxu0
    %v1112 = vadd.f32 %v423, %v1111
    %v1113 = vpop.f32.mrb[0].mxu0
    %1114 = vmatprep.mubr.f32.mxu0 0.0
    %1115 = vmatmul.mubr.f32.gmra.mrb[0].mxu0 %v305
    %v1116 = vpop.f32.mrb[0].mxu0
    %v1117 = vadd.f32 %v423, %v1116
    %v1118 = vpop.f32.mrb[0].mxu0
    %1119 = vmatprep.mubr.f32.mxu0 0.0
    %1120 = vmatmul.mubr.f32.gmra.mrb[0].mxu0 %v306
    %v1121 = vpop.f32.mrb[0].mxu0
    %v1122 = vadd.f32 %v423, %v1121
    %v1123 = vpop.f32.mrb[0].mxu0
    %1124 = vmatprep.mubr.f32.mxu0 0.0
    %1125 = vmatmul.mubr.f32.gmra.mrb[0].mxu0 %v307
    %v1126 = vpop.f32.mrb[0].mxu0
    %v1127 = vadd.f32 %v423, %v1126
    %v1128 = vpop.f32.mrb[0].mxu0
    %1129 = vdwg.mxu0
    %v1130 = vtanh.pop %v492
    %v1131 = vtanh.pop %v497
    %v1132 = vtanh.pop %v502
    %v1133 = vtanh.pop %v507
    %v1134 = vtanh.pop %v512
    %v1135 = vtanh.pop %v517
    %v1136 = vtanh.pop %v522
    %v1137 = vtanh.pop %v527
    %v1138 = vtanh.pop %v532
    %v1139 = vtanh.pop %v537
    %v1140 = vtanh.pop %v542
    %v1141 = vtanh.pop %v547
    %v1142 = vtanh.pop %v552
    %v1143 = vtanh.pop %v557
    %v1144 = vtanh.pop %v562
    %v1145 = vtanh.pop %v567
    %v1146 = vtanh.pop %v572
    %v1147 = vtanh.pop %v577
    %v1148 = vtanh.pop %v582
    %v1149 = vtanh.pop %v587
    %v1150 = vtanh.pop %v592
    %v1151 = vtanh.pop %v597
    %v1152 = vtanh.pop %v602
    %v1153 = vtanh.pop %v607
    %v1154 = vtanh.pop %v612
    %v1155 = vtanh.pop %v617
    %v1156 = vtanh.pop %v622
    %v1157 = vtanh.pop %v627
    %v1158 = vtanh.pop %v632
    %v1159 = vtanh.pop %v637
    %v1160 = vtanh.pop %v642
    %v1161 = vtanh.pop %v647
    %v1162 = vtanh.pop %v652
    %v1163 = vtanh.pop %v657
    %v1164 = vtanh.pop %v662
    %v1165 = vtanh.pop %v667
    %v1166 = vtanh.pop %v672
    %v1167 = vtanh.pop %v677
    %v1168 = vtanh.pop %v682
    %v1169 = vtanh.pop %v687
    %v1170 = vtanh.pop %v692
    %v1171 = vtanh.pop %v697
    %v1172 = vtanh.pop %v702
    %v1173 = vtanh.pop %v707
    %v1174 = vtanh.pop %v712
    %v1175 = vtanh.pop %v717
    %v1176 = vtanh.pop %v722
    %v1177 = vtanh.pop %v727
    %v1178 = vtanh.pop %v732
    %v1179 = vtanh.pop %v737
    %v1180 = vtanh.pop %v742
    %v1181 = vtanh.pop %v747
    %v1182 = vtanh.pop %v752
    %v1183 = vtanh.pop %v757
    %v1184 = vtanh.pop %v762
    %v1185 = vtanh.pop %v767
    %v1186 = vtanh.pop %v772
    %v1187 = vtanh.pop %v777
    %v1188 = vtanh.pop %v782
    %v1189 = vtanh.pop %v787
    %v1190 = vtanh.pop %v792
    %v1191 = vtanh.pop %v797
    %v1192 = vtanh.pop %v802
    %v1193 = vtanh.pop %v807
    %v1194 = vtanh.pop %v812
    %v1195 = vtanh.pop %v817
    %v1196 = vtanh.pop %v822
    %v1197 = vtanh.pop %v827
    %v1198 = vtanh.pop %v832
    %v1199 = vtanh.pop %v837
    %v1200 = vtanh.pop %v842
    %v1201 = vtanh.pop %v847
    %v1202 = vtanh.pop %v852
    %v1203 = vtanh.pop %v857
    %v1204 = vtanh.pop %v862
    %v1205 = vtanh.pop %v867
    %v1206 = vtanh.pop %v872
    %v1207 = vtanh.pop %v877
    %v1208 = vtanh.pop %v882
    %v1209 = vtanh.pop %v887
    %v1210 = vtanh.pop %v892
    %v1211 = vtanh.pop %v897
    %v1212 = vtanh.pop %v902
    %v1213 = vtanh.pop %v907
    %v1214 = vtanh.pop %v912
    %v1215 = vtanh.pop %v917
    %v1216 = vtanh.pop %v922
    %v1217 = vtanh.pop %v927
    %v1218 = vtanh.pop %v932
    %v1219 = vtanh.pop %v937
    %v1220 = vtanh.pop %v942
    %v1221 = vtanh.pop %v947
    %v1222 = vtanh.pop %v952
    %v1223 = vtanh.pop %v957
    %v1224 = vtanh.pop %v962
    %v1225 = vtanh.pop %v967
    %v1226 = vtanh.pop %v972
    %v1227 = vtanh.pop %v977
    %v1228 = vtanh.pop %v982
    %v1229 = vtanh.pop %v987
    %v1230 = vtanh.pop %v992
    %v1231 = vtanh.pop %v997
    %v1232 = vtanh.pop %v1002
    %v1233 = vtanh.pop %v1007
    %v1234 = vtanh.pop %v1012
    %v1235 = vtanh.pop %v1017
    %v1236 = vtanh.pop %v1022
    %v1237 = vtanh.pop %v1027
    %v1238 = vtanh.pop %v1032
    %v1239 = vtanh.pop %v1037
    %v1240 = vtanh.pop %v1042
    %v1241 = vtanh.pop %v1047
    %v1242 = vtanh.pop %v1052
    %v1243 = vtanh.pop %v1057
    %v1244 = vtanh.pop %v1062
    %v1245 = vtanh.pop %v1067
    %v1246 = vtanh.pop %v1072
    %v1247 = vtanh.pop %v1077
    %v1248 = vtanh.pop %v1082
    %v1249 = vtanh.pop %v1087
    %v1250 = vtanh.pop %v1092
    %v1251 = vtanh.pop %v1097
    %v1252 = vtanh.pop %v1102
    %v1253 = vtanh.pop %v1107
    %v1254 = vtanh.pop %v1112
    %v1255 = vtanh.pop %v1117
    %v1256 = vtanh.pop %v1122
    %v1257 = vtanh.pop %v1127
    %v1258 = vld [vmem:[#allocation14] sm:$0xff]
    %v1259 = vld [vmem:[#allocation14 + $0x8] sm:$0xff]
    %v1260 = vld [vmem:[#allocation14 + $0x10] sm:$0xff]
    %v1261 = vld [vmem:[#allocation14 + $0x18] sm:$0xff]
    %v1262 = vld [vmem:[#allocation14 + $0x20] sm:$0xff]
    %v1263 = vld [vmem:[#allocation14 + $0x28] sm:$0xff]
    %v1264 = vld [vmem:[#allocation14 + $0x30] sm:$0xff]
    %v1265 = vld [vmem:[#allocation14 + $0x38] sm:$0xff]
    %v1266 = vld [vmem:[#allocation14 + $0x40] sm:$0xff]
    %v1267 = vld [vmem:[#allocation14 + $0x48] sm:$0xff]
    %v1268 = vld [vmem:[#allocation14 + $0x50] sm:$0xff]
    %v1269 = vld [vmem:[#allocation14 + $0x58] sm:$0xff]
    %v1270 = vld [vmem:[#allocation14 + $0x60] sm:$0xff]
    %v1271 = vld [vmem:[#allocation14 + $0x68] sm:$0xff]
    %v1272 = vld [vmem:[#allocation14 + $0x70] sm:$0xff]
    %v1273 = vld [vmem:[#allocation14 + $0x78] sm:$0xff]
    %v1274 = vld [vmem:[#allocation16] sm:$0x1]
    %v1276 = vlaneseq
    %v1277 = vshrl.u32 %v1276, 7
    %v1278 = vsub.s32 0, %v1277
    %v1279 = vrot.slane %v1274, %v1278
    %1281 = vmatprep.subr.mxu0 0.0
    %1282 = vmatpush1.msra.mxu0 %v1258
    %1283 = vmatprep.subr.mxu0 0.0
    %1284 = vmatpush1.msra.mxu0 %v1259
    %1285 = vmatprep.subr.mxu0 0.0
    %1286 = vmatpush1.msra.mxu0 %v1260
    %1287 = vmatprep.subr.mxu0 0.0
    %1288 = vmatpush1.msra.mxu0 %v1261
    %1289 = vmatprep.subr.mxu0 0.0
    %1290 = vmatpush1.msra.mxu0 %v1262
    %1291 = vmatprep.subr.mxu0 0.0
    %1292 = vmatpush1.msra.mxu0 %v1263
    %1293 = vmatprep.subr.mxu0 0.0
    %1294 = vmatpush1.msra.mxu0 %v1264
    %1295 = vmatprep.subr.mxu0 0.0
    %1296 = vmatpush1.msra.mxu0 %v1265
    %1297 = vmatprep.subr.mxu0 0.0
    %1298 = vmatpush1.msra.mxu0 %v1266
    %1299 = vmatprep.subr.mxu0 0.0
    %1300 = vmatpush1.msra.mxu0 %v1267
    %1301 = vmatprep.subr.mxu0 0.0
    %1302 = vmatpush1.msra.mxu0 %v1268
    %1303 = vmatprep.subr.mxu0 0.0
    %1304 = vmatpush1.msra.mxu0 %v1269
    %1305 = vmatprep.subr.mxu0 0.0
    %1306 = vmatpush1.msra.mxu0 %v1270
    %1307 = vmatprep.subr.mxu0 0.0
    %1308 = vmatpush1.msra.mxu0 %v1271
    %1309 = vmatprep.subr.mxu0 0.0
    %1310 = vmatpush1.msra.mxu0 %v1272
    %1311 = vmatprep.subr.mxu0 0.0
    %1312 = vmatpush1.msra.mxu0 %v1273
    %1313 = vmatprep.subr.mxu0 0.0
    %1314 = vmatpush1.msra.mxu0 0.0
    %1315 = vmatprep.subr.mxu0 0.0
    %1316 = vmatpush1.msra.mxu0 0.0
    %1317 = vmatprep.subr.mxu0 0.0
    %1318 = vmatpush1.msra.mxu0 0.0
    %1319 = vmatprep.subr.mxu0 0.0
    %1320 = vmatpush1.msra.mxu0 0.0
    %1321 = vmatprep.subr.mxu0 0.0
    %1322 = vmatpush1.msra.mxu0 0.0
    %1323 = vmatprep.subr.mxu0 0.0
    %1324 = vmatpush1.msra.mxu0 0.0
    %1325 = vmatprep.subr.mxu0 0.0
    %1326 = vmatpush1.msra.mxu0 0.0
    %1327 = vmatprep.subr.mxu0 0.0
    %1328 = vmatpush1.msra.mxu0 0.0
    %1329 = vmatprep.subr.mxu0 0.0
    %1330 = vmatpush1.msra.mxu0 0.0
    %1331 = vmatprep.subr.mxu0 0.0
    %1332 = vmatpush1.msra.mxu0 0.0
    %1333 = vmatprep.subr.mxu0 0.0
    %1334 = vmatpush1.msra.mxu0 0.0
    %1335 = vmatprep.subr.mxu0 0.0
    %1336 = vmatpush1.msra.mxu0 0.0
    %1337 = vmatprep.subr.mxu0 0.0
    %1338 = vmatpush1.msra.mxu0 0.0
    %1339 = vmatprep.subr.mxu0 0.0
    %1340 = vmatpush1.msra.mxu0 0.0
    %1341 = vmatprep.subr.mxu0 0.0
    %1342 = vmatpush1.msra.mxu0 0.0
    %1343 = vmatprep.subr.mxu0 0.0
    %1344 = vmatpush1.msra.mxu0 0.0
    %1345 = vmatprep.mubr.f32.mxu0 0.0
    %1346 = vmatmul.mubr.f32.gmra.mrb[0].mxu0 %v180
    %v1347 = vpop.f32.mrb[0].mxu0
    %v1348 = vadd.f32 %v1279, %v1347
    %v1349 = vpop.f32.mrb[0].mxu0
    %1350 = vmatprep.mubr.f32.mxu0 0.0
    %1351 = vmatmul.mubr.f32.gmra.mrb[0].mxu0 %v181
    %v1352 = vpop.f32.mrb[0].mxu0
    %v1353 = vadd.f32 %v1279, %v1352
    %v1354 = vpop.f32.mrb[0].mxu0
    %1355 = vmatprep.mubr.f32.mxu0 0.0
    %1356 = vmatmul.mubr.f32.gmra.mrb[0].mxu0 %v182
    %v1357 = vpop.f32.mrb[0].mxu0
    %v1358 = vadd.f32 %v1279, %v1357
    %v1359 = vpop.f32.mrb[0].mxu0
    %1360 = vmatprep.mubr.f32.mxu0 0.0
    %1361 = vmatmul.mubr.f32.gmra.mrb[0].mxu0 %v183
    %v1362 = vpop.f32.mrb[0].mxu0
    %v1363 = vadd.f32 %v1279, %v1362
    %v1364 = vpop.f32.mrb[0].mxu0
    %1365 = vmatprep.mubr.f32.mxu0 0.0
    %1366 = vmatmul.mubr.f32.gmra.mrb[0].mxu0 %v184
    %v1367 = vpop.f32.mrb[0].mxu0
    %v1368 = vadd.f32 %v1279, %v1367
    %v1369 = vpop.f32.mrb[0].mxu0
    %1370 = vmatprep.mubr.f32.mxu0 0.0
    %1371 = vmatmul.mubr.f32.gmra.mrb[0].mxu0 %v185
    %v1372 = vpop.f32.mrb[0].mxu0
    %v1373 = vadd.f32 %v1279, %v1372
    %v1374 = vpop.f32.mrb[0].mxu0
    %1375 = vmatprep.mubr.f32.mxu0 0.0
    %1376 = vmatmul.mubr.f32.gmra.mrb[0].mxu0 %v186
    %v1377 = vpop.f32.mrb[0].mxu0
    %v1378 = vadd.f32 %v1279, %v1377
    %v1379 = vpop.f32.mrb[0].mxu0
    %1380 = vmatprep.mubr.f32.mxu0 0.0
    %1381 = vmatmul.mubr.f32.gmra.mrb[0].mxu0 %v187
    %v1382 = vpop.f32.mrb[0].mxu0
    %v1383 = vadd.f32 %v1279, %v1382
    %v1384 = vpop.f32.mrb[0].mxu0
    %1385 = vmatprep.mubr.f32.mxu0 0.0
    %1386 = vmatmul.mubr.f32.gmra.mrb[0].mxu0 %v188
    %v1387 = vpop.f32.mrb[0].mxu0
    %v1388 = vadd.f32 %v1279, %v1387
    %v1389 = vpop.f32.mrb[0].mxu0
    %1390 = vmatprep.mubr.f32.mxu0 0.0
    %1391 = vmatmul.mubr.f32.gmra.mrb[0].mxu0 %v189
    %v1392 = vpop.f32.mrb[0].mxu0
    %v1393 = vadd.f32 %v1279, %v1392
    %v1394 = vpop.f32.mrb[0].mxu0
    %1395 = vmatprep.mubr.f32.mxu0 0.0
    %1396 = vmatmul.mubr.f32.gmra.mrb[0].mxu0 %v190
    %v1397 = vpop.f32.mrb[0].mxu0
    %v1398 = vadd.f32 %v1279, %v1397
    %v1399 = vpop.f32.mrb[0].mxu0
    %1400 = vmatprep.mubr.f32.mxu0 0.0
    %1401 = vmatmul.mubr.f32.gmra.mrb[0].mxu0 %v191
    %v1402 = vpop.f32.mrb[0].mxu0
    %v1403 = vadd.f32 %v1279, %v1402
    %v1404 = vpop.f32.mrb[0].mxu0
    %1405 = vmatprep.mubr.f32.mxu0 0.0
    %1406 = vmatmul.mubr.f32.gmra.mrb[0].mxu0 %v192
    %v1407 = vpop.f32.mrb[0].mxu0
    %v1408 = vadd.f32 %v1279, %v1407
    %v1409 = vpop.f32.mrb[0].mxu0
    %1410 = vmatprep.mubr.f32.mxu0 0.0
    %1411 = vmatmul.mubr.f32.gmra.mrb[0].mxu0 %v193
    %v1412 = vpop.f32.mrb[0].mxu0
    %v1413 = vadd.f32 %v1279, %v1412
    %v1414 = vpop.f32.mrb[0].mxu0
    %1415 = vmatprep.mubr.f32.mxu0 0.0
    %1416 = vmatmul.mubr.f32.gmra.mrb[0].mxu0 %v194
    %v1417 = vpop.f32.mrb[0].mxu0
    %v1418 = vadd.f32 %v1279, %v1417
    %v1419 = vpop.f32.mrb[0].mxu0
    %1420 = vmatprep.mubr.f32.mxu0 0.0
    %1421 = vmatmul.mubr.f32.gmra.mrb[0].mxu0 %v195
    %v1422 = vpop.f32.mrb[0].mxu0
    %v1423 = vadd.f32 %v1279, %v1422
    %v1424 = vpop.f32.mrb[0].mxu0
    %1425 = vmatprep.mubr.f32.mxu0 0.0
    %1426 = vmatmul.mubr.f32.gmra.mrb[0].mxu0 %v196
    %v1427 = vpop.f32.mrb[0].mxu0
    %v1428 = vadd.f32 %v1279, %v1427
    %v1429 = vpop.f32.mrb[0].mxu0
    %1430 = vmatprep.mubr.f32.mxu0 0.0
    %1431 = vmatmul.mubr.f32.gmra.mrb[0].mxu0 %v197
    %v1432 = vpop.f32.mrb[0].mxu0
    %v1433 = vadd.f32 %v1279, %v1432
    %v1434 = vpop.f32.mrb[0].mxu0
    %1435 = vmatprep.mubr.f32.mxu0 0.0
    %1436 = vmatmul.mubr.f32.gmra.mrb[0].mxu0 %v198
    %v1437 = vpop.f32.mrb[0].mxu0
    %v1438 = vadd.f32 %v1279, %v1437
    %v1439 = vpop.f32.mrb[0].mxu0
    %1440 = vmatprep.mubr.f32.mxu0 0.0
    %1441 = vmatmul.mubr.f32.gmra.mrb[0].mxu0 %v199
    %v1442 = vpop.f32.mrb[0].mxu0
    %v1443 = vadd.f32 %v1279, %v1442
    %v1444 = vpop.f32.mrb[0].mxu0
    %1445 = vmatprep.mubr.f32.mxu0 0.0
    %1446 = vmatmul.mubr.f32.gmra.mrb[0].mxu0 %v200
    %v1447 = vpop.f32.mrb[0].mxu0
    %v1448 = vadd.f32 %v1279, %v1447
    %v1449 = vpop.f32.mrb[0].mxu0
    %1450 = vmatprep.mubr.f32.mxu0 0.0
    %1451 = vmatmul.mubr.f32.gmra.mrb[0].mxu0 %v201
    %v1452 = vpop.f32.mrb[0].mxu0
    %v1453 = vadd.f32 %v1279, %v1452
    %v1454 = vpop.f32.mrb[0].mxu0
    %1455 = vmatprep.mubr.f32.mxu0 0.0
    %1456 = vmatmul.mubr.f32.gmra.mrb[0].mxu0 %v202
    %v1457 = vpop.f32.mrb[0].mxu0
    %v1458 = vadd.f32 %v1279, %v1457
    %v1459 = vpop.f32.mrb[0].mxu0
    %1460 = vmatprep.mubr.f32.mxu0 0.0
    %1461 = vmatmul.mubr.f32.gmra.mrb[0].mxu0 %v203
    %v1462 = vpop.f32.mrb[0].mxu0
    %v1463 = vadd.f32 %v1279, %v1462
    %v1464 = vpop.f32.mrb[0].mxu0
    %1465 = vmatprep.mubr.f32.mxu0 0.0
    %1466 = vmatmul.mubr.f32.gmra.mrb[0].mxu0 %v204
    %v1467 = vpop.f32.mrb[0].mxu0
    %v1468 = vadd.f32 %v1279, %v1467
    %v1469 = vpop.f32.mrb[0].mxu0
    %1470 = vmatprep.mubr.f32.mxu0 0.0
    %1471 = vmatmul.mubr.f32.gmra.mrb[0].mxu0 %v205
    %v1472 = vpop.f32.mrb[0].mxu0
    %v1473 = vadd.f32 %v1279, %v1472
    %v1474 = vpop.f32.mrb[0].mxu0
    %1475 = vmatprep.mubr.f32.mxu0 0.0
    %1476 = vmatmul.mubr.f32.gmra.mrb[0].mxu0 %v206
    %v1477 = vpop.f32.mrb[0].mxu0
    %v1478 = vadd.f32 %v1279, %v1477
    %v1479 = vpop.f32.mrb[0].mxu0
    %1480 = vmatprep.mubr.f32.mxu0 0.0
    %1481 = vmatmul.mubr.f32.gmra.mrb[0].mxu0 %v207
    %v1482 = vpop.f32.mrb[0].mxu0
    %v1483 = vadd.f32 %v1279, %v1482
    %v1484 = vpop.f32.mrb[0].mxu0
    %1485 = vmatprep.mubr.f32.mxu0 0.0
    %1486 = vmatmul.mubr.f32.gmra.mrb[0].mxu0 %v208
    %v1487 = vpop.f32.mrb[0].mxu0
    %v1488 = vadd.f32 %v1279, %v1487
    %v1489 = vpop.f32.mrb[0].mxu0
    %1490 = vmatprep.mubr.f32.mxu0 0.0
    %1491 = vmatmul.mubr.f32.gmra.mrb[0].mxu0 %v209
    %v1492 = vpop.f32.mrb[0].mxu0
    %v1493 = vadd.f32 %v1279, %v1492
    %v1494 = vpop.f32.mrb[0].mxu0
    %1495 = vmatprep.mubr.f32.mxu0 0.0
    %1496 = vmatmul.mubr.f32.gmra.mrb[0].mxu0 %v210
    %v1497 = vpop.f32.mrb[0].mxu0
    %v1498 = vadd.f32 %v1279, %v1497
    %v1499 = vpop.f32.mrb[0].mxu0
    %1500 = vmatprep.mubr.f32.mxu0 0.0
    %1501 = vmatmul.mubr.f32.gmra.mrb[0].mxu0 %v211
    %v1502 = vpop.f32.mrb[0].mxu0
    %v1503 = vadd.f32 %v1279, %v1502
    %v1504 = vpop.f32.mrb[0].mxu0
    %1505 = vmatprep.mubr.f32.mxu0 0.0
    %1506 = vmatmul.mubr.f32.gmra.mrb[0].mxu0 %v212
    %v1507 = vpop.f32.mrb[0].mxu0
    %v1508 = vadd.f32 %v1279, %v1507
    %v1509 = vpop.f32.mrb[0].mxu0
    %1510 = vmatprep.mubr.f32.mxu0 0.0
    %1511 = vmatmul.mubr.f32.gmra.mrb[0].mxu0 %v213
    %v1512 = vpop.f32.mrb[0].mxu0
    %v1513 = vadd.f32 %v1279, %v1512
    %v1514 = vpop.f32.mrb[0].mxu0
    %1515 = vmatprep.mubr.f32.mxu0 0.0
    %1516 = vmatmul.mubr.f32.gmra.mrb[0].mxu0 %v214
    %v1517 = vpop.f32.mrb[0].mxu0
    %v1518 = vadd.f32 %v1279, %v1517
    %v1519 = vpop.f32.mrb[0].mxu0
    %1520 = vmatprep.mubr.f32.mxu0 0.0
    %1521 = vmatmul.mubr.f32.gmra.mrb[0].mxu0 %v215
    %v1522 = vpop.f32.mrb[0].mxu0
    %v1523 = vadd.f32 %v1279, %v1522
    %v1524 = vpop.f32.mrb[0].mxu0
    %1525 = vmatprep.mubr.f32.mxu0 0.0
    %1526 = vmatmul.mubr.f32.gmra.mrb[0].mxu0 %v216
    %v1527 = vpop.f32.mrb[0].mxu0
    %v1528 = vadd.f32 %v1279, %v1527
    %v1529 = vpop.f32.mrb[0].mxu0
    %1530 = vmatprep.mubr.f32.mxu0 0.0
    %1531 = vmatmul.mubr.f32.gmra.mrb[0].mxu0 %v217
    %v1532 = vpop.f32.mrb[0].mxu0
    %v1533 = vadd.f32 %v1279, %v1532
    %v1534 = vpop.f32.mrb[0].mxu0
    %1535 = vmatprep.mubr.f32.mxu0 0.0
    %1536 = vmatmul.mubr.f32.gmra.mrb[0].mxu0 %v218
    %v1537 = vpop.f32.mrb[0].mxu0
    %v1538 = vadd.f32 %v1279, %v1537
    %v1539 = vpop.f32.mrb[0].mxu0
    %1540 = vmatprep.mubr.f32.mxu0 0.0
    %1541 = vmatmul.mubr.f32.gmra.mrb[0].mxu0 %v219
    %v1542 = vpop.f32.mrb[0].mxu0
    %v1543 = vadd.f32 %v1279, %v1542
    %v1544 = vpop.f32.mrb[0].mxu0
    %1545 = vmatprep.mubr.f32.mxu0 0.0
    %1546 = vmatmul.mubr.f32.gmra.mrb[0].mxu0 %v220
    %v1547 = vpop.f32.mrb[0].mxu0
    %v1548 = vadd.f32 %v1279, %v1547
    %v1549 = vpop.f32.mrb[0].mxu0
    %1550 = vmatprep.mubr.f32.mxu0 0.0
    %1551 = vmatmul.mubr.f32.gmra.mrb[0].mxu0 %v221
    %v1552 = vpop.f32.mrb[0].mxu0
    %v1553 = vadd.f32 %v1279, %v1552
    %v1554 = vpop.f32.mrb[0].mxu0
    %1555 = vmatprep.mubr.f32.mxu0 0.0
    %1556 = vmatmul.mubr.f32.gmra.mrb[0].mxu0 %v222
    %v1557 = vpop.f32.mrb[0].mxu0
    %v1558 = vadd.f32 %v1279, %v1557
    %v1559 = vpop.f32.mrb[0].mxu0
    %1560 = vmatprep.mubr.f32.mxu0 0.0
    %1561 = vmatmul.mubr.f32.gmra.mrb[0].mxu0 %v223
    %v1562 = vpop.f32.mrb[0].mxu0
    %v1563 = vadd.f32 %v1279, %v1562
    %v1564 = vpop.f32.mrb[0].mxu0
    %1565 = vmatprep.mubr.f32.mxu0 0.0
    %1566 = vmatmul.mubr.f32.gmra.mrb[0].mxu0 %v224
    %v1567 = vpop.f32.mrb[0].mxu0
    %v1568 = vadd.f32 %v1279, %v1567
    %v1569 = vpop.f32.mrb[0].mxu0
    %1570 = vmatprep.mubr.f32.mxu0 0.0
    %1571 = vmatmul.mubr.f32.gmra.mrb[0].mxu0 %v225
    %v1572 = vpop.f32.mrb[0].mxu0
    %v1573 = vadd.f32 %v1279, %v1572
    %v1574 = vpop.f32.mrb[0].mxu0
    %1575 = vmatprep.mubr.f32.mxu0 0.0
    %1576 = vmatmul.mubr.f32.gmra.mrb[0].mxu0 %v226
    %v1577 = vpop.f32.mrb[0].mxu0
    %v1578 = vadd.f32 %v1279, %v1577
    %v1579 = vpop.f32.mrb[0].mxu0
    %1580 = vmatprep.mubr.f32.mxu0 0.0
    %1581 = vmatmul.mubr.f32.gmra.mrb[0].mxu0 %v227
    %v1582 = vpop.f32.mrb[0].mxu0
    %v1583 = vadd.f32 %v1279, %v1582
    %v1584 = vpop.f32.mrb[0].mxu0
    %1585 = vmatprep.mubr.f32.mxu0 0.0
    %1586 = vmatmul.mubr.f32.gmra.mrb[0].mxu0 %v228
    %v1587 = vpop.f32.mrb[0].mxu0
    %v1588 = vadd.f32 %v1279, %v1587
    %v1589 = vpop.f32.mrb[0].mxu0
    %1590 = vmatprep.mubr.f32.mxu0 0.0
    %1591 = vmatmul.mubr.f32.gmra.mrb[0].mxu0 %v229
    %v1592 = vpop.f32.mrb[0].mxu0
    %v1593 = vadd.f32 %v1279, %v1592
    %v1594 = vpop.f32.mrb[0].mxu0
    %1595 = vmatprep.mubr.f32.mxu0 0.0
    %1596 = vmatmul.mubr.f32.gmra.mrb[0].mxu0 %v230
    %v1597 = vpop.f32.mrb[0].mxu0
    %v1598 = vadd.f32 %v1279, %v1597
    %v1599 = vpop.f32.mrb[0].mxu0
    %1600 = vmatprep.mubr.f32.mxu0 0.0
    %1601 = vmatmul.mubr.f32.gmra.mrb[0].mxu0 %v231
    %v1602 = vpop.f32.mrb[0].mxu0
    %v1603 = vadd.f32 %v1279, %v1602
    %v1604 = vpop.f32.mrb[0].mxu0
    %1605 = vmatprep.mubr.f32.mxu0 0.0
    %1606 = vmatmul.mubr.f32.gmra.mrb[0].mxu0 %v232
    %v1607 = vpop.f32.mrb[0].mxu0
    %v1608 = vadd.f32 %v1279, %v1607
    %v1609 = vpop.f32.mrb[0].mxu0
    %1610 = vmatprep.mubr.f32.mxu0 0.0
    %1611 = vmatmul.mubr.f32.gmra.mrb[0].mxu0 %v233
    %v1612 = vpop.f32.mrb[0].mxu0
    %v1613 = vadd.f32 %v1279, %v1612
    %v1614 = vpop.f32.mrb[0].mxu0
    %1615 = vmatprep.mubr.f32.mxu0 0.0
    %1616 = vmatmul.mubr.f32.gmra.mrb[0].mxu0 %v234
    %v1617 = vpop.f32.mrb[0].mxu0
    %v1618 = vadd.f32 %v1279, %v1617
    %v1619 = vpop.f32.mrb[0].mxu0
    %1620 = vmatprep.mubr.f32.mxu0 0.0
    %1621 = vmatmul.mubr.f32.gmra.mrb[0].mxu0 %v235
    %v1622 = vpop.f32.mrb[0].mxu0
    %v1623 = vadd.f32 %v1279, %v1622
    %v1624 = vpop.f32.mrb[0].mxu0
    %1625 = vmatprep.mubr.f32.mxu0 0.0
    %1626 = vmatmul.mubr.f32.gmra.mrb[0].mxu0 %v236
    %v1627 = vpop.f32.mrb[0].mxu0
    %v1628 = vadd.f32 %v1279, %v1627
    %v1629 = vpop.f32.mrb[0].mxu0
    %1630 = vmatprep.mubr.f32.mxu0 0.0
    %1631 = vmatmul.mubr.f32.gmra.mrb[0].mxu0 %v237
    %v1632 = vpop.f32.mrb[0].mxu0
    %v1633 = vadd.f32 %v1279, %v1632
    %v1634 = vpop.f32.mrb[0].mxu0
    %1635 = vmatprep.mubr.f32.mxu0 0.0
    %1636 = vmatmul.mubr.f32.gmra.mrb[0].mxu0 %v238
    %v1637 = vpop.f32.mrb[0].mxu0
    %v1638 = vadd.f32 %v1279, %v1637
    %v1639 = vpop.f32.mrb[0].mxu0
    %1640 = vmatprep.mubr.f32.mxu0 0.0
    %1641 = vmatmul.mubr.f32.gmra.mrb[0].mxu0 %v239
    %v1642 = vpop.f32.mrb[0].mxu0
    %v1643 = vadd.f32 %v1279, %v1642
    %v1644 = vpop.f32.mrb[0].mxu0
    %1645 = vmatprep.mubr.f32.mxu0 0.0
    %1646 = vmatmul.mubr.f32.gmra.mrb[0].mxu0 %v240
    %v1647 = vpop.f32.mrb[0].mxu0
    %v1648 = vadd.f32 %v1279, %v1647
    %v1649 = vpop.f32.mrb[0].mxu0
    %1650 = vmatprep.mubr.f32.mxu0 0.0
    %1651 = vmatmul.mubr.f32.gmra.mrb[0].mxu0 %v241
    %v1652 = vpop.f32.mrb[0].mxu0
    %v1653 = vadd.f32 %v1279, %v1652
    %v1654 = vpop.f32.mrb[0].mxu0
    %1655 = vmatprep.mubr.f32.mxu0 0.0
    %1656 = vmatmul.mubr.f32.gmra.mrb[0].mxu0 %v242
    %v1657 = vpop.f32.mrb[0].mxu0
    %v1658 = vadd.f32 %v1279, %v1657
    %v1659 = vpop.f32.mrb[0].mxu0
    %1660 = vmatprep.mubr.f32.mxu0 0.0
    %1661 = vmatmul.mubr.f32.gmra.mrb[0].mxu0 %v243
    %v1662 = vpop.f32.mrb[0].mxu0
    %v1663 = vadd.f32 %v1279, %v1662
    %v1664 = vpop.f32.mrb[0].mxu0
    %1665 = vmatprep.mubr.f32.mxu0 0.0
    %1666 = vmatmul.mubr.f32.gmra.mrb[0].mxu0 %v244
    %v1667 = vpop.f32.mrb[0].mxu0
    %v1668 = vadd.f32 %v1279, %v1667
    %v1669 = vpop.f32.mrb[0].mxu0
    %1670 = vmatprep.mubr.f32.mxu0 0.0
    %1671 = vmatmul.mubr.f32.gmra.mrb[0].mxu0 %v245
    %v1672 = vpop.f32.mrb[0].mxu0
    %v1673 = vadd.f32 %v1279, %v1672
    %v1674 = vpop.f32.mrb[0].mxu0
    %1675 = vmatprep.mubr.f32.mxu0 0.0
    %1676 = vmatmul.mubr.f32.gmra.mrb[0].mxu0 %v246
    %v1677 = vpop.f32.mrb[0].mxu0
    %v1678 = vadd.f32 %v1279, %v1677
    %v1679 = vpop.f32.mrb[0].mxu0
    %1680 = vmatprep.mubr.f32.mxu0 0.0
    %1681 = vmatmul.mubr.f32.gmra.mrb[0].mxu0 %v247
    %v1682 = vpop.f32.mrb[0].mxu0
    %v1683 = vadd.f32 %v1279, %v1682
    %v1684 = vpop.f32.mrb[0].mxu0
    %1685 = vmatprep.mubr.f32.mxu0 0.0
    %1686 = vmatmul.mubr.f32.gmra.mrb[0].mxu0 %v248
    %v1687 = vpop.f32.mrb[0].mxu0
    %v1688 = vadd.f32 %v1279, %v1687
    %v1689 = vpop.f32.mrb[0].mxu0
    %1690 = vmatprep.mubr.f32.mxu0 0.0
    %1691 = vmatmul.mubr.f32.gmra.mrb[0].mxu0 %v249
    %v1692 = vpop.f32.mrb[0].mxu0
    %v1693 = vadd.f32 %v1279, %v1692
    %v1694 = vpop.f32.mrb[0].mxu0
    %1695 = vmatprep.mubr.f32.mxu0 0.0
    %1696 = vmatmul.mubr.f32.gmra.mrb[0].mxu0 %v250
    %v1697 = vpop.f32.mrb[0].mxu0
    %v1698 = vadd.f32 %v1279, %v1697
    %v1699 = vpop.f32.mrb[0].mxu0
    %1700 = vmatprep.mubr.f32.mxu0 0.0
    %1701 = vmatmul.mubr.f32.gmra.mrb[0].mxu0 %v251
    %v1702 = vpop.f32.mrb[0].mxu0
    %v1703 = vadd.f32 %v1279, %v1702
    %v1704 = vpop.f32.mrb[0].mxu0
    %1705 = vmatprep.mubr.f32.mxu0 0.0
    %1706 = vmatmul.mubr.f32.gmra.mrb[0].mxu0 %v252
    %v1707 = vpop.f32.mrb[0].mxu0
    %v1708 = vadd.f32 %v1279, %v1707
    %v1709 = vpop.f32.mrb[0].mxu0
    %1710 = vmatprep.mubr.f32.mxu0 0.0
    %1711 = vmatmul.mubr.f32.gmra.mrb[0].mxu0 %v253
    %v1712 = vpop.f32.mrb[0].mxu0
    %v1713 = vadd.f32 %v1279, %v1712
    %v1714 = vpop.f32.mrb[0].mxu0
    %1715 = vmatprep.mubr.f32.mxu0 0.0
    %1716 = vmatmul.mubr.f32.gmra.mrb[0].mxu0 %v254
    %v1717 = vpop.f32.mrb[0].mxu0
    %v1718 = vadd.f32 %v1279, %v1717
    %v1719 = vpop.f32.mrb[0].mxu0
    %1720 = vmatprep.mubr.f32.mxu0 0.0
    %1721 = vmatmul.mubr.f32.gmra.mrb[0].mxu0 %v255
    %v1722 = vpop.f32.mrb[0].mxu0
    %v1723 = vadd.f32 %v1279, %v1722
    %v1724 = vpop.f32.mrb[0].mxu0
    %1725 = vmatprep.mubr.f32.mxu0 0.0
    %1726 = vmatmul.mubr.f32.gmra.mrb[0].mxu0 %v256
    %v1727 = vpop.f32.mrb[0].mxu0
    %v1728 = vadd.f32 %v1279, %v1727
    %v1729 = vpop.f32.mrb[0].mxu0
    %1730 = vmatprep.mubr.f32.mxu0 0.0
    %1731 = vmatmul.mubr.f32.gmra.mrb[0].mxu0 %v257
    %v1732 = vpop.f32.mrb[0].mxu0
    %v1733 = vadd.f32 %v1279, %v1732
    %v1734 = vpop.f32.mrb[0].mxu0
    %1735 = vmatprep.mubr.f32.mxu0 0.0
    %1736 = vmatmul.mubr.f32.gmra.mrb[0].mxu0 %v258
    %v1737 = vpop.f32.mrb[0].mxu0
    %v1738 = vadd.f32 %v1279, %v1737
    %v1739 = vpop.f32.mrb[0].mxu0
    %1740 = vmatprep.mubr.f32.mxu0 0.0
    %1741 = vmatmul.mubr.f32.gmra.mrb[0].mxu0 %v259
    %v1742 = vpop.f32.mrb[0].mxu0
    %v1743 = vadd.f32 %v1279, %v1742
    %v1744 = vpop.f32.mrb[0].mxu0
    %1745 = vmatprep.mubr.f32.mxu0 0.0
    %1746 = vmatmul.mubr.f32.gmra.mrb[0].mxu0 %v260
    %v1747 = vpop.f32.mrb[0].mxu0
    %v1748 = vadd.f32 %v1279, %v1747
    %v1749 = vpop.f32.mrb[0].mxu0
    %1750 = vmatprep.mubr.f32.mxu0 0.0
    %1751 = vmatmul.mubr.f32.gmra.mrb[0].mxu0 %v261
    %v1752 = vpop.f32.mrb[0].mxu0
    %v1753 = vadd.f32 %v1279, %v1752
    %v1754 = vpop.f32.mrb[0].mxu0
    %1755 = vmatprep.mubr.f32.mxu0 0.0
    %1756 = vmatmul.mubr.f32.gmra.mrb[0].mxu0 %v262
    %v1757 = vpop.f32.mrb[0].mxu0
    %v1758 = vadd.f32 %v1279, %v1757
    %v1759 = vpop.f32.mrb[0].mxu0
    %1760 = vmatprep.mubr.f32.mxu0 0.0
    %1761 = vmatmul.mubr.f32.gmra.mrb[0].mxu0 %v263
    %v1762 = vpop.f32.mrb[0].mxu0
    %v1763 = vadd.f32 %v1279, %v1762
    %v1764 = vpop.f32.mrb[0].mxu0
    %1765 = vmatprep.mubr.f32.mxu0 0.0
    %1766 = vmatmul.mubr.f32.gmra.mrb[0].mxu0 %v264
    %v1767 = vpop.f32.mrb[0].mxu0
    %v1768 = vadd.f32 %v1279, %v1767
    %v1769 = vpop.f32.mrb[0].mxu0
    %1770 = vmatprep.mubr.f32.mxu0 0.0
    %1771 = vmatmul.mubr.f32.gmra.mrb[0].mxu0 %v265
    %v1772 = vpop.f32.mrb[0].mxu0
    %v1773 = vadd.f32 %v1279, %v1772
    %v1774 = vpop.f32.mrb[0].mxu0
    %1775 = vmatprep.mubr.f32.mxu0 0.0
    %1776 = vmatmul.mubr.f32.gmra.mrb[0].mxu0 %v266
    %v1777 = vpop.f32.mrb[0].mxu0
    %v1778 = vadd.f32 %v1279, %v1777
    %v1779 = vpop.f32.mrb[0].mxu0
    %1780 = vmatprep.mubr.f32.mxu0 0.0
    %1781 = vmatmul.mubr.f32.gmra.mrb[0].mxu0 %v267
    %v1782 = vpop.f32.mrb[0].mxu0
    %v1783 = vadd.f32 %v1279, %v1782
    %v1784 = vpop.f32.mrb[0].mxu0
    %1785 = vmatprep.mubr.f32.mxu0 0.0
    %1786 = vmatmul.mubr.f32.gmra.mrb[0].mxu0 %v268
    %v1787 = vpop.f32.mrb[0].mxu0
    %v1788 = vadd.f32 %v1279, %v1787
    %v1789 = vpop.f32.mrb[0].mxu0
    %1790 = vmatprep.mubr.f32.mxu0 0.0
    %1791 = vmatmul.mubr.f32.gmra.mrb[0].mxu0 %v269
    %v1792 = vpop.f32.mrb[0].mxu0
    %v1793 = vadd.f32 %v1279, %v1792
    %v1794 = vpop.f32.mrb[0].mxu0
    %1795 = vmatprep.mubr.f32.mxu0 0.0
    %1796 = vmatmul.mubr.f32.gmra.mrb[0].mxu0 %v270
    %v1797 = vpop.f32.mrb[0].mxu0
    %v1798 = vadd.f32 %v1279, %v1797
    %v1799 = vpop.f32.mrb[0].mxu0
    %1800 = vmatprep.mubr.f32.mxu0 0.0
    %1801 = vmatmul.mubr.f32.gmra.mrb[0].mxu0 %v271
    %v1802 = vpop.f32.mrb[0].mxu0
    %v1803 = vadd.f32 %v1279, %v1802
    %v1804 = vpop.f32.mrb[0].mxu0
    %1805 = vmatprep.mubr.f32.mxu0 0.0
    %1806 = vmatmul.mubr.f32.gmra.mrb[0].mxu0 %v272
    %v1807 = vpop.f32.mrb[0].mxu0
    %v1808 = vadd.f32 %v1279, %v1807
    %v1809 = vpop.f32.mrb[0].mxu0
    %1810 = vmatprep.mubr.f32.mxu0 0.0
    %1811 = vmatmul.mubr.f32.gmra.mrb[0].mxu0 %v273
    %v1812 = vpop.f32.mrb[0].mxu0
    %v1813 = vadd.f32 %v1279, %v1812
    %v1814 = vpop.f32.mrb[0].mxu0
    %1815 = vmatprep.mubr.f32.mxu0 0.0
    %1816 = vmatmul.mubr.f32.gmra.mrb[0].mxu0 %v274
    %v1817 = vpop.f32.mrb[0].mxu0
    %v1818 = vadd.f32 %v1279, %v1817
    %v1819 = vpop.f32.mrb[0].mxu0
    %1820 = vmatprep.mubr.f32.mxu0 0.0
    %1821 = vmatmul.mubr.f32.gmra.mrb[0].mxu0 %v275
    %v1822 = vpop.f32.mrb[0].mxu0
    %v1823 = vadd.f32 %v1279, %v1822
    %v1824 = vpop.f32.mrb[0].mxu0
    %1825 = vmatprep.mubr.f32.mxu0 0.0
    %1826 = vmatmul.mubr.f32.gmra.mrb[0].mxu0 %v276
    %v1827 = vpop.f32.mrb[0].mxu0
    %v1828 = vadd.f32 %v1279, %v1827
    %v1829 = vpop.f32.mrb[0].mxu0
    %1830 = vmatprep.mubr.f32.mxu0 0.0
    %1831 = vmatmul.mubr.f32.gmra.mrb[0].mxu0 %v277
    %v1832 = vpop.f32.mrb[0].mxu0
    %v1833 = vadd.f32 %v1279, %v1832
    %v1834 = vpop.f32.mrb[0].mxu0
    %1835 = vmatprep.mubr.f32.mxu0 0.0
    %1836 = vmatmul.mubr.f32.gmra.mrb[0].mxu0 %v278
    %v1837 = vpop.f32.mrb[0].mxu0
    %v1838 = vadd.f32 %v1279, %v1837
    %v1839 = vpop.f32.mrb[0].mxu0
    %1840 = vmatprep.mubr.f32.mxu0 0.0
    %1841 = vmatmul.mubr.f32.gmra.mrb[0].mxu0 %v279
    %v1842 = vpop.f32.mrb[0].mxu0
    %v1843 = vadd.f32 %v1279, %v1842
    %v1844 = vpop.f32.mrb[0].mxu0
    %1845 = vmatprep.mubr.f32.mxu0 0.0
    %1846 = vmatmul.mubr.f32.gmra.mrb[0].mxu0 %v280
    %v1847 = vpop.f32.mrb[0].mxu0
    %v1848 = vadd.f32 %v1279, %v1847
    %v1849 = vpop.f32.mrb[0].mxu0
    %1850 = vmatprep.mubr.f32.mxu0 0.0
    %1851 = vmatmul.mubr.f32.gmra.mrb[0].mxu0 %v281
    %v1852 = vpop.f32.mrb[0].mxu0
    %v1853 = vadd.f32 %v1279, %v1852
    %v1854 = vpop.f32.mrb[0].mxu0
    %1855 = vmatprep.mubr.f32.mxu0 0.0
    %1856 = vmatmul.mubr.f32.gmra.mrb[0].mxu0 %v282
    %v1857 = vpop.f32.mrb[0].mxu0
    %v1858 = vadd.f32 %v1279, %v1857
    %v1859 = vpop.f32.mrb[0].mxu0
    %1860 = vmatprep.mubr.f32.mxu0 0.0
    %1861 = vmatmul.mubr.f32.gmra.mrb[0].mxu0 %v283
    %v1862 = vpop.f32.mrb[0].mxu0
    %v1863 = vadd.f32 %v1279, %v1862
    %v1864 = vpop.f32.mrb[0].mxu0
    %1865 = vmatprep.mubr.f32.mxu0 0.0
    %1866 = vmatmul.mubr.f32.gmra.mrb[0].mxu0 %v284
    %v1867 = vpop.f32.mrb[0].mxu0
    %v1868 = vadd.f32 %v1279, %v1867
    %v1869 = vpop.f32.mrb[0].mxu0
    %1870 = vmatprep.mubr.f32.mxu0 0.0
    %1871 = vmatmul.mubr.f32.gmra.mrb[0].mxu0 %v285
    %v1872 = vpop.f32.mrb[0].mxu0
    %v1873 = vadd.f32 %v1279, %v1872
    %v1874 = vpop.f32.mrb[0].mxu0
    %1875 = vmatprep.mubr.f32.mxu0 0.0
    %1876 = vmatmul.mubr.f32.gmra.mrb[0].mxu0 %v286
    %v1877 = vpop.f32.mrb[0].mxu0
    %v1878 = vadd.f32 %v1279, %v1877
    %v1879 = vpop.f32.mrb[0].mxu0
    %1880 = vmatprep.mubr.f32.mxu0 0.0
    %1881 = vmatmul.mubr.f32.gmra.mrb[0].mxu0 %v287
    %v1882 = vpop.f32.mrb[0].mxu0
    %v1883 = vadd.f32 %v1279, %v1882
    %v1884 = vpop.f32.mrb[0].mxu0
    %1885 = vmatprep.mubr.f32.mxu0 0.0
    %1886 = vmatmul.mubr.f32.gmra.mrb[0].mxu0 %v288
    %v1887 = vpop.f32.mrb[0].mxu0
    %v1888 = vadd.f32 %v1279, %v1887
    %v1889 = vpop.f32.mrb[0].mxu0
    %1890 = vmatprep.mubr.f32.mxu0 0.0
    %1891 = vmatmul.mubr.f32.gmra.mrb[0].mxu0 %v289
    %v1892 = vpop.f32.mrb[0].mxu0
    %v1893 = vadd.f32 %v1279, %v1892
    %v1894 = vpop.f32.mrb[0].mxu0
    %1895 = vmatprep.mubr.f32.mxu0 0.0
    %1896 = vmatmul.mubr.f32.gmra.mrb[0].mxu0 %v290
    %v1897 = vpop.f32.mrb[0].mxu0
    %v1898 = vadd.f32 %v1279, %v1897
    %v1899 = vpop.f32.mrb[0].mxu0
    %1900 = vmatprep.mubr.f32.mxu0 0.0
    %1901 = vmatmul.mubr.f32.gmra.mrb[0].mxu0 %v291
    %v1902 = vpop.f32.mrb[0].mxu0
    %v1903 = vadd.f32 %v1279, %v1902
    %v1904 = vpop.f32.mrb[0].mxu0
    %1905 = vmatprep.mubr.f32.mxu0 0.0
    %1906 = vmatmul.mubr.f32.gmra.mrb[0].mxu0 %v292
    %v1907 = vpop.f32.mrb[0].mxu0
    %v1908 = vadd.f32 %v1279, %v1907
    %v1909 = vpop.f32.mrb[0].mxu0
    %1910 = vmatprep.mubr.f32.mxu0 0.0
    %1911 = vmatmul.mubr.f32.gmra.mrb[0].mxu0 %v293
    %v1912 = vpop.f32.mrb[0].mxu0
    %v1913 = vadd.f32 %v1279, %v1912
    %v1914 = vpop.f32.mrb[0].mxu0
    %1915 = vmatprep.mubr.f32.mxu0 0.0
    %1916 = vmatmul.mubr.f32.gmra.mrb[0].mxu0 %v294
    %v1917 = vpop.f32.mrb[0].mxu0
    %v1918 = vadd.f32 %v1279, %v1917
    %v1919 = vpop.f32.mrb[0].mxu0
    %1920 = vmatprep.mubr.f32.mxu0 0.0
    %1921 = vmatmul.mubr.f32.gmra.mrb[0].mxu0 %v295
    %v1922 = vpop.f32.mrb[0].mxu0
    %v1923 = vadd.f32 %v1279, %v1922
    %v1924 = vpop.f32.mrb[0].mxu0
    %1925 = vmatprep.mubr.f32.mxu0 0.0
    %1926 = vmatmul.mubr.f32.gmra.mrb[0].mxu0 %v296
    %v1927 = vpop.f32.mrb[0].mxu0
    %v1928 = vadd.f32 %v1279, %v1927
    %v1929 = vpop.f32.mrb[0].mxu0
    %1930 = vmatprep.mubr.f32.mxu0 0.0
    %1931 = vmatmul.mubr.f32.gmra.mrb[0].mxu0 %v297
    %v1932 = vpop.f32.mrb[0].mxu0
    %v1933 = vadd.f32 %v1279, %v1932
    %v1934 = vpop.f32.mrb[0].mxu0
    %1935 = vmatprep.mubr.f32.mxu0 0.0
    %1936 = vmatmul.mubr.f32.gmra.mrb[0].mxu0 %v298
    %v1937 = vpop.f32.mrb[0].mxu0
    %v1938 = vadd.f32 %v1279, %v1937
    %v1939 = vpop.f32.mrb[0].mxu0
    %1940 = vmatprep.mubr.f32.mxu0 0.0
    %1941 = vmatmul.mubr.f32.gmra.mrb[0].mxu0 %v299
    %v1942 = vpop.f32.mrb[0].mxu0
    %v1943 = vadd.f32 %v1279, %v1942
    %v1944 = vpop.f32.mrb[0].mxu0
    %1945 = vmatprep.mubr.f32.mxu0 0.0
    %1946 = vmatmul.mubr.f32.gmra.mrb[0].mxu0 %v300
    %v1947 = vpop.f32.mrb[0].mxu0
    %v1948 = vadd.f32 %v1279, %v1947
    %v1949 = vpop.f32.mrb[0].mxu0
    %1950 = vmatprep.mubr.f32.mxu0 0.0
    %1951 = vmatmul.mubr.f32.gmra.mrb[0].mxu0 %v301
    %v1952 = vpop.f32.mrb[0].mxu0
    %v1953 = vadd.f32 %v1279, %v1952
    %v1954 = vpop.f32.mrb[0].mxu0
    %1955 = vmatprep.mubr.f32.mxu0 0.0
    %1956 = vmatmul.mubr.f32.gmra.mrb[0].mxu0 %v302
    %v1957 = vpop.f32.mrb[0].mxu0
    %v1958 = vadd.f32 %v1279, %v1957
    %v1959 = vpop.f32.mrb[0].mxu0
    %1960 = vmatprep.mubr.f32.mxu0 0.0
    %1961 = vmatmul.mubr.f32.gmra.mrb[0].mxu0 %v303
    %v1962 = vpop.f32.mrb[0].mxu0
    %v1963 = vadd.f32 %v1279, %v1962
    %v1964 = vpop.f32.mrb[0].mxu0
    %1965 = vmatprep.mubr.f32.mxu0 0.0
    %1966 = vmatmul.mubr.f32.gmra.mrb[0].mxu0 %v304
    %v1967 = vpop.f32.mrb[0].mxu0
    %v1968 = vadd.f32 %v1279, %v1967
    %v1969 = vpop.f32.mrb[0].mxu0
    %1970 = vmatprep.mubr.f32.mxu0 0.0
    %1971 = vmatmul.mubr.f32.gmra.mrb[0].mxu0 %v305
    %v1972 = vpop.f32.mrb[0].mxu0
    %v1973 = vadd.f32 %v1279, %v1972
    %v1974 = vpop.f32.mrb[0].mxu0
    %1975 = vmatprep.mubr.f32.mxu0 0.0
    %1976 = vmatmul.mubr.f32.gmra.mrb[0].mxu0 %v306
    %v1977 = vpop.f32.mrb[0].mxu0
    %v1978 = vadd.f32 %v1279, %v1977
    %v1979 = vpop.f32.mrb[0].mxu0
    %1980 = vmatprep.mubr.f32.mxu0 0.0
    %1981 = vmatmul.mubr.f32.gmra.mrb[0].mxu0 %v307
    %v1982 = vpop.f32.mrb[0].mxu0
    %v1983 = vadd.f32 %v1279, %v1982
    %v1984 = vpop.f32.mrb[0].mxu0
    %1985 = vdwg.mxu0
    %v1986 = vtanh.pop %v1348
    %v1987 = vtanh.pop %v1353
    %v1988 = vtanh.pop %v1358
    %v1989 = vtanh.pop %v1363
    %v1990 = vtanh.pop %v1368
    %v1991 = vtanh.pop %v1373
    %v1992 = vtanh.pop %v1378
    %v1993 = vtanh.pop %v1383
    %v1994 = vtanh.pop %v1388
    %v1995 = vtanh.pop %v1393
    %v1996 = vtanh.pop %v1398
    %v1997 = vtanh.pop %v1403
    %v1998 = vtanh.pop %v1408
    %v1999 = vtanh.pop %v1413
    %v2000 = vtanh.pop %v1418
    %v2001 = vtanh.pop %v1423
    %v2002 = vtanh.pop %v1428
    %v2003 = vtanh.pop %v1433
    %v2004 = vtanh.pop %v1438
    %v2005 = vtanh.pop %v1443
    %v2006 = vtanh.pop %v1448
    %v2007 = vtanh.pop %v1453
    %v2008 = vtanh.pop %v1458
    %v2009 = vtanh.pop %v1463
    %v2010 = vtanh.pop %v1468
    %v2011 = vtanh.pop %v1473
    %v2012 = vtanh.pop %v1478
    %v2013 = vtanh.pop %v1483
    %v2014 = vtanh.pop %v1488
    %v2015 = vtanh.pop %v1493
    %v2016 = vtanh.pop %v1498
    %v2017 = vtanh.pop %v1503
    %v2018 = vtanh.pop %v1508
    %v2019 = vtanh.pop %v1513
    %v2020 = vtanh.pop %v1518
    %v2021 = vtanh.pop %v1523
    %v2022 = vtanh.pop %v1528
    %v2023 = vtanh.pop %v1533
    %v2024 = vtanh.pop %v1538
    %v2025 = vtanh.pop %v1543
    %v2026 = vtanh.pop %v1548
    %v2027 = vtanh.pop %v1553
    %v2028 = vtanh.pop %v1558
    %v2029 = vtanh.pop %v1563
    %v2030 = vtanh.pop %v1568
    %v2031 = vtanh.pop %v1573
    %v2032 = vtanh.pop %v1578
    %v2033 = vtanh.pop %v1583
    %v2034 = vtanh.pop %v1588
    %v2035 = vtanh.pop %v1593
    %v2036 = vtanh.pop %v1598
    %v2037 = vtanh.pop %v1603
    %v2038 = vtanh.pop %v1608
    %v2039 = vtanh.pop %v1613
    %v2040 = vtanh.pop %v1618
    %v2041 = vtanh.pop %v1623
    %v2042 = vtanh.pop %v1628
    %v2043 = vtanh.pop %v1633
    %v2044 = vtanh.pop %v1638
    %v2045 = vtanh.pop %v1643
    %v2046 = vtanh.pop %v1648
    %v2047 = vtanh.pop %v1653
    %v2048 = vtanh.pop %v1658
    %v2049 = vtanh.pop %v1663
    %v2050 = vtanh.pop %v1668
    %v2051 = vtanh.pop %v1673
    %v2052 = vtanh.pop %v1678
    %v2053 = vtanh.pop %v1683
    %v2054 = vtanh.pop %v1688
    %v2055 = vtanh.pop %v1693
    %v2056 = vtanh.pop %v1698
    %v2057 = vtanh.pop %v1703
    %v2058 = vtanh.pop %v1708
    %v2059 = vtanh.pop %v1713
    %v2060 = vtanh.pop %v1718
    %v2061 = vtanh.pop %v1723
    %v2062 = vtanh.pop %v1728
    %v2063 = vtanh.pop %v1733
    %v2064 = vtanh.pop %v1738
    %v2065 = vtanh.pop %v1743
    %v2066 = vtanh.pop %v1748
    %v2067 = vtanh.pop %v1753
    %v2068 = vtanh.pop %v1758
    %v2069 = vtanh.pop %v1763
    %v2070 = vtanh.pop %v1768
    %v2071 = vtanh.pop %v1773
    %v2072 = vtanh.pop %v1778
    %v2073 = vtanh.pop %v1783
    %v2074 = vtanh.pop %v1788
    %v2075 = vtanh.pop %v1793
    %v2076 = vtanh.pop %v1798
    %v2077 = vtanh.pop %v1803
    %v2078 = vtanh.pop %v1808
    %v2079 = vtanh.pop %v1813
    %v2080 = vtanh.pop %v1818
    %v2081 = vtanh.pop %v1823
    %v2082 = vtanh.pop %v1828
    %v2083 = vtanh.pop %v1833
    %v2084 = vtanh.pop %v1838
    %v2085 = vtanh.pop %v1843
    %v2086 = vtanh.pop %v1848
    %v2087 = vtanh.pop %v1853
    %v2088 = vtanh.pop %v1858
    %v2089 = vtanh.pop %v1863
    %v2090 = vtanh.pop %v1868
    %v2091 = vtanh.pop %v1873
    %v2092 = vtanh.pop %v1878
    %v2093 = vtanh.pop %v1883
    %v2094 = vtanh.pop %v1888
    %v2095 = vtanh.pop %v1893
    %v2096 = vtanh.pop %v1898
    %v2097 = vtanh.pop %v1903
    %v2098 = vtanh.pop %v1908
    %v2099 = vtanh.pop %v1913
    %v2100 = vtanh.pop %v1918
    %v2101 = vtanh.pop %v1923
    %v2102 = vtanh.pop %v1928
    %v2103 = vtanh.pop %v1933
    %v2104 = vtanh.pop %v1938
    %v2105 = vtanh.pop %v1943
    %v2106 = vtanh.pop %v1948
    %v2107 = vtanh.pop %v1953
    %v2108 = vtanh.pop %v1958
    %v2109 = vtanh.pop %v1963
    %v2110 = vtanh.pop %v1968
    %v2111 = vtanh.pop %v1973
    %v2112 = vtanh.pop %v1978
    %v2113 = vtanh.pop %v1983
    %v2114 = vmul.f32 %v401, 2.0
    %v2115 = vlaneseq
    %v2116 = vand.u32 %v2115, 127
    %v2117 = vlaneseq
    %v2118 = vshrl.u32 %v2117, 7
    %v2119 = vmul.u32 %v2118, 16
    %vm2120 = vcmp.ge.s32.totalorder %v2116, %v2119
    %v2121 = vadd.s32 %v2119, 16
    %vm2122 = vcmp.lt.s32.totalorder %v2116, %v2121
    %vm2123 = vmand %vm2120, %vm2122
    %v2125 = vcombine.high %v2114, %v2114
    %v2127 = vunpack.c.l.s4 1966171168
    %v2128 = vunpack.c.0.s8 %v2127
    %v2129 = vlaneseq
    %v2130 = vshrl.u32 %v2129, 7
    %v2131 = vsub.s32 %v2128, %v2130
    %v2132 = vrot.slane %v2114, %v2131
    %v2134 = vunpack.c.l.s4 1966171168
    %v2135 = vunpack.c.0.s8 %v2134
    %v2136 = vlaneseq
    %v2137 = vshrl.u32 %v2136, 7
    %v2138 = vsub.s32 %v2135, %v2137
    %v2139 = vrot.slane %v2125, %v2138
    %v2140 = vcombine.high %v2132, %v2132
    %v2141 = vcombine.high %v2139, %v2139
    %v2143 = vunpack.c.l.s4 1966171168
    %v2144 = vunpack.c.0.s8 %v2143
    %v2145 = vlaneseq
    %v2146 = vshrl.u32 %v2145, 7
    %v2147 = vsub.s32 %v2144, %v2146
    %v2148 = vrot.slane %v2132, %v2147
    %v2150 = vunpack.c.l.s4 1966171168
    %v2151 = vunpack.c.0.s8 %v2150
    %v2152 = vlaneseq
    %v2153 = vshrl.u32 %v2152, 7
    %v2154 = vsub.s32 %v2151, %v2153
    %v2155 = vrot.slane %v2139, %v2154
    %v2157 = vunpack.c.l.s4 1966171168
    %v2158 = vunpack.c.0.s8 %v2157
    %v2159 = vlaneseq
    %v2160 = vshrl.u32 %v2159, 7
    %v2161 = vsub.s32 %v2158, %v2160
    %v2162 = vrot.slane %v2140, %v2161
    %v2164 = vunpack.c.l.s4 1966171168
    %v2165 = vunpack.c.0.s8 %v2164
    %v2166 = vlaneseq
    %v2167 = vshrl.u32 %v2166, 7
    %v2168 = vsub.s32 %v2165, %v2167
    %v2169 = vrot.slane %v2141, %v2168
    %v2170 = vcombine.high %v2148, %v2148
    %v2171 = vcombine.high %v2155, %v2155
    %v2172 = vcombine.high %v2162, %v2162
    %v2173 = vcombine.high %v2169, %v2169
    %v2174 = vsel %vm2123, 1, 0
    %vm2175 = vcmp.eq.s32.totalorder %v2174, 1
    %v2176 = vlaneseq
    %v2177 = vshrl.u32 %v2176, 7
    %v2178 = vsub.s32 0, %v2177
    %v2179 = vrot.slane %v2148, %v2178
    %v2180 = vlaneseq
    %v2181 = vshrl.u32 %v2180, 7
    %v2182 = vsub.s32 0, %v2181
    %v2183 = vrot.slane %v2162, %v2182
    %v2184 = vlaneseq
    %v2185 = vshrl.u32 %v2184, 7
    %v2186 = vsub.s32 0, %v2185
    %v2187 = vrot.slane %v2170, %v2186
    %v2188 = vlaneseq
    %v2189 = vshrl.u32 %v2188, 7
    %v2190 = vsub.s32 0, %v2189
    %v2191 = vrot.slane %v2172, %v2190
    %v2192 = vlaneseq
    %v2193 = vshrl.u32 %v2192, 7
    %v2194 = vsub.s32 0, %v2193
    %v2195 = vrot.slane %v2155, %v2194
    %v2196 = vlaneseq
    %v2197 = vshrl.u32 %v2196, 7
    %v2198 = vsub.s32 0, %v2197
    %v2199 = vrot.slane %v2169, %v2198
    %v2200 = vlaneseq
    %v2201 = vshrl.u32 %v2200, 7
    %v2202 = vsub.s32 0, %v2201
    %v2203 = vrot.slane %v2171, %v2202
    %v2204 = vlaneseq
    %v2205 = vshrl.u32 %v2204, 7
    %v2206 = vsub.s32 0, %v2205
    %v2207 = vrot.slane %v2173, %v2206
    %v2216 = vsel %vm2175, %v2179, 0.0
    %v2217 = vsel %vm2175, %v2183, 0.0
    %v2218 = vsel %vm2175, %v2187, 0.0
    %v2219 = vsel %vm2175, %v2191, 0.0
    %v2220 = vsel %vm2175, %v2195, 0.0
    %v2221 = vsel %vm2175, %v2199, 0.0
    %v2222 = vsel %vm2175, %v2203, 0.0
    %v2223 = vsel %vm2175, %v2207, 0.0
    %2224 = vmatprep.subr.mxu0 0.0
    %2225 = vmatpush1.xpose.msra.mxu0 %v1130
    %2226 = vmatprep.subr.mxu0 0.0
    %2227 = vmatpush1.xpose.msra.mxu0 %v1131
    %2228 = vmatprep.subr.mxu0 0.0
    %2229 = vmatpush1.xpose.msra.mxu0 %v1132
    %2230 = vmatprep.subr.mxu0 0.0
    %2231 = vmatpush1.xpose.msra.mxu0 %v1133
    %2232 = vmatprep.subr.mxu0 0.0
    %2233 = vmatpush1.xpose.msra.mxu0 %v1134
    %2234 = vmatprep.subr.mxu0 0.0
    %2235 = vmatpush1.xpose.msra.mxu0 %v1135
    %2236 = vmatprep.subr.mxu0 0.0
    %2237 = vmatpush1.xpose.msra.mxu0 %v1136
    %2238 = vmatprep.subr.mxu0 0.0
    %2239 = vmatpush1.xpose.msra.mxu0 %v1137
    %2240 = vmatprep.subr.mxu0 0.0
    %2241 = vmatpush1.xpose.msra.mxu0 %v1138
    %2242 = vmatprep.subr.mxu0 0.0
    %2243 = vmatpush1.xpose.msra.mxu0 %v1139
    %2244 = vmatprep.subr.mxu0 0.0
    %2245 = vmatpush1.xpose.msra.mxu0 %v1140
    %2246 = vmatprep.subr.mxu0 0.0
    %2247 = vmatpush1.xpose.msra.mxu0 %v1141
    %2248 = vmatprep.subr.mxu0 0.0
    %2249 = vmatpush1.xpose.msra.mxu0 %v1142
    %2250 = vmatprep.subr.mxu0 0.0
    %2251 = vmatpush1.xpose.msra.mxu0 %v1143
    %2252 = vmatprep.subr.mxu0 0.0
    %2253 = vmatpush1.xpose.msra.mxu0 %v1144
    %2254 = vmatprep.subr.mxu0 0.0
    %2255 = vmatpush1.xpose.msra.mxu0 %v1145
    %2256 = vmatprep.subr.mxu0 0.0
    %2257 = vmatpush1.xpose.msra.mxu0 0.0
    %2258 = vmatprep.subr.mxu0 0.0
    %2259 = vmatpush1.xpose.msra.mxu0 0.0
    %2260 = vmatprep.subr.mxu0 0.0
    %2261 = vmatpush1.xpose.msra.mxu0 0.0
    %2262 = vmatprep.subr.mxu0 0.0
    %2263 = vmatpush1.xpose.msra.mxu0 0.0
    %2264 = vmatprep.subr.mxu0 0.0
    %2265 = vmatpush1.xpose.msra.mxu0 0.0
    %2266 = vmatprep.subr.mxu0 0.0
    %2267 = vmatpush1.xpose.msra.mxu0 0.0
    %2268 = vmatprep.subr.mxu0 0.0
    %2269 = vmatpush1.xpose.msra.mxu0 0.0
    %2270 = vmatprep.subr.mxu0 0.0
    %2271 = vmatpush1.xpose.msra.mxu0 0.0
    %2272 = vmatprep.subr.mxu0 0.0
    %2273 = vmatpush1.xpose.msra.mxu0 0.0
    %2274 = vmatprep.subr.mxu0 0.0
    %2275 = vmatpush1.xpose.msra.mxu0 0.0
    %2276 = vmatprep.subr.mxu0 0.0
    %2277 = vmatpush1.xpose.msra.mxu0 0.0
    %2278 = vmatprep.subr.mxu0 0.0
    %2279 = vmatpush1.xpose.msra.mxu0 0.0
    %2280 = vmatprep.subr.mxu0 0.0
    %2281 = vmatpush1.xpose.msra.mxu0 0.0
    %2282 = vmatprep.subr.mxu0 0.0
    %2283 = vmatpush1.xpose.msra.mxu0 0.0
    %2284 = vmatprep.subr.mxu0 0.0
    %2285 = vmatpush1.xpose.msra.mxu0 0.0
    %2286 = vmatprep.subr.mxu0 0.0
    %2287 = vmatpush1.xpose.msra.mxu0 0.0
    %2288 = vmatprep.mubr.f32.mxu0 0.0
    %2289 = vmatmul.mubr.f32.gmra.mrb[0].mxu0 %v2216
    %v2290 = vpop.f32.mrb[0].mxu0
    %v2291 = vadd.f32 0.0, %v2290
    %v2292 = vpop.f32.mrb[0].mxu0
    %2293 = vdwg.mxu0
    %2294 = vmatprep.subr.mxu0 0.0
    %2295 = vmatpush1.xpose.msra.mxu0 %v1146
    %2296 = vmatprep.subr.mxu0 0.0
    %2297 = vmatpush1.xpose.msra.mxu0 %v1147
    %2298 = vmatprep.subr.mxu0 0.0
    %2299 = vmatpush1.xpose.msra.mxu0 %v1148
    %2300 = vmatprep.subr.mxu0 0.0
    %2301 = vmatpush1.xpose.msra.mxu0 %v1149
    %2302 = vmatprep.subr.mxu0 0.0
    %2303 = vmatpush1.xpose.msra.mxu0 %v1150
    %2304 = vmatprep.subr.mxu0 0.0
    %2305 = vmatpush1.xpose.msra.mxu0 %v1151
    %2306 = vmatprep.subr.mxu0 0.0
    %2307 = vmatpush1.xpose.msra.mxu0 %v1152
    %2308 = vmatprep.subr.mxu0 0.0
    %2309 = vmatpush1.xpose.msra.mxu0 %v1153
    %2310 = vmatprep.subr.mxu0 0.0
    %2311 = vmatpush1.xpose.msra.mxu0 %v1154
    %2312 = vmatprep.subr.mxu0 0.0
    %2313 = vmatpush1.xpose.msra.mxu0 %v1155
    %2314 = vmatprep.subr.mxu0 0.0
    %2315 = vmatpush1.xpose.msra.mxu0 %v1156
    %2316 = vmatprep.subr.mxu0 0.0
    %2317 = vmatpush1.xpose.msra.mxu0 %v1157
    %2318 = vmatprep.subr.mxu0 0.0
    %2319 = vmatpush1.xpose.msra.mxu0 %v1158
    %2320 = vmatprep.subr.mxu0 0.0
    %2321 = vmatpush1.xpose.msra.mxu0 %v1159
    %2322 = vmatprep.subr.mxu0 0.0
    %2323 = vmatpush1.xpose.msra.mxu0 %v1160
    %2324 = vmatprep.subr.mxu0 0.0
    %2325 = vmatpush1.xpose.msra.mxu0 %v1161
    %2326 = vmatprep.subr.mxu0 0.0
    %2327 = vmatpush1.xpose.msra.mxu0 0.0
    %2328 = vmatprep.subr.mxu0 0.0
    %2329 = vmatpush1.xpose.msra.mxu0 0.0
    %2330 = vmatprep.subr.mxu0 0.0
    %2331 = vmatpush1.xpose.msra.mxu0 0.0
    %2332 = vmatprep.subr.mxu0 0.0
    %2333 = vmatpush1.xpose.msra.mxu0 0.0
    %2334 = vmatprep.subr.mxu0 0.0
    %2335 = vmatpush1.xpose.msra.mxu0 0.0
    %2336 = vmatprep.subr.mxu0 0.0
    %2337 = vmatpush1.xpose.msra.mxu0 0.0
    %2338 = vmatprep.subr.mxu0 0.0
    %2339 = vmatpush1.xpose.msra.mxu0 0.0
    %2340 = vmatprep.subr.mxu0 0.0
    %2341 = vmatpush1.xpose.msra.mxu0 0.0
    %2342 = vmatprep.subr.mxu0 0.0
    %2343 = vmatpush1.xpose.msra.mxu0 0.0
    %2344 = vmatprep.subr.mxu0 0.0
    %2345 = vmatpush1.xpose.msra.mxu0 0.0
    %2346 = vmatprep.subr.mxu0 0.0
    %2347 = vmatpush1.xpose.msra.mxu0 0.0
    %2348 = vmatprep.subr.mxu0 0.0
    %2349 = vmatpush1.xpose.msra.mxu0 0.0
    %2350 = vmatprep.subr.mxu0 0.0
    %2351 = vmatpush1.xpose.msra.mxu0 0.0
    %2352 = vmatprep.subr.mxu0 0.0
    %2353 = vmatpush1.xpose.msra.mxu0 0.0
    %2354 = vmatprep.subr.mxu0 0.0
    %2355 = vmatpush1.xpose.msra.mxu0 0.0
    %2356 = vmatprep.subr.mxu0 0.0
    %2357 = vmatpush1.xpose.msra.mxu0 0.0
    %2358 = vmatprep.mubr.f32.mxu0 0.0
    %2359 = vmatmul.mubr.f32.gmra.mrb[0].mxu0 %v2217
    %v2360 = vpop.f32.mrb[0].mxu0
    %v2361 = vadd.f32 0.0, %v2360
    %v2362 = vpop.f32.mrb[0].mxu0
    %2363 = vdwg.mxu0
    %2364 = vmatprep.subr.mxu0 0.0
    %2365 = vmatpush1.xpose.msra.mxu0 %v1162
    %2366 = vmatprep.subr.mxu0 0.0
    %2367 = vmatpush1.xpose.msra.mxu0 %v1163
    %2368 = vmatprep.subr.mxu0 0.0
    %2369 = vmatpush1.xpose.msra.mxu0 %v1164
    %2370 = vmatprep.subr.mxu0 0.0
    %2371 = vmatpush1.xpose.msra.mxu0 %v1165
    %2372 = vmatprep.subr.mxu0 0.0
    %2373 = vmatpush1.xpose.msra.mxu0 %v1166
    %2374 = vmatprep.subr.mxu0 0.0
    %2375 = vmatpush1.xpose.msra.mxu0 %v1167
    %2376 = vmatprep.subr.mxu0 0.0
    %2377 = vmatpush1.xpose.msra.mxu0 %v1168
    %2378 = vmatprep.subr.mxu0 0.0
    %2379 = vmatpush1.xpose.msra.mxu0 %v1169
    %2380 = vmatprep.subr.mxu0 0.0
    %2381 = vmatpush1.xpose.msra.mxu0 %v1170
    %2382 = vmatprep.subr.mxu0 0.0
    %2383 = vmatpush1.xpose.msra.mxu0 %v1171
    %2384 = vmatprep.subr.mxu0 0.0
    %2385 = vmatpush1.xpose.msra.mxu0 %v1172
    %2386 = vmatprep.subr.mxu0 0.0
    %2387 = vmatpush1.xpose.msra.mxu0 %v1173
    %2388 = vmatprep.subr.mxu0 0.0
    %2389 = vmatpush1.xpose.msra.mxu0 %v1174
    %2390 = vmatprep.subr.mxu0 0.0
    %2391 = vmatpush1.xpose.msra.mxu0 %v1175
    %2392 = vmatprep.subr.mxu0 0.0
    %2393 = vmatpush1.xpose.msra.mxu0 %v1176
    %2394 = vmatprep.subr.mxu0 0.0
    %2395 = vmatpush1.xpose.msra.mxu0 %v1177
    %2396 = vmatprep.subr.mxu0 0.0
    %2397 = vmatpush1.xpose.msra.mxu0 0.0
    %2398 = vmatprep.subr.mxu0 0.0
    %2399 = vmatpush1.xpose.msra.mxu0 0.0
    %2400 = vmatprep.subr.mxu0 0.0
    %2401 = vmatpush1.xpose.msra.mxu0 0.0
    %2402 = vmatprep.subr.mxu0 0.0
    %2403 = vmatpush1.xpose.msra.mxu0 0.0
    %2404 = vmatprep.subr.mxu0 0.0
    %2405 = vmatpush1.xpose.msra.mxu0 0.0
    %2406 = vmatprep.subr.mxu0 0.0
    %2407 = vmatpush1.xpose.msra.mxu0 0.0
    %2408 = vmatprep.subr.mxu0 0.0
    %2409 = vmatpush1.xpose.msra.mxu0 0.0
    %2410 = vmatprep.subr.mxu0 0.0
    %2411 = vmatpush1.xpose.msra.mxu0 0.0
    %2412 = vmatprep.subr.mxu0 0.0
    %2413 = vmatpush1.xpose.msra.mxu0 0.0
    %2414 = vmatprep.subr.mxu0 0.0
    %2415 = vmatpush1.xpose.msra.mxu0 0.0
    %2416 = vmatprep.subr.mxu0 0.0
    %2417 = vmatpush1.xpose.msra.mxu0 0.0
    %2418 = vmatprep.subr.mxu0 0.0
    %2419 = vmatpush1.xpose.msra.mxu0 0.0
    %2420 = vmatprep.subr.mxu0 0.0
    %2421 = vmatpush1.xpose.msra.mxu0 0.0
    %2422 = vmatprep.subr.mxu0 0.0
    %2423 = vmatpush1.xpose.msra.mxu0 0.0
    %2424 = vmatprep.subr.mxu0 0.0
    %2425 = vmatpush1.xpose.msra.mxu0 0.0
    %2426 = vmatprep.subr.mxu0 0.0
    %2427 = vmatpush1.xpose.msra.mxu0 0.0
    %2428 = vmatprep.mubr.f32.mxu0 0.0
    %2429 = vmatmul.mubr.f32.gmra.mrb[0].mxu0 %v2218
    %v2430 = vpop.f32.mrb[0].mxu0
    %v2431 = vadd.f32 0.0, %v2430
    %v2432 = vpop.f32.mrb[0].mxu0
    %2433 = vdwg.mxu0
    %2434 = vmatprep.subr.mxu0 0.0
    %2435 = vmatpush1.xpose.msra.mxu0 %v1178
    %2436 = vmatprep.subr.mxu0 0.0
    %2437 = vmatpush1.xpose.msra.mxu0 %v1179
    %2438 = vmatprep.subr.mxu0 0.0
    %2439 = vmatpush1.xpose.msra.mxu0 %v1180
    %2440 = vmatprep.subr.mxu0 0.0
    %2441 = vmatpush1.xpose.msra.mxu0 %v1181
    %2442 = vmatprep.subr.mxu0 0.0
    %2443 = vmatpush1.xpose.msra.mxu0 %v1182
    %2444 = vmatprep.subr.mxu0 0.0
    %2445 = vmatpush1.xpose.msra.mxu0 %v1183
    %2446 = vmatprep.subr.mxu0 0.0
    %2447 = vmatpush1.xpose.msra.mxu0 %v1184
    %2448 = vmatprep.subr.mxu0 0.0
    %2449 = vmatpush1.xpose.msra.mxu0 %v1185
    %2450 = vmatprep.subr.mxu0 0.0
    %2451 = vmatpush1.xpose.msra.mxu0 %v1186
    %2452 = vmatprep.subr.mxu0 0.0
    %2453 = vmatpush1.xpose.msra.mxu0 %v1187
    %2454 = vmatprep.subr.mxu0 0.0
    %2455 = vmatpush1.xpose.msra.mxu0 %v1188
    %2456 = vmatprep.subr.mxu0 0.0
    %2457 = vmatpush1.xpose.msra.mxu0 %v1189
    %2458 = vmatprep.subr.mxu0 0.0
    %2459 = vmatpush1.xpose.msra.mxu0 %v1190
    %2460 = vmatprep.subr.mxu0 0.0
    %2461 = vmatpush1.xpose.msra.mxu0 %v1191
    %2462 = vmatprep.subr.mxu0 0.0
    %2463 = vmatpush1.xpose.msra.mxu0 %v1192
    %2464 = vmatprep.subr.mxu0 0.0
    %2465 = vmatpush1.xpose.msra.mxu0 %v1193
    %2466 = vmatprep.subr.mxu0 0.0
    %2467 = vmatpush1.xpose.msra.mxu0 0.0
    %2468 = vmatprep.subr.mxu0 0.0
    %2469 = vmatpush1.xpose.msra.mxu0 0.0
    %2470 = vmatprep.subr.mxu0 0.0
    %2471 = vmatpush1.xpose.msra.mxu0 0.0
    %2472 = vmatprep.subr.mxu0 0.0
    %2473 = vmatpush1.xpose.msra.mxu0 0.0
    %2474 = vmatprep.subr.mxu0 0.0
    %2475 = vmatpush1.xpose.msra.mxu0 0.0
    %2476 = vmatprep.subr.mxu0 0.0
    %2477 = vmatpush1.xpose.msra.mxu0 0.0
    %2478 = vmatprep.subr.mxu0 0.0
    %2479 = vmatpush1.xpose.msra.mxu0 0.0
    %2480 = vmatprep.subr.mxu0 0.0
    %2481 = vmatpush1.xpose.msra.mxu0 0.0
    %2482 = vmatprep.subr.mxu0 0.0
    %2483 = vmatpush1.xpose.msra.mxu0 0.0
    %2484 = vmatprep.subr.mxu0 0.0
    %2485 = vmatpush1.xpose.msra.mxu0 0.0
    %2486 = vmatprep.subr.mxu0 0.0
    %2487 = vmatpush1.xpose.msra.mxu0 0.0
    %2488 = vmatprep.subr.mxu0 0.0
    %2489 = vmatpush1.xpose.msra.mxu0 0.0
    %2490 = vmatprep.subr.mxu0 0.0
    %2491 = vmatpush1.xpose.msra.mxu0 0.0
    %2492 = vmatprep.subr.mxu0 0.0
    %2493 = vmatpush1.xpose.msra.mxu0 0.0
    %2494 = vmatprep.subr.mxu0 0.0
    %2495 = vmatpush1.xpose.msra.mxu0 0.0
    %2496 = vmatprep.subr.mxu0 0.0
    %2497 = vmatpush1.xpose.msra.mxu0 0.0
    %2498 = vmatprep.mubr.f32.mxu0 0.0
    %2499 = vmatmul.mubr.f32.gmra.mrb[0].mxu0 %v2219
    %v2500 = vpop.f32.mrb[0].mxu0
    %v2501 = vadd.f32 0.0, %v2500
    %v2502 = vpop.f32.mrb[0].mxu0
    %2503 = vdwg.mxu0
    %2504 = vmatprep.subr.mxu0 0.0
    %2505 = vmatpush1.xpose.msra.mxu0 %v1194
    %2506 = vmatprep.subr.mxu0 0.0
    %2507 = vmatpush1.xpose.msra.mxu0 %v1195
    %2508 = vmatprep.subr.mxu0 0.0
    %2509 = vmatpush1.xpose.msra.mxu0 %v1196
    %2510 = vmatprep.subr.mxu0 0.0
    %2511 = vmatpush1.xpose.msra.mxu0 %v1197
    %2512 = vmatprep.subr.mxu0 0.0
    %2513 = vmatpush1.xpose.msra.mxu0 %v1198
    %2514 = vmatprep.subr.mxu0 0.0
    %2515 = vmatpush1.xpose.msra.mxu0 %v1199
    %2516 = vmatprep.subr.mxu0 0.0
    %2517 = vmatpush1.xpose.msra.mxu0 %v1200
    %2518 = vmatprep.subr.mxu0 0.0
    %2519 = vmatpush1.xpose.msra.mxu0 %v1201
    %2520 = vmatprep.subr.mxu0 0.0
    %2521 = vmatpush1.xpose.msra.mxu0 %v1202
    %2522 = vmatprep.subr.mxu0 0.0
    %2523 = vmatpush1.xpose.msra.mxu0 %v1203
    %2524 = vmatprep.subr.mxu0 0.0
    %2525 = vmatpush1.xpose.msra.mxu0 %v1204
    %2526 = vmatprep.subr.mxu0 0.0
    %2527 = vmatpush1.xpose.msra.mxu0 %v1205
    %2528 = vmatprep.subr.mxu0 0.0
    %2529 = vmatpush1.xpose.msra.mxu0 %v1206
    %2530 = vmatprep.subr.mxu0 0.0
    %2531 = vmatpush1.xpose.msra.mxu0 %v1207
    %2532 = vmatprep.subr.mxu0 0.0
    %2533 = vmatpush1.xpose.msra.mxu0 %v1208
    %2534 = vmatprep.subr.mxu0 0.0
    %2535 = vmatpush1.xpose.msra.mxu0 %v1209
    %2536 = vmatprep.subr.mxu0 0.0
    %2537 = vmatpush1.xpose.msra.mxu0 0.0
    %2538 = vmatprep.subr.mxu0 0.0
    %2539 = vmatpush1.xpose.msra.mxu0 0.0
    %2540 = vmatprep.subr.mxu0 0.0
    %2541 = vmatpush1.xpose.msra.mxu0 0.0
    %2542 = vmatprep.subr.mxu0 0.0
    %2543 = vmatpush1.xpose.msra.mxu0 0.0
    %2544 = vmatprep.subr.mxu0 0.0
    %2545 = vmatpush1.xpose.msra.mxu0 0.0
    %2546 = vmatprep.subr.mxu0 0.0
    %2547 = vmatpush1.xpose.msra.mxu0 0.0
    %2548 = vmatprep.subr.mxu0 0.0
    %2549 = vmatpush1.xpose.msra.mxu0 0.0
    %2550 = vmatprep.subr.mxu0 0.0
    %2551 = vmatpush1.xpose.msra.mxu0 0.0
    %2552 = vmatprep.subr.mxu0 0.0
    %2553 = vmatpush1.xpose.msra.mxu0 0.0
    %2554 = vmatprep.subr.mxu0 0.0
    %2555 = vmatpush1.xpose.msra.mxu0 0.0
    %2556 = vmatprep.subr.mxu0 0.0
    %2557 = vmatpush1.xpose.msra.mxu0 0.0
    %2558 = vmatprep.subr.mxu0 0.0
    %2559 = vmatpush1.xpose.msra.mxu0 0.0
    %2560 = vmatprep.subr.mxu0 0.0
    %2561 = vmatpush1.xpose.msra.mxu0 0.0
    %2562 = vmatprep.subr.mxu0 0.0
    %2563 = vmatpush1.xpose.msra.mxu0 0.0
    %2564 = vmatprep.subr.mxu0 0.0
    %2565 = vmatpush1.xpose.msra.mxu0 0.0
    %2566 = vmatprep.subr.mxu0 0.0
    %2567 = vmatpush1.xpose.msra.mxu0 0.0
    %2568 = vmatprep.mubr.f32.mxu0 0.0
    %2569 = vmatmul.mubr.f32.gmra.mrb[0].mxu0 %v2220
    %v2570 = vpop.f32.mrb[0].mxu0
    %v2571 = vadd.f32 0.0, %v2570
    %v2572 = vpop.f32.mrb[0].mxu0
    %2573 = vdwg.mxu0
    %2574 = vmatprep.subr.mxu0 0.0
    %2575 = vmatpush1.xpose.msra.mxu0 %v1210
    %2576 = vmatprep.subr.mxu0 0.0
    %2577 = vmatpush1.xpose.msra.mxu0 %v1211
    %2578 = vmatprep.subr.mxu0 0.0
    %2579 = vmatpush1.xpose.msra.mxu0 %v1212
    %2580 = vmatprep.subr.mxu0 0.0
    %2581 = vmatpush1.xpose.msra.mxu0 %v1213
    %2582 = vmatprep.subr.mxu0 0.0
    %2583 = vmatpush1.xpose.msra.mxu0 %v1214
    %2584 = vmatprep.subr.mxu0 0.0
    %2585 = vmatpush1.xpose.msra.mxu0 %v1215
    %2586 = vmatprep.subr.mxu0 0.0
    %2587 = vmatpush1.xpose.msra.mxu0 %v1216
    %2588 = vmatprep.subr.mxu0 0.0
    %2589 = vmatpush1.xpose.msra.mxu0 %v1217
    %2590 = vmatprep.subr.mxu0 0.0
    %2591 = vmatpush1.xpose.msra.mxu0 %v1218
    %2592 = vmatprep.subr.mxu0 0.0
    %2593 = vmatpush1.xpose.msra.mxu0 %v1219
    %2594 = vmatprep.subr.mxu0 0.0
    %2595 = vmatpush1.xpose.msra.mxu0 %v1220
    %2596 = vmatprep.subr.mxu0 0.0
    %2597 = vmatpush1.xpose.msra.mxu0 %v1221
    %2598 = vmatprep.subr.mxu0 0.0
    %2599 = vmatpush1.xpose.msra.mxu0 %v1222
    %2600 = vmatprep.subr.mxu0 0.0
    %2601 = vmatpush1.xpose.msra.mxu0 %v1223
    %2602 = vmatprep.subr.mxu0 0.0
    %2603 = vmatpush1.xpose.msra.mxu0 %v1224
    %2604 = vmatprep.subr.mxu0 0.0
    %2605 = vmatpush1.xpose.msra.mxu0 %v1225
    %2606 = vmatprep.subr.mxu0 0.0
    %2607 = vmatpush1.xpose.msra.mxu0 0.0
    %2608 = vmatprep.subr.mxu0 0.0
    %2609 = vmatpush1.xpose.msra.mxu0 0.0
    %2610 = vmatprep.subr.mxu0 0.0
    %2611 = vmatpush1.xpose.msra.mxu0 0.0
    %2612 = vmatprep.subr.mxu0 0.0
    %2613 = vmatpush1.xpose.msra.mxu0 0.0
    %2614 = vmatprep.subr.mxu0 0.0
    %2615 = vmatpush1.xpose.msra.mxu0 0.0
    %2616 = vmatprep.subr.mxu0 0.0
    %2617 = vmatpush1.xpose.msra.mxu0 0.0
    %2618 = vmatprep.subr.mxu0 0.0
    %2619 = vmatpush1.xpose.msra.mxu0 0.0
    %2620 = vmatprep.subr.mxu0 0.0
    %2621 = vmatpush1.xpose.msra.mxu0 0.0
    %2622 = vmatprep.subr.mxu0 0.0
    %2623 = vmatpush1.xpose.msra.mxu0 0.0
    %2624 = vmatprep.subr.mxu0 0.0
    %2625 = vmatpush1.xpose.msra.mxu0 0.0
    %2626 = vmatprep.subr.mxu0 0.0
    %2627 = vmatpush1.xpose.msra.mxu0 0.0
    %2628 = vmatprep.subr.mxu0 0.0
    %2629 = vmatpush1.xpose.msra.mxu0 0.0
    %2630 = vmatprep.subr.mxu0 0.0
    %2631 = vmatpush1.xpose.msra.mxu0 0.0
    %2632 = vmatprep.subr.mxu0 0.0
    %2633 = vmatpush1.xpose.msra.mxu0 0.0
    %2634 = vmatprep.subr.mxu0 0.0
    %2635 = vmatpush1.xpose.msra.mxu0 0.0
    %2636 = vmatprep.subr.mxu0 0.0
    %2637 = vmatpush1.xpose.msra.mxu0 0.0
    %2638 = vmatprep.mubr.f32.mxu0 0.0
    %2639 = vmatmul.mubr.f32.gmra.mrb[0].mxu0 %v2221
    %v2640 = vpop.f32.mrb[0].mxu0
    %v2641 = vadd.f32 0.0, %v2640
    %v2642 = vpop.f32.mrb[0].mxu0
    %2643 = vdwg.mxu0
    %2644 = vmatprep.subr.mxu0 0.0
    %2645 = vmatpush1.xpose.msra.mxu0 %v1226
    %2646 = vmatprep.subr.mxu0 0.0
    %2647 = vmatpush1.xpose.msra.mxu0 %v1227
    %2648 = vmatprep.subr.mxu0 0.0
    %2649 = vmatpush1.xpose.msra.mxu0 %v1228
    %2650 = vmatprep.subr.mxu0 0.0
    %2651 = vmatpush1.xpose.msra.mxu0 %v1229
    %2652 = vmatprep.subr.mxu0 0.0
    %2653 = vmatpush1.xpose.msra.mxu0 %v1230
    %2654 = vmatprep.subr.mxu0 0.0
    %2655 = vmatpush1.xpose.msra.mxu0 %v1231
    %2656 = vmatprep.subr.mxu0 0.0
    %2657 = vmatpush1.xpose.msra.mxu0 %v1232
    %2658 = vmatprep.subr.mxu0 0.0
    %2659 = vmatpush1.xpose.msra.mxu0 %v1233
    %2660 = vmatprep.subr.mxu0 0.0
    %2661 = vmatpush1.xpose.msra.mxu0 %v1234
    %2662 = vmatprep.subr.mxu0 0.0
    %2663 = vmatpush1.xpose.msra.mxu0 %v1235
    %2664 = vmatprep.subr.mxu0 0.0
    %2665 = vmatpush1.xpose.msra.mxu0 %v1236
    %2666 = vmatprep.subr.mxu0 0.0
    %2667 = vmatpush1.xpose.msra.mxu0 %v1237
    %2668 = vmatprep.subr.mxu0 0.0
    %2669 = vmatpush1.xpose.msra.mxu0 %v1238
    %2670 = vmatprep.subr.mxu0 0.0
    %2671 = vmatpush1.xpose.msra.mxu0 %v1239
    %2672 = vmatprep.subr.mxu0 0.0
    %2673 = vmatpush1.xpose.msra.mxu0 %v1240
    %2674 = vmatprep.subr.mxu0 0.0
    %2675 = vmatpush1.xpose.msra.mxu0 %v1241
    %2676 = vmatprep.subr.mxu0 0.0
    %2677 = vmatpush1.xpose.msra.mxu0 0.0
    %2678 = vmatprep.subr.mxu0 0.0
    %2679 = vmatpush1.xpose.msra.mxu0 0.0
    %2680 = vmatprep.subr.mxu0 0.0
    %2681 = vmatpush1.xpose.msra.mxu0 0.0
    %2682 = vmatprep.subr.mxu0 0.0
    %2683 = vmatpush1.xpose.msra.mxu0 0.0
    %2684 = vmatprep.subr.mxu0 0.0
    %2685 = vmatpush1.xpose.msra.mxu0 0.0
    %2686 = vmatprep.subr.mxu0 0.0
    %2687 = vmatpush1.xpose.msra.mxu0 0.0
    %2688 = vmatprep.subr.mxu0 0.0
    %2689 = vmatpush1.xpose.msra.mxu0 0.0
    %2690 = vmatprep.subr.mxu0 0.0
    %2691 = vmatpush1.xpose.msra.mxu0 0.0
    %2692 = vmatprep.subr.mxu0 0.0
    %2693 = vmatpush1.xpose.msra.mxu0 0.0
    %2694 = vmatprep.subr.mxu0 0.0
    %2695 = vmatpush1.xpose.msra.mxu0 0.0
    %2696 = vmatprep.subr.mxu0 0.0
    %2697 = vmatpush1.xpose.msra.mxu0 0.0
    %2698 = vmatprep.subr.mxu0 0.0
    %2699 = vmatpush1.xpose.msra.mxu0 0.0
    %2700 = vmatprep.subr.mxu0 0.0
    %2701 = vmatpush1.xpose.msra.mxu0 0.0
    %2702 = vmatprep.subr.mxu0 0.0
    %2703 = vmatpush1.xpose.msra.mxu0 0.0
    %2704 = vmatprep.subr.mxu0 0.0
    %2705 = vmatpush1.xpose.msra.mxu0 0.0
    %2706 = vmatprep.subr.mxu0 0.0
    %2707 = vmatpush1.xpose.msra.mxu0 0.0
    %2708 = vmatprep.mubr.f32.mxu0 0.0
    %2709 = vmatmul.mubr.f32.gmra.mrb[0].mxu0 %v2222
    %v2710 = vpop.f32.mrb[0].mxu0
    %v2711 = vadd.f32 0.0, %v2710
    %v2712 = vpop.f32.mrb[0].mxu0
    %2713 = vdwg.mxu0
    %2714 = vmatprep.subr.mxu0 0.0
    %2715 = vmatpush1.xpose.msra.mxu0 %v1242
    %2716 = vmatprep.subr.mxu0 0.0
    %2717 = vmatpush1.xpose.msra.mxu0 %v1243
    %2718 = vmatprep.subr.mxu0 0.0
    %2719 = vmatpush1.xpose.msra.mxu0 %v1244
    %2720 = vmatprep.subr.mxu0 0.0
    %2721 = vmatpush1.xpose.msra.mxu0 %v1245
    %2722 = vmatprep.subr.mxu0 0.0
    %2723 = vmatpush1.xpose.msra.mxu0 %v1246
    %2724 = vmatprep.subr.mxu0 0.0
    %2725 = vmatpush1.xpose.msra.mxu0 %v1247
    %2726 = vmatprep.subr.mxu0 0.0
    %2727 = vmatpush1.xpose.msra.mxu0 %v1248
    %2728 = vmatprep.subr.mxu0 0.0
    %2729 = vmatpush1.xpose.msra.mxu0 %v1249
    %2730 = vmatprep.subr.mxu0 0.0
    %2731 = vmatpush1.xpose.msra.mxu0 %v1250
    %2732 = vmatprep.subr.mxu0 0.0
    %2733 = vmatpush1.xpose.msra.mxu0 %v1251
    %2734 = vmatprep.subr.mxu0 0.0
    %2735 = vmatpush1.xpose.msra.mxu0 %v1252
    %2736 = vmatprep.subr.mxu0 0.0
    %2737 = vmatpush1.xpose.msra.mxu0 %v1253
    %2738 = vmatprep.subr.mxu0 0.0
    %2739 = vmatpush1.xpose.msra.mxu0 %v1254
    %2740 = vmatprep.subr.mxu0 0.0
    %2741 = vmatpush1.xpose.msra.mxu0 %v1255
    %2742 = vmatprep.subr.mxu0 0.0
    %2743 = vmatpush1.xpose.msra.mxu0 %v1256
    %2744 = vmatprep.subr.mxu0 0.0
    %2745 = vmatpush1.xpose.msra.mxu0 %v1257
    %2746 = vmatprep.subr.mxu0 0.0
    %2747 = vmatpush1.xpose.msra.mxu0 0.0
    %2748 = vmatprep.subr.mxu0 0.0
    %2749 = vmatpush1.xpose.msra.mxu0 0.0
    %2750 = vmatprep.subr.mxu0 0.0
    %2751 = vmatpush1.xpose.msra.mxu0 0.0
    %2752 = vmatprep.subr.mxu0 0.0
    %2753 = vmatpush1.xpose.msra.mxu0 0.0
    %2754 = vmatprep.subr.mxu0 0.0
    %2755 = vmatpush1.xpose.msra.mxu0 0.0
    %2756 = vmatprep.subr.mxu0 0.0
    %2757 = vmatpush1.xpose.msra.mxu0 0.0
    %2758 = vmatprep.subr.mxu0 0.0
    %2759 = vmatpush1.xpose.msra.mxu0 0.0
    %2760 = vmatprep.subr.mxu0 0.0
    %2761 = vmatpush1.xpose.msra.mxu0 0.0
    %2762 = vmatprep.subr.mxu0 0.0
    %2763 = vmatpush1.xpose.msra.mxu0 0.0
    %2764 = vmatprep.subr.mxu0 0.0
    %2765 = vmatpush1.xpose.msra.mxu0 0.0
    %2766 = vmatprep.subr.mxu0 0.0
    %2767 = vmatpush1.xpose.msra.mxu0 0.0
    %2768 = vmatprep.subr.mxu0 0.0
    %2769 = vmatpush1.xpose.msra.mxu0 0.0
    %2770 = vmatprep.subr.mxu0 0.0
    %2771 = vmatpush1.xpose.msra.mxu0 0.0
    %2772 = vmatprep.subr.mxu0 0.0
    %2773 = vmatpush1.xpose.msra.mxu0 0.0
    %2774 = vmatprep.subr.mxu0 0.0
    %2775 = vmatpush1.xpose.msra.mxu0 0.0
    %2776 = vmatprep.subr.mxu0 0.0
    %2777 = vmatpush1.xpose.msra.mxu0 0.0
    %2778 = vmatprep.mubr.f32.mxu0 0.0
    %2779 = vmatmul.mubr.f32.gmra.mrb[0].mxu0 %v2223
    %v2780 = vpop.f32.mrb[0].mxu0
    %v2781 = vadd.f32 0.0, %v2780
    %v2782 = vpop.f32.mrb[0].mxu0
    %2783 = vdwg.mxu0
    %v2784 = vld [vmem:[#allocation7] sm:$0xff]
    %v2785 = vcombine.high %v2784, %v2784
    %v2787 = vunpack.c.l.s4 1966171168
    %v2788 = vunpack.c.0.s8 %v2787
    %v2789 = vlaneseq
    %v2790 = vshrl.u32 %v2789, 7
    %v2791 = vsub.s32 %v2788, %v2790
    %v2792 = vrot.slane %v2784, %v2791
    %v2794 = vunpack.c.l.s4 1966171168
    %v2795 = vunpack.c.0.s8 %v2794
    %v2796 = vlaneseq
    %v2797 = vshrl.u32 %v2796, 7
    %v2798 = vsub.s32 %v2795, %v2797
    %v2799 = vrot.slane %v2785, %v2798
    %v2800 = vcombine.high %v2792, %v2792
    %v2801 = vcombine.high %v2799, %v2799
    %v2803 = vunpack.c.l.s4 1966171168
    %v2804 = vunpack.c.0.s8 %v2803
    %v2805 = vlaneseq
    %v2806 = vshrl.u32 %v2805, 7
    %v2807 = vsub.s32 %v2804, %v2806
    %v2808 = vrot.slane %v2792, %v2807
    %v2810 = vunpack.c.l.s4 1966171168
    %v2811 = vunpack.c.0.s8 %v2810
    %v2812 = vlaneseq
    %v2813 = vshrl.u32 %v2812, 7
    %v2814 = vsub.s32 %v2811, %v2813
    %v2815 = vrot.slane %v2799, %v2814
    %v2817 = vunpack.c.l.s4 1966171168
    %v2818 = vunpack.c.0.s8 %v2817
    %v2819 = vlaneseq
    %v2820 = vshrl.u32 %v2819, 7
    %v2821 = vsub.s32 %v2818, %v2820
    %v2822 = vrot.slane %v2800, %v2821
    %v2824 = vunpack.c.l.s4 1966171168
    %v2825 = vunpack.c.0.s8 %v2824
    %v2826 = vlaneseq
    %v2827 = vshrl.u32 %v2826, 7
    %v2828 = vsub.s32 %v2825, %v2827
    %v2829 = vrot.slane %v2801, %v2828
    %v2830 = vcombine.high %v2808, %v2808
    %v2831 = vcombine.high %v2815, %v2815
    %v2832 = vcombine.high %v2822, %v2822
    %v2833 = vcombine.high %v2829, %v2829
    %v2834 = vlaneseq
    %v2835 = vshrl.u32 %v2834, 7
    %v2836 = vsub.s32 0, %v2835
    %v2837 = vrot.slane %v2808, %v2836
    %v2838 = vlaneseq
    %v2839 = vshrl.u32 %v2838, 7
    %v2840 = vsub.s32 0, %v2839
    %v2841 = vrot.slane %v2822, %v2840
    %v2842 = vlaneseq
    %v2843 = vshrl.u32 %v2842, 7
    %v2844 = vsub.s32 0, %v2843
    %v2845 = vrot.slane %v2830, %v2844
    %v2846 = vlaneseq
    %v2847 = vshrl.u32 %v2846, 7
    %v2848 = vsub.s32 0, %v2847
    %v2849 = vrot.slane %v2832, %v2848
    %v2850 = vlaneseq
    %v2851 = vshrl.u32 %v2850, 7
    %v2852 = vsub.s32 0, %v2851
    %v2853 = vrot.slane %v2815, %v2852
    %v2854 = vlaneseq
    %v2855 = vshrl.u32 %v2854, 7
    %v2856 = vsub.s32 0, %v2855
    %v2857 = vrot.slane %v2829, %v2856
    %v2858 = vlaneseq
    %v2859 = vshrl.u32 %v2858, 7
    %v2860 = vsub.s32 0, %v2859
    %v2861 = vrot.slane %v2831, %v2860
    %v2862 = vlaneseq
    %v2863 = vshrl.u32 %v2862, 7
    %v2864 = vsub.s32 0, %v2863
    %v2865 = vrot.slane %v2833, %v2864
    %2866 = vset.pattern.permute.xlu0 0
    %2867 = vperm.xlu0 %2866, %v2837
    %v2868 = vpop.permute.xlu0 %2867
    %2869 = vset.pattern.permute.xlu0 0
    %2870 = vperm.xlu0 %2869, %v2841
    %v2871 = vpop.permute.xlu0 %2870
    %2872 = vset.pattern.permute.xlu0 0
    %2873 = vperm.xlu0 %2872, %v2845
    %v2874 = vpop.permute.xlu0 %2873
    %2875 = vset.pattern.permute.xlu0 0
    %2876 = vperm.xlu0 %2875, %v2849
    %v2877 = vpop.permute.xlu0 %2876
    %2878 = vset.pattern.permute.xlu0 0
    %2879 = vperm.xlu0 %2878, %v2853
    %v2880 = vpop.permute.xlu0 %2879
    %2881 = vset.pattern.permute.xlu0 0
    %2882 = vperm.xlu0 %2881, %v2857
    %v2883 = vpop.permute.xlu0 %2882
    %2884 = vset.pattern.permute.xlu0 0
    %2885 = vperm.xlu0 %2884, %v2861
    %v2886 = vpop.permute.xlu0 %2885
    %2887 = vset.pattern.permute.xlu0 0
    %2888 = vperm.xlu0 %2887, %v2865
    %v2889 = vpop.permute.xlu0 %2888
    %vm2890 = vcmp.lt.s32.totalorder %v2116, %v2868
    %vm2891 = vcmp.lt.s32.totalorder %v2116, %v2871
    %vm2892 = vcmp.lt.s32.totalorder %v2116, %v2874
    %vm2893 = vcmp.lt.s32.totalorder %v2116, %v2877
    %vm2894 = vcmp.lt.s32.totalorder %v2116, %v2880
    %vm2895 = vcmp.lt.s32.totalorder %v2116, %v2883
    %vm2896 = vcmp.lt.s32.totalorder %v2116, %v2886
    %vm2897 = vcmp.lt.s32.totalorder %v2116, %v2889
    %v2898 = vsel %vm2890, %v2291, -1e+30
    %v2899 = vsel %vm2891, %v2361, -1e+30
    %v2900 = vsel %vm2892, %v2431, -1e+30
    %v2901 = vsel %vm2893, %v2501, -1e+30
    %v2902 = vsel %vm2894, %v2571, -1e+30
    %v2903 = vsel %vm2895, %v2641, -1e+30
    %v2904 = vsel %vm2896, %v2711, -1e+30
    %v2905 = vsel %vm2897, %v2781, -1e+30
    %vm2906 = vcmask 1041408
    %v2907 = vsel %vm2906, %v2898, -inf
    %2908 = vmax.xlane.f32.xlu0 %v2907
    %v2909 = vpop.xlane.xlu0 %2908
    %v2910 = vsel %vm2906, %v2899, -inf
    %2911 = vmax.xlane.f32.xlu0 %v2910
    %v2912 = vpop.xlane.xlu0 %2911
    %v2913 = vsel %vm2906, %v2900, -inf
    %2914 = vmax.xlane.f32.xlu0 %v2913
    %v2915 = vpop.xlane.xlu0 %2914
    %v2916 = vsel %vm2906, %v2901, -inf
    %2917 = vmax.xlane.f32.xlu0 %v2916
    %v2918 = vpop.xlane.xlu0 %2917
    %v2919 = vsel %vm2906, %v2902, -inf
    %2920 = vmax.xlane.f32.xlu0 %v2919
    %v2921 = vpop.xlane.xlu0 %2920
    %v2922 = vsel %vm2906, %v2903, -inf
    %2923 = vmax.xlane.f32.xlu0 %v2922
    %v2924 = vpop.xlane.xlu0 %2923
    %v2925 = vsel %vm2906, %v2904, -inf
    %2926 = vmax.xlane.f32.xlu0 %v2925
    %v2927 = vpop.xlane.xlu0 %2926
    %v2928 = vsel %vm2906, %v2905, -inf
    %2929 = vmax.xlane.f32.xlu0 %v2928
    %v2930 = vpop.xlane.xlu0 %2929
    %v2931 = vsub.f32 %v2898, %v2909
    %v2932 = vsub.f32 %v2899, %v2912
    %v2933 = vsub.f32 %v2900, %v2915
    %v2934 = vsub.f32 %v2901, %v2918
    %v2935 = vsub.f32 %v2902, %v2921
    %v2936 = vsub.f32 %v2903, %v2924
    %v2937 = vsub.f32 %v2904, %v2927
    %v2938 = vsub.f32 %v2905, %v2930
    %v2939 = vmul.f32 %v2931, 1.442695
    %v2940 = vpow.pop %v2939
    %v2941 = vmul.f32 %v2932, 1.442695
    %v2942 = vpow.pop %v2941
    %v2943 = vmul.f32 %v2933, 1.442695
    %v2944 = vpow.pop %v2943
    %v2945 = vmul.f32 %v2934, 1.442695
    %v2946 = vpow.pop %v2945
    %v2947 = vmul.f32 %v2935, 1.442695
    %v2948 = vpow.pop %v2947
    %v2949 = vmul.f32 %v2936, 1.442695
    %v2950 = vpow.pop %v2949
    %v2951 = vmul.f32 %v2937, 1.442695
    %v2952 = vpow.pop %v2951
    %v2953 = vmul.f32 %v2938, 1.442695
    %v2954 = vpow.pop %v2953
    %v2955 = vsel %vm2906, %v2940, 0.0
    %2956 = vadd.xlane.f32.xlu0 %v2955
    %v2957 = vpop.xlane.xlu0 %2956
    %v2958 = vsel %vm2906, %v2942, 0.0
    %2959 = vadd.xlane.f32.xlu0 %v2958
    %v2960 = vpop.xlane.xlu0 %2959
    %v2961 = vsel %vm2906, %v2944, 0.0
    %2962 = vadd.xlane.f32.xlu0 %v2961
    %v2963 = vpop.xlane.xlu0 %2962
    %v2964 = vsel %vm2906, %v2946, 0.0
    %2965 = vadd.xlane.f32.xlu0 %v2964
    %v2966 = vpop.xlane.xlu0 %2965
    %v2967 = vsel %vm2906, %v2948, 0.0
    %2968 = vadd.xlane.f32.xlu0 %v2967
    %v2969 = vpop.xlane.xlu0 %2968
    %v2970 = vsel %vm2906, %v2950, 0.0
    %2971 = vadd.xlane.f32.xlu0 %v2970
    %v2972 = vpop.xlane.xlu0 %2971
    %v2973 = vsel %vm2906, %v2952, 0.0
    %2974 = vadd.xlane.f32.xlu0 %v2973
    %v2975 = vpop.xlane.xlu0 %2974
    %v2976 = vsel %vm2906, %v2954, 0.0
    %2977 = vadd.xlane.f32.xlu0 %v2976
    %v2978 = vpop.xlane.xlu0 %2977
    %v2979 = vrcp.pop %v2957
    %v2980 = vrcp.pop %v2960
    %v2981 = vrcp.pop %v2963
    %v2982 = vrcp.pop %v2966
    %v2983 = vrcp.pop %v2969
    %v2984 = vrcp.pop %v2972
    %v2985 = vrcp.pop %v2975
    %v2986 = vrcp.pop %v2978
    %v2987 = vmul.f32 %v2940, %v2979
    %v2988 = vmul.f32 %v2942, %v2980
    %v2989 = vmul.f32 %v2944, %v2981
    %v2990 = vmul.f32 %v2946, %v2982
    %v2991 = vmul.f32 %v2948, %v2983
    %v2992 = vmul.f32 %v2950, %v2984
    %v2993 = vmul.f32 %v2952, %v2985
    %v2994 = vmul.f32 %v2954, %v2986
    %2995 = vmatprep.subr.mxu0 0.0
    %2996 = vmatpush1.msra.mxu0 %v1986
    %2997 = vmatprep.subr.mxu0 0.0
    %2998 = vmatpush1.msra.mxu0 %v1987
    %2999 = vmatprep.subr.mxu0 0.0
    %3000 = vmatpush1.msra.mxu0 %v1988
    %3001 = vmatprep.subr.mxu0 0.0
    %3002 = vmatpush1.msra.mxu0 %v1989
    %3003 = vmatprep.subr.mxu0 0.0
    %3004 = vmatpush1.msra.mxu0 %v1990
    %3005 = vmatprep.subr.mxu0 0.0
    %3006 = vmatpush1.msra.mxu0 %v1991
    %3007 = vmatprep.subr.mxu0 0.0
    %3008 = vmatpush1.msra.mxu0 %v1992
    %3009 = vmatprep.subr.mxu0 0.0
    %3010 = vmatpush1.msra.mxu0 %v1993
    %3011 = vmatprep.subr.mxu0 0.0
    %3012 = vmatpush1.msra.mxu0 %v1994
    %3013 = vmatprep.subr.mxu0 0.0
    %3014 = vmatpush1.msra.mxu0 %v1995
    %3015 = vmatprep.subr.mxu0 0.0
    %3016 = vmatpush1.msra.mxu0 %v1996
    %3017 = vmatprep.subr.mxu0 0.0
    %3018 = vmatpush1.msra.mxu0 %v1997
    %3019 = vmatprep.subr.mxu0 0.0
    %3020 = vmatpush1.msra.mxu0 %v1998
    %3021 = vmatprep.subr.mxu0 0.0
    %3022 = vmatpush1.msra.mxu0 %v1999
    %3023 = vmatprep.subr.mxu0 0.0
    %3024 = vmatpush1.msra.mxu0 %v2000
    %3025 = vmatprep.subr.mxu0 0.0
    %3026 = vmatpush1.msra.mxu0 %v2001
    %3027 = vmatprep.subr.mxu0 0.0
    %3028 = vmatpush1.msra.mxu0 0.0
    %3029 = vmatprep.subr.mxu0 0.0
    %3030 = vmatpush1.msra.mxu0 0.0
    %3031 = vmatprep.subr.mxu0 0.0
    %3032 = vmatpush1.msra.mxu0 0.0
    %3033 = vmatprep.subr.mxu0 0.0
    %3034 = vmatpush1.msra.mxu0 0.0
    %3035 = vmatprep.subr.mxu0 0.0
    %3036 = vmatpush1.msra.mxu0 0.0
    %3037 = vmatprep.subr.mxu0 0.0
    %3038 = vmatpush1.msra.mxu0 0.0
    %3039 = vmatprep.subr.mxu0 0.0
    %3040 = vmatpush1.msra.mxu0 0.0
    %3041 = vmatprep.subr.mxu0 0.0
    %3042 = vmatpush1.msra.mxu0 0.0
    %3043 = vmatprep.subr.mxu0 0.0
    %3044 = vmatpush1.msra.mxu0 0.0
    %3045 = vmatprep.subr.mxu0 0.0
    %3046 = vmatpush1.msra.mxu0 0.0
    %3047 = vmatprep.subr.mxu0 0.0
    %3048 = vmatpush1.msra.mxu0 0.0
    %3049 = vmatprep.subr.mxu0 0.0
    %3050 = vmatpush1.msra.mxu0 0.0
    %3051 = vmatprep.subr.mxu0 0.0
    %3052 = vmatpush1.msra.mxu0 0.0
    %3053 = vmatprep.subr.mxu0 0.0
    %3054 = vmatpush1.msra.mxu0 0.0
    %3055 = vmatprep.subr.mxu0 0.0
    %3056 = vmatpush1.msra.mxu0 0.0
    %3057 = vmatprep.subr.mxu0 0.0
    %3058 = vmatpush1.msra.mxu0 0.0
    %3059 = vmatprep.mubr.f32.mxu0 0.0
    %3060 = vmatmul.mubr.f32.gmra.mrb[0].mxu0 %v2987
    %v3061 = vpop.f32.mrb[0].mxu0
    %v3062 = vadd.f32 0.0, %v3061
    %v3063 = vpop.f32.mrb[0].mxu0
    %3064 = vdwg.mxu0
    %3065 = vmatprep.subr.mxu0 0.0
    %3066 = vmatpush1.msra.mxu0 %v2002
    %3067 = vmatprep.subr.mxu0 0.0
    %3068 = vmatpush1.msra.mxu0 %v2003
    %3069 = vmatprep.subr.mxu0 0.0
    %3070 = vmatpush1.msra.mxu0 %v2004
    %3071 = vmatprep.subr.mxu0 0.0
    %3072 = vmatpush1.msra.mxu0 %v2005
    %3073 = vmatprep.subr.mxu0 0.0
    %3074 = vmatpush1.msra.mxu0 %v2006
    %3075 = vmatprep.subr.mxu0 0.0
    %3076 = vmatpush1.msra.mxu0 %v2007
    %3077 = vmatprep.subr.mxu0 0.0
    %3078 = vmatpush1.msra.mxu0 %v2008
    %3079 = vmatprep.subr.mxu0 0.0
    %3080 = vmatpush1.msra.mxu0 %v2009
    %3081 = vmatprep.subr.mxu0 0.0
    %3082 = vmatpush1.msra.mxu0 %v2010
    %3083 = vmatprep.subr.mxu0 0.0
    %3084 = vmatpush1.msra.mxu0 %v2011
    %3085 = vmatprep.subr.mxu0 0.0
    %3086 = vmatpush1.msra.mxu0 %v2012
    %3087 = vmatprep.subr.mxu0 0.0
    %3088 = vmatpush1.msra.mxu0 %v2013
    %3089 = vmatprep.subr.mxu0 0.0
    %3090 = vmatpush1.msra.mxu0 %v2014
    %3091 = vmatprep.subr.mxu0 0.0
    %3092 = vmatpush1.msra.mxu0 %v2015
    %3093 = vmatprep.subr.mxu0 0.0
    %3094 = vmatpush1.msra.mxu0 %v2016
    %3095 = vmatprep.subr.mxu0 0.0
    %3096 = vmatpush1.msra.mxu0 %v2017
    %3097 = vmatprep.subr.mxu0 0.0
    %3098 = vmatpush1.msra.mxu0 0.0
    %3099 = vmatprep.subr.mxu0 0.0
    %3100 = vmatpush1.msra.mxu0 0.0
    %3101 = vmatprep.subr.mxu0 0.0
    %3102 = vmatpush1.msra.mxu0 0.0
    %3103 = vmatprep.subr.mxu0 0.0
    %3104 = vmatpush1.msra.mxu0 0.0
    %3105 = vmatprep.subr.mxu0 0.0
    %3106 = vmatpush1.msra.mxu0 0.0
    %3107 = vmatprep.subr.mxu0 0.0
    %3108 = vmatpush1.msra.mxu0 0.0
    %3109 = vmatprep.subr.mxu0 0.0
    %3110 = vmatpush1.msra.mxu0 0.0
    %3111 = vmatprep.subr.mxu0 0.0
    %3112 = vmatpush1.msra.mxu0 0.0
    %3113 = vmatprep.subr.mxu0 0.0
    %3114 = vmatpush1.msra.mxu0 0.0
    %3115 = vmatprep.subr.mxu0 0.0
    %3116 = vmatpush1.msra.mxu0 0.0
    %3117 = vmatprep.subr.mxu0 0.0
    %3118 = vmatpush1.msra.mxu0 0.0
    %3119 = vmatprep.subr.mxu0 0.0
    %3120 = vmatpush1.msra.mxu0 0.0
    %3121 = vmatprep.subr.mxu0 0.0
    %3122 = vmatpush1.msra.mxu0 0.0
    %3123 = vmatprep.subr.mxu0 0.0
    %3124 = vmatpush1.msra.mxu0 0.0
    %3125 = vmatprep.subr.mxu0 0.0
    %3126 = vmatpush1.msra.mxu0 0.0
    %3127 = vmatprep.subr.mxu0 0.0
    %3128 = vmatpush1.msra.mxu0 0.0
    %3129 = vmatprep.mubr.f32.mxu0 0.0
    %3130 = vmatmul.mubr.f32.gmra.mrb[0].mxu0 %v2988
    %v3131 = vpop.f32.mrb[0].mxu0
    %v3132 = vadd.f32 0.0, %v3131
    %v3133 = vpop.f32.mrb[0].mxu0
    %3134 = vdwg.mxu0
    %3135 = vmatprep.subr.mxu0 0.0
    %3136 = vmatpush1.msra.mxu0 %v2018
    %3137 = vmatprep.subr.mxu0 0.0
    %3138 = vmatpush1.msra.mxu0 %v2019
    %3139 = vmatprep.subr.mxu0 0.0
    %3140 = vmatpush1.msra.mxu0 %v2020
    %3141 = vmatprep.subr.mxu0 0.0
    %3142 = vmatpush1.msra.mxu0 %v2021
    %3143 = vmatprep.subr.mxu0 0.0
    %3144 = vmatpush1.msra.mxu0 %v2022
    %3145 = vmatprep.subr.mxu0 0.0
    %3146 = vmatpush1.msra.mxu0 %v2023
    %3147 = vmatprep.subr.mxu0 0.0
    %3148 = vmatpush1.msra.mxu0 %v2024
    %3149 = vmatprep.subr.mxu0 0.0
    %3150 = vmatpush1.msra.mxu0 %v2025
    %3151 = vmatprep.subr.mxu0 0.0
    %3152 = vmatpush1.msra.mxu0 %v2026
    %3153 = vmatprep.subr.mxu0 0.0
    %3154 = vmatpush1.msra.mxu0 %v2027
    %3155 = vmatprep.subr.mxu0 0.0
    %3156 = vmatpush1.msra.mxu0 %v2028
    %3157 = vmatprep.subr.mxu0 0.0
    %3158 = vmatpush1.msra.mxu0 %v2029
    %3159 = vmatprep.subr.mxu0 0.0
    %3160 = vmatpush1.msra.mxu0 %v2030
    %3161 = vmatprep.subr.mxu0 0.0
    %3162 = vmatpush1.msra.mxu0 %v2031
    %3163 = vmatprep.subr.mxu0 0.0
    %3164 = vmatpush1.msra.mxu0 %v2032
    %3165 = vmatprep.subr.mxu0 0.0
    %3166 = vmatpush1.msra.mxu0 %v2033
    %3167 = vmatprep.subr.mxu0 0.0
    %3168 = vmatpush1.msra.mxu0 0.0
    %3169 = vmatprep.subr.mxu0 0.0
    %3170 = vmatpush1.msra.mxu0 0.0
    %3171 = vmatprep.subr.mxu0 0.0
    %3172 = vmatpush1.msra.mxu0 0.0
    %3173 = vmatprep.subr.mxu0 0.0
    %3174 = vmatpush1.msra.mxu0 0.0
    %3175 = vmatprep.subr.mxu0 0.0
    %3176 = vmatpush1.msra.mxu0 0.0
    %3177 = vmatprep.subr.mxu0 0.0
    %3178 = vmatpush1.msra.mxu0 0.0
    %3179 = vmatprep.subr.mxu0 0.0
    %3180 = vmatpush1.msra.mxu0 0.0
    %3181 = vmatprep.subr.mxu0 0.0
    %3182 = vmatpush1.msra.mxu0 0.0
    %3183 = vmatprep.subr.mxu0 0.0
    %3184 = vmatpush1.msra.mxu0 0.0
    %3185 = vmatprep.subr.mxu0 0.0
    %3186 = vmatpush1.msra.mxu0 0.0
    %3187 = vmatprep.subr.mxu0 0.0
    %3188 = vmatpush1.msra.mxu0 0.0
    %3189 = vmatprep.subr.mxu0 0.0
    %3190 = vmatpush1.msra.mxu0 0.0
    %3191 = vmatprep.subr.mxu0 0.0
    %3192 = vmatpush1.msra.mxu0 0.0
    %3193 = vmatprep.subr.mxu0 0.0
    %3194 = vmatpush1.msra.mxu0 0.0
    %3195 = vmatprep.subr.mxu0 0.0
    %3196 = vmatpush1.msra.mxu0 0.0
    %3197 = vmatprep.subr.mxu0 0.0
    %3198 = vmatpush1.msra.mxu0 0.0
    %3199 = vmatprep.mubr.f32.mxu0 0.0
    %3200 = vmatmul.mubr.f32.gmra.mrb[0].mxu0 %v2989
    %v3201 = vpop.f32.mrb[0].mxu0
    %v3202 = vadd.f32 0.0, %v3201
    %v3203 = vpop.f32.mrb[0].mxu0
    %3204 = vdwg.mxu0
    %3205 = vmatprep.subr.mxu0 0.0
    %3206 = vmatpush1.msra.mxu0 %v2034
    %3207 = vmatprep.subr.mxu0 0.0
    %3208 = vmatpush1.msra.mxu0 %v2035
    %3209 = vmatprep.subr.mxu0 0.0
    %3210 = vmatpush1.msra.mxu0 %v2036
    %3211 = vmatprep.subr.mxu0 0.0
    %3212 = vmatpush1.msra.mxu0 %v2037
    %3213 = vmatprep.subr.mxu0 0.0
    %3214 = vmatpush1.msra.mxu0 %v2038
    %3215 = vmatprep.subr.mxu0 0.0
    %3216 = vmatpush1.msra.mxu0 %v2039
    %3217 = vmatprep.subr.mxu0 0.0
    %3218 = vmatpush1.msra.mxu0 %v2040
    %3219 = vmatprep.subr.mxu0 0.0
    %3220 = vmatpush1.msra.mxu0 %v2041
    %3221 = vmatprep.subr.mxu0 0.0
    %3222 = vmatpush1.msra.mxu0 %v2042
    %3223 = vmatprep.subr.mxu0 0.0
    %3224 = vmatpush1.msra.mxu0 %v2043
    %3225 = vmatprep.subr.mxu0 0.0
    %3226 = vmatpush1.msra.mxu0 %v2044
    %3227 = vmatprep.subr.mxu0 0.0
    %3228 = vmatpush1.msra.mxu0 %v2045
    %3229 = vmatprep.subr.mxu0 0.0
    %3230 = vmatpush1.msra.mxu0 %v2046
    %3231 = vmatprep.subr.mxu0 0.0
    %3232 = vmatpush1.msra.mxu0 %v2047
    %3233 = vmatprep.subr.mxu0 0.0
    %3234 = vmatpush1.msra.mxu0 %v2048
    %3235 = vmatprep.subr.mxu0 0.0
    %3236 = vmatpush1.msra.mxu0 %v2049
    %3237 = vmatprep.subr.mxu0 0.0
    %3238 = vmatpush1.msra.mxu0 0.0
    %3239 = vmatprep.subr.mxu0 0.0
    %3240 = vmatpush1.msra.mxu0 0.0
    %3241 = vmatprep.subr.mxu0 0.0
    %3242 = vmatpush1.msra.mxu0 0.0
    %3243 = vmatprep.subr.mxu0 0.0
    %3244 = vmatpush1.msra.mxu0 0.0
    %3245 = vmatprep.subr.mxu0 0.0
    %3246 = vmatpush1.msra.mxu0 0.0
    %3247 = vmatprep.subr.mxu0 0.0
    %3248 = vmatpush1.msra.mxu0 0.0
    %3249 = vmatprep.subr.mxu0 0.0
    %3250 = vmatpush1.msra.mxu0 0.0
    %3251 = vmatprep.subr.mxu0 0.0
    %3252 = vmatpush1.msra.mxu0 0.0
    %3253 = vmatprep.subr.mxu0 0.0
    %3254 = vmatpush1.msra.mxu0 0.0
    %3255 = vmatprep.subr.mxu0 0.0
    %3256 = vmatpush1.msra.mxu0 0.0
    %3257 = vmatprep.subr.mxu0 0.0
    %3258 = vmatpush1.msra.mxu0 0.0
    %3259 = vmatprep.subr.mxu0 0.0
    %3260 = vmatpush1.msra.mxu0 0.0
    %3261 = vmatprep.subr.mxu0 0.0
    %3262 = vmatpush1.msra.mxu0 0.0
    %3263 = vmatprep.subr.mxu0 0.0
    %3264 = vmatpush1.msra.mxu0 0.0
    %3265 = vmatprep.subr.mxu0 0.0
    %3266 = vmatpush1.msra.mxu0 0.0
    %3267 = vmatprep.subr.mxu0 0.0
    %3268 = vmatpush1.msra.mxu0 0.0
    %3269 = vmatprep.mubr.f32.mxu0 0.0
    %3270 = vmatmul.mubr.f32.gmra.mrb[0].mxu0 %v2990
    %v3271 = vpop.f32.mrb[0].mxu0
    %v3272 = vadd.f32 0.0, %v3271
    %v3273 = vpop.f32.mrb[0].mxu0
    %3274 = vdwg.mxu0
    %3275 = vmatprep.subr.mxu0 0.0
    %3276 = vmatpush1.msra.mxu0 %v2050
    %3277 = vmatprep.subr.mxu0 0.0
    %3278 = vmatpush1.msra.mxu0 %v2051
    %3279 = vmatprep.subr.mxu0 0.0
    %3280 = vmatpush1.msra.mxu0 %v2052
    %3281 = vmatprep.subr.mxu0 0.0
    %3282 = vmatpush1.msra.mxu0 %v2053
    %3283 = vmatprep.subr.mxu0 0.0
    %3284 = vmatpush1.msra.mxu0 %v2054
    %3285 = vmatprep.subr.mxu0 0.0
    %3286 = vmatpush1.msra.mxu0 %v2055
    %3287 = vmatprep.subr.mxu0 0.0
    %3288 = vmatpush1.msra.mxu0 %v2056
    %3289 = vmatprep.subr.mxu0 0.0
    %3290 = vmatpush1.msra.mxu0 %v2057
    %3291 = vmatprep.subr.mxu0 0.0
    %3292 = vmatpush1.msra.mxu0 %v2058
    %3293 = vmatprep.subr.mxu0 0.0
    %3294 = vmatpush1.msra.mxu0 %v2059
    %3295 = vmatprep.subr.mxu0 0.0
    %3296 = vmatpush1.msra.mxu0 %v2060
    %3297 = vmatprep.subr.mxu0 0.0
    %3298 = vmatpush1.msra.mxu0 %v2061
    %3299 = vmatprep.subr.mxu0 0.0
    %3300 = vmatpush1.msra.mxu0 %v2062
    %3301 = vmatprep.subr.mxu0 0.0
    %3302 = vmatpush1.msra.mxu0 %v2063
    %3303 = vmatprep.subr.mxu0 0.0
    %3304 = vmatpush1.msra.mxu0 %v2064
    %3305 = vmatprep.subr.mxu0 0.0
    %3306 = vmatpush1.msra.mxu0 %v2065
    %3307 = vmatprep.subr.mxu0 0.0
    %3308 = vmatpush1.msra.mxu0 0.0
    %3309 = vmatprep.subr.mxu0 0.0
    %3310 = vmatpush1.msra.mxu0 0.0
    %3311 = vmatprep.subr.mxu0 0.0
    %3312 = vmatpush1.msra.mxu0 0.0
    %3313 = vmatprep.subr.mxu0 0.0
    %3314 = vmatpush1.msra.mxu0 0.0
    %3315 = vmatprep.subr.mxu0 0.0
    %3316 = vmatpush1.msra.mxu0 0.0
    %3317 = vmatprep.subr.mxu0 0.0
    %3318 = vmatpush1.msra.mxu0 0.0
    %3319 = vmatprep.subr.mxu0 0.0
    %3320 = vmatpush1.msra.mxu0 0.0
    %3321 = vmatprep.subr.mxu0 0.0
    %3322 = vmatpush1.msra.mxu0 0.0
    %3323 = vmatprep.subr.mxu0 0.0
    %3324 = vmatpush1.msra.mxu0 0.0
    %3325 = vmatprep.subr.mxu0 0.0
    %3326 = vmatpush1.msra.mxu0 0.0
    %3327 = vmatprep.subr.mxu0 0.0
    %3328 = vmatpush1.msra.mxu0 0.0
    %3329 = vmatprep.subr.mxu0 0.0
    %3330 = vmatpush1.msra.mxu0 0.0
    %3331 = vmatprep.subr.mxu0 0.0
    %3332 = vmatpush1.msra.mxu0 0.0
    %3333 = vmatprep.subr.mxu0 0.0
    %3334 = vmatpush1.msra.mxu0 0.0
    %3335 = vmatprep.subr.mxu0 0.0
    %3336 = vmatpush1.msra.mxu0 0.0
    %3337 = vmatprep.subr.mxu0 0.0
    %3338 = vmatpush1.msra.mxu0 0.0
    %3339 = vmatprep.mubr.f32.mxu0 0.0
    %3340 = vmatmul.mubr.f32.gmra.mrb[0].mxu0 %v2991
    %v3341 = vpop.f32.mrb[0].mxu0
    %v3342 = vadd.f32 0.0, %v3341
    %v3343 = vpop.f32.mrb[0].mxu0
    %3344 = vdwg.mxu0
    %3345 = vmatprep.subr.mxu0 0.0
    %3346 = vmatpush1.msra.mxu0 %v2066
    %3347 = vmatprep.subr.mxu0 0.0
    %3348 = vmatpush1.msra.mxu0 %v2067
    %3349 = vmatprep.subr.mxu0 0.0
    %3350 = vmatpush1.msra.mxu0 %v2068
    %3351 = vmatprep.subr.mxu0 0.0
    %3352 = vmatpush1.msra.mxu0 %v2069
    %3353 = vmatprep.subr.mxu0 0.0
    %3354 = vmatpush1.msra.mxu0 %v2070
    %3355 = vmatprep.subr.mxu0 0.0
    %3356 = vmatpush1.msra.mxu0 %v2071
    %3357 = vmatprep.subr.mxu0 0.0
    %3358 = vmatpush1.msra.mxu0 %v2072
    %3359 = vmatprep.subr.mxu0 0.0
    %3360 = vmatpush1.msra.mxu0 %v2073
    %3361 = vmatprep.subr.mxu0 0.0
    %3362 = vmatpush1.msra.mxu0 %v2074
    %3363 = vmatprep.subr.mxu0 0.0
    %3364 = vmatpush1.msra.mxu0 %v2075
    %3365 = vmatprep.subr.mxu0 0.0
    %3366 = vmatpush1.msra.mxu0 %v2076
    %3367 = vmatprep.subr.mxu0 0.0
    %3368 = vmatpush1.msra.mxu0 %v2077
    %3369 = vmatprep.subr.mxu0 0.0
    %3370 = vmatpush1.msra.mxu0 %v2078
    %3371 = vmatprep.subr.mxu0 0.0
    %3372 = vmatpush1.msra.mxu0 %v2079
    %3373 = vmatprep.subr.mxu0 0.0
    %3374 = vmatpush1.msra.mxu0 %v2080
    %3375 = vmatprep.subr.mxu0 0.0
    %3376 = vmatpush1.msra.mxu0 %v2081
    %3377 = vmatprep.subr.mxu0 0.0
    %3378 = vmatpush1.msra.mxu0 0.0
    %3379 = vmatprep.subr.mxu0 0.0
    %3380 = vmatpush1.msra.mxu0 0.0
    %3381 = vmatprep.subr.mxu0 0.0
    %3382 = vmatpush1.msra.mxu0 0.0
    %3383 = vmatprep.subr.mxu0 0.0
    %3384 = vmatpush1.msra.mxu0 0.0
    %3385 = vmatprep.subr.mxu0 0.0
    %3386 = vmatpush1.msra.mxu0 0.0
    %3387 = vmatprep.subr.mxu0 0.0
    %3388 = vmatpush1.msra.mxu0 0.0
    %3389 = vmatprep.subr.mxu0 0.0
    %3390 = vmatpush1.msra.mxu0 0.0
    %3391 = vmatprep.subr.mxu0 0.0
    %3392 = vmatpush1.msra.mxu0 0.0
    %3393 = vmatprep.subr.mxu0 0.0
    %3394 = vmatpush1.msra.mxu0 0.0
    %3395 = vmatprep.subr.mxu0 0.0
    %3396 = vmatpush1.msra.mxu0 0.0
    %3397 = vmatprep.subr.mxu0 0.0
    %3398 = vmatpush1.msra.mxu0 0.0
    %3399 = vmatprep.subr.mxu0 0.0
    %3400 = vmatpush1.msra.mxu0 0.0
    %3401 = vmatprep.subr.mxu0 0.0
    %3402 = vmatpush1.msra.mxu0 0.0
    %3403 = vmatprep.subr.mxu0 0.0
    %3404 = vmatpush1.msra.mxu0 0.0
    %3405 = vmatprep.subr.mxu0 0.0
    %3406 = vmatpush1.msra.mxu0 0.0
    %3407 = vmatprep.subr.mxu0 0.0
    %3408 = vmatpush1.msra.mxu0 0.0
    %3409 = vmatprep.mubr.f32.mxu0 0.0
    %3410 = vmatmul.mubr.f32.gmra.mrb[0].mxu0 %v2992
    %v3411 = vpop.f32.mrb[0].mxu0
    %v3412 = vadd.f32 0.0, %v3411
    %v3413 = vpop.f32.mrb[0].mxu0
    %3414 = vdwg.mxu0
    %3415 = vmatprep.subr.mxu0 0.0
    %3416 = vmatpush1.msra.mxu0 %v2082
    %3417 = vmatprep.subr.mxu0 0.0
    %3418 = vmatpush1.msra.mxu0 %v2083
    %3419 = vmatprep.subr.mxu0 0.0
    %3420 = vmatpush1.msra.mxu0 %v2084
    %3421 = vmatprep.subr.mxu0 0.0
    %3422 = vmatpush1.msra.mxu0 %v2085
    %3423 = vmatprep.subr.mxu0 0.0
    %3424 = vmatpush1.msra.mxu0 %v2086
    %3425 = vmatprep.subr.mxu0 0.0
    %3426 = vmatpush1.msra.mxu0 %v2087
    %3427 = vmatprep.subr.mxu0 0.0
    %3428 = vmatpush1.msra.mxu0 %v2088
    %3429 = vmatprep.subr.mxu0 0.0
    %3430 = vmatpush1.msra.mxu0 %v2089
    %3431 = vmatprep.subr.mxu0 0.0
    %3432 = vmatpush1.msra.mxu0 %v2090
    %3433 = vmatprep.subr.mxu0 0.0
    %3434 = vmatpush1.msra.mxu0 %v2091
    %3435 = vmatprep.subr.mxu0 0.0
    %3436 = vmatpush1.msra.mxu0 %v2092
    %3437 = vmatprep.subr.mxu0 0.0
    %3438 = vmatpush1.msra.mxu0 %v2093
    %3439 = vmatprep.subr.mxu0 0.0
    %3440 = vmatpush1.msra.mxu0 %v2094
    %3441 = vmatprep.subr.mxu0 0.0
    %3442 = vmatpush1.msra.mxu0 %v2095
    %3443 = vmatprep.subr.mxu0 0.0
    %3444 = vmatpush1.msra.mxu0 %v2096
    %3445 = vmatprep.subr.mxu0 0.0
    %3446 = vmatpush1.msra.mxu0 %v2097
    %3447 = vmatprep.subr.mxu0 0.0
    %3448 = vmatpush1.msra.mxu0 0.0
    %3449 = vmatprep.subr.mxu0 0.0
    %3450 = vmatpush1.msra.mxu0 0.0
    %3451 = vmatprep.subr.mxu0 0.0
    %3452 = vmatpush1.msra.mxu0 0.0
    %3453 = vmatprep.subr.mxu0 0.0
    %3454 = vmatpush1.msra.mxu0 0.0
    %3455 = vmatprep.subr.mxu0 0.0
    %3456 = vmatpush1.msra.mxu0 0.0
    %3457 = vmatprep.subr.mxu0 0.0
    %3458 = vmatpush1.msra.mxu0 0.0
    %3459 = vmatprep.subr.mxu0 0.0
    %3460 = vmatpush1.msra.mxu0 0.0
    %3461 = vmatprep.subr.mxu0 0.0
    %3462 = vmatpush1.msra.mxu0 0.0
    %3463 = vmatprep.subr.mxu0 0.0
    %3464 = vmatpush1.msra.mxu0 0.0
    %3465 = vmatprep.subr.mxu0 0.0
    %3466 = vmatpush1.msra.mxu0 0.0
    %3467 = vmatprep.subr.mxu0 0.0
    %3468 = vmatpush1.msra.mxu0 0.0
    %3469 = vmatprep.subr.mxu0 0.0
    %3470 = vmatpush1.msra.mxu0 0.0
    %3471 = vmatprep.subr.mxu0 0.0
    %3472 = vmatpush1.msra.mxu0 0.0
    %3473 = vmatprep.subr.mxu0 0.0
    %3474 = vmatpush1.msra.mxu0 0.0
    %3475 = vmatprep.subr.mxu0 0.0
    %3476 = vmatpush1.msra.mxu0 0.0
    %3477 = vmatprep.subr.mxu0 0.0
    %3478 = vmatpush1.msra.mxu0 0.0
    %3479 = vmatprep.mubr.f32.mxu0 0.0
    %3480 = vmatmul.mubr.f32.gmra.mrb[0].mxu0 %v2993
    %v3481 = vpop.f32.mrb[0].mxu0
    %v3482 = vadd.f32 0.0, %v3481
    %v3483 = vpop.f32.mrb[0].mxu0
    %3484 = vdwg.mxu0
    %3485 = vmatprep.subr.mxu0 0.0
    %3486 = vmatpush1.msra.mxu0 %v2098
    %3487 = vmatprep.subr.mxu0 0.0
    %3488 = vmatpush1.msra.mxu0 %v2099
    %3489 = vmatprep.subr.mxu0 0.0
    %3490 = vmatpush1.msra.mxu0 %v2100
    %3491 = vmatprep.subr.mxu0 0.0
    %3492 = vmatpush1.msra.mxu0 %v2101
    %3493 = vmatprep.subr.mxu0 0.0
    %3494 = vmatpush1.msra.mxu0 %v2102
    %3495 = vmatprep.subr.mxu0 0.0
    %3496 = vmatpush1.msra.mxu0 %v2103
    %3497 = vmatprep.subr.mxu0 0.0
    %3498 = vmatpush1.msra.mxu0 %v2104
    %3499 = vmatprep.subr.mxu0 0.0
    %3500 = vmatpush1.msra.mxu0 %v2105
    %3501 = vmatprep.subr.mxu0 0.0
    %3502 = vmatpush1.msra.mxu0 %v2106
    %3503 = vmatprep.subr.mxu0 0.0
    %3504 = vmatpush1.msra.mxu0 %v2107
    %3505 = vmatprep.subr.mxu0 0.0
    %3506 = vmatpush1.msra.mxu0 %v2108
    %3507 = vmatprep.subr.mxu0 0.0
    %3508 = vmatpush1.msra.mxu0 %v2109
    %3509 = vmatprep.subr.mxu0 0.0
    %3510 = vmatpush1.msra.mxu0 %v2110
    %3511 = vmatprep.subr.mxu0 0.0
    %3512 = vmatpush1.msra.mxu0 %v2111
    %3513 = vmatprep.subr.mxu0 0.0
    %3514 = vmatpush1.msra.mxu0 %v2112
    %3515 = vmatprep.subr.mxu0 0.0
    %3516 = vmatpush1.msra.mxu0 %v2113
    %3517 = vmatprep.subr.mxu0 0.0
    %3518 = vmatpush1.msra.mxu0 0.0
    %3519 = vmatprep.subr.mxu0 0.0
    %3520 = vmatpush1.msra.mxu0 0.0
    %3521 = vmatprep.subr.mxu0 0.0
    %3522 = vmatpush1.msra.mxu0 0.0
    %3523 = vmatprep.subr.mxu0 0.0
    %3524 = vmatpush1.msra.mxu0 0.0
    %3525 = vmatprep.subr.mxu0 0.0
    %3526 = vmatpush1.msra.mxu0 0.0
    %3527 = vmatprep.subr.mxu0 0.0
    %3528 = vmatpush1.msra.mxu0 0.0
    %3529 = vmatprep.subr.mxu0 0.0
    %3530 = vmatpush1.msra.mxu0 0.0
    %3531 = vmatprep.subr.mxu0 0.0
    %3532 = vmatpush1.msra.mxu0 0.0
    %3533 = vmatprep.subr.mxu0 0.0
    %3534 = vmatpush1.msra.mxu0 0.0
    %3535 = vmatprep.subr.mxu0 0.0
    %3536 = vmatpush1.msra.mxu0 0.0
    %3537 = vmatprep.subr.mxu0 0.0
    %3538 = vmatpush1.msra.mxu0 0.0
    %3539 = vmatprep.subr.mxu0 0.0
    %3540 = vmatpush1.msra.mxu0 0.0
    %3541 = vmatprep.subr.mxu0 0.0
    %3542 = vmatpush1.msra.mxu0 0.0
    %3543 = vmatprep.subr.mxu0 0.0
    %3544 = vmatpush1.msra.mxu0 0.0
    %3545 = vmatprep.subr.mxu0 0.0
    %3546 = vmatpush1.msra.mxu0 0.0
    %3547 = vmatprep.subr.mxu0 0.0
    %3548 = vmatpush1.msra.mxu0 0.0
    %3549 = vmatprep.mubr.f32.mxu0 0.0
    %3550 = vmatmul.mubr.f32.gmra.mrb[0].mxu0 %v2994
    %v3551 = vpop.f32.mrb[0].mxu0
    %v3552 = vadd.f32 0.0, %v3551
    %v3553 = vpop.f32.mrb[0].mxu0
    %3554 = vdwg.mxu0
    %v3555 = vmul.u32 %v2118, 32
    %vm3556 = vcmp.ge.s32.totalorder %v2116, %v3555
    %v3557 = vadd.s32 %v3555, 32
    %vm3558 = vcmp.lt.s32.totalorder %v2116, %v3557
    %vm3559 = vmand %vm3556, %vm3558
    %v3560 = vsel %vm3559, 1, 0
    %vm3561 = vcmp.eq.s32.totalorder %v3560, 1
    %v3562 = vsel %vm3561, %v3062, 0.0
    %v3563 = vsel %vm3561, %v3132, 0.0
    %v3564 = vsel %vm3561, %v3202, 0.0
    %v3565 = vsel %vm3561, %v3272, 0.0
    %v3566 = vsel %vm3561, %v3342, 0.0
    %v3567 = vsel %vm3561, %v3412, 0.0
    %v3568 = vsel %vm3561, %v3482, 0.0
    %v3569 = vsel %vm3561, %v3552, 0.0
    %v3570 = vsel %vm2906, %v3562, 0.0
    %v3571 = vrot.slane %v3570, 4
    %v3572 = vadd.f32 %v3570, %v3571
    %v3573 = vrot.slane %v3572, 2
    %v3574 = vadd.f32 %v3572, %v3573
    %v3575 = vrot.slane %v3574, 1
    %v3576 = vadd.f32 %v3574, %v3575
    %v3577 = vsel %vm2906, %v3563, 0.0
    %v3578 = vrot.slane %v3577, 4
    %v3579 = vadd.f32 %v3577, %v3578
    %v3580 = vrot.slane %v3579, 2
    %v3581 = vadd.f32 %v3579, %v3580
    %v3582 = vrot.slane %v3581, 1
    %v3583 = vadd.f32 %v3581, %v3582
    %v3584 = vsel %vm2906, %v3564, 0.0
    %v3585 = vrot.slane %v3584, 4
    %v3586 = vadd.f32 %v3584, %v3585
    %v3587 = vrot.slane %v3586, 2
    %v3588 = vadd.f32 %v3586, %v3587
    %v3589 = vrot.slane %v3588, 1
    %v3590 = vadd.f32 %v3588, %v3589
    %v3591 = vsel %vm2906, %v3565, 0.0
    %v3592 = vrot.slane %v3591, 4
    %v3593 = vadd.f32 %v3591, %v3592
    %v3594 = vrot.slane %v3593, 2
    %v3595 = vadd.f32 %v3593, %v3594
    %v3596 = vrot.slane %v3595, 1
    %v3597 = vadd.f32 %v3595, %v3596
    %v3598 = vsel %vm2906, %v3566, 0.0
    %v3599 = vrot.slane %v3598, 4
    %v3600 = vadd.f32 %v3598, %v3599
    %v3601 = vrot.slane %v3600, 2
    %v3602 = vadd.f32 %v3600, %v3601
    %v3603 = vrot.slane %v3602, 1
    %v3604 = vadd.f32 %v3602, %v3603
    %v3605 = vsel %vm2906, %v3567, 0.0
    %v3606 = vrot.slane %v3605, 4
    %v3607 = vadd.f32 %v3605, %v3606
    %v3608 = vrot.slane %v3607, 2
    %v3609 = vadd.f32 %v3607, %v3608
    %v3610 = vrot.slane %v3609, 1
    %v3611 = vadd.f32 %v3609, %v3610
    %v3612 = vsel %vm2906, %v3568, 0.0
    %v3613 = vrot.slane %v3612, 4
    %v3614 = vadd.f32 %v3612, %v3613
    %v3615 = vrot.slane %v3614, 2
    %v3616 = vadd.f32 %v3614, %v3615
    %v3617 = vrot.slane %v3616, 1
    %v3618 = vadd.f32 %v3616, %v3617
    %v3619 = vsel %vm2906, %v3569, 0.0
    %v3620 = vrot.slane %v3619, 4
    %v3621 = vadd.f32 %v3619, %v3620
    %v3622 = vrot.slane %v3621, 2
    %v3623 = vadd.f32 %v3621, %v3622
    %v3624 = vrot.slane %v3623, 1
    %v3625 = vadd.f32 %v3623, %v3624
    %v3626 = vld [vmem:[#allocation17] sm:$0xff]
    %v3627 = vld [vmem:[#allocation17 + $0x8] sm:$0xff]
    %v3628 = vld [vmem:[#allocation17 + $0x10] sm:$0xff]
    %v3629 = vld [vmem:[#allocation17 + $0x18] sm:$0xff]
    %v3630 = vld [vmem:[#allocation17 + $0x20] sm:$0xff]
    %v3631 = vld [vmem:[#allocation17 + $0x28] sm:$0xff]
    %v3632 = vld [vmem:[#allocation17 + $0x30] sm:$0xff]
    %v3633 = vld [vmem:[#allocation17 + $0x38] sm:$0xff]
    %v3634 = vld [vmem:[#allocation17 + $0x40] sm:$0xff]
    %v3635 = vld [vmem:[#allocation17 + $0x48] sm:$0xff]
    %v3636 = vld [vmem:[#allocation17 + $0x50] sm:$0xff]
    %v3637 = vld [vmem:[#allocation17 + $0x58] sm:$0xff]
    %v3638 = vld [vmem:[#allocation17 + $0x60] sm:$0xff]
    %v3639 = vld [vmem:[#allocation17 + $0x68] sm:$0xff]
    %v3640 = vld [vmem:[#allocation17 + $0x70] sm:$0xff]
    %v3641 = vld [vmem:[#allocation17 + $0x78] sm:$0xff]
    %v3642 = vld [vmem:[#allocation19] sm:$0x1]
    %v3644 = vlaneseq
    %v3645 = vshrl.u32 %v3644, 7
    %v3646 = vsub.s32 0, %v3645
    %v3647 = vrot.slane %v3642, %v3646
    %vm3657 = vcmask 1041409
    %v3658 = vsel %vm3657, %v3583, %v3576
    %vm3659 = vcmask 1042434
    %v3660 = vsel %vm3659, %v3590, %v3658
    %vm3661 = vcmask 1043459
    %v3662 = vsel %vm3661, %v3597, %v3660
    %vm3663 = vcmask 1044484
    %v3664 = vsel %vm3663, %v3604, %v3662
    %vm3665 = vcmask 1045509
    %v3666 = vsel %vm3665, %v3611, %v3664
    %vm3667 = vcmask 1046534
    %v3668 = vsel %vm3667, %v3618, %v3666
    %vm3669 = vcmask 1047559
    %v3670 = vsel %vm3669, %v3625, %v3668
    %3672 = vmatprep.subr.mxu0 0.0
    %3673 = vmatpush1.msra.mxu0 %v3626
    %3674 = vmatprep.subr.mxu0 0.0
    %3675 = vmatpush1.msra.mxu0 %v3627
    %3676 = vmatprep.subr.mxu0 0.0
    %3677 = vmatpush1.msra.mxu0 %v3628
    %3678 = vmatprep.subr.mxu0 0.0
    %3679 = vmatpush1.msra.mxu0 %v3629
    %3680 = vmatprep.subr.mxu0 0.0
    %3681 = vmatpush1.msra.mxu0 %v3630
    %3682 = vmatprep.subr.mxu0 0.0
    %3683 = vmatpush1.msra.mxu0 %v3631
    %3684 = vmatprep.subr.mxu0 0.0
    %3685 = vmatpush1.msra.mxu0 %v3632
    %3686 = vmatprep.subr.mxu0 0.0
    %3687 = vmatpush1.msra.mxu0 %v3633
    %3688 = vmatprep.subr.mxu0 0.0
    %3689 = vmatpush1.msra.mxu0 %v3634
    %3690 = vmatprep.subr.mxu0 0.0
    %3691 = vmatpush1.msra.mxu0 %v3635
    %3692 = vmatprep.subr.mxu0 0.0
    %3693 = vmatpush1.msra.mxu0 %v3636
    %3694 = vmatprep.subr.mxu0 0.0
    %3695 = vmatpush1.msra.mxu0 %v3637
    %3696 = vmatprep.subr.mxu0 0.0
    %3697 = vmatpush1.msra.mxu0 %v3638
    %3698 = vmatprep.subr.mxu0 0.0
    %3699 = vmatpush1.msra.mxu0 %v3639
    %3700 = vmatprep.subr.mxu0 0.0
    %3701 = vmatpush1.msra.mxu0 %v3640
    %3702 = vmatprep.subr.mxu0 0.0
    %3703 = vmatpush1.msra.mxu0 %v3641
    %3704 = vmatprep.subr.mxu0 0.0
    %3705 = vmatpush1.msra.mxu0 0.0
    %3706 = vmatprep.subr.mxu0 0.0
    %3707 = vmatpush1.msra.mxu0 0.0
    %3708 = vmatprep.subr.mxu0 0.0
    %3709 = vmatpush1.msra.mxu0 0.0
    %3710 = vmatprep.subr.mxu0 0.0
    %3711 = vmatpush1.msra.mxu0 0.0
    %3712 = vmatprep.subr.mxu0 0.0
    %3713 = vmatpush1.msra.mxu0 0.0
    %3714 = vmatprep.subr.mxu0 0.0
    %3715 = vmatpush1.msra.mxu0 0.0
    %3716 = vmatprep.subr.mxu0 0.0
    %3717 = vmatpush1.msra.mxu0 0.0
    %3718 = vmatprep.subr.mxu0 0.0
    %3719 = vmatpush1.msra.mxu0 0.0
    %3720 = vmatprep.subr.mxu0 0.0
    %3721 = vmatpush1.msra.mxu0 0.0
    %3722 = vmatprep.subr.mxu0 0.0
    %3723 = vmatpush1.msra.mxu0 0.0
    %3724 = vmatprep.subr.mxu0 0.0
    %3725 = vmatpush1.msra.mxu0 0.0
    %3726 = vmatprep.subr.mxu0 0.0
    %3727 = vmatpush1.msra.mxu0 0.0
    %3728 = vmatprep.subr.mxu0 0.0
    %3729 = vmatpush1.msra.mxu0 0.0
    %3730 = vmatprep.subr.mxu0 0.0
    %3731 = vmatpush1.msra.mxu0 0.0
    %3732 = vmatprep.subr.mxu0 0.0
    %3733 = vmatpush1.msra.mxu0 0.0
    %3734 = vmatprep.subr.mxu0 0.0
    %3735 = vmatpush1.msra.mxu0 0.0
    %3736 = vmatprep.mubr.f32.mxu0 0.0
    %3737 = vmatmul.mubr.f32.gmra.mrb[0].mxu0 %v3670
    %v3738 = vpop.f32.mrb[0].mxu0
    %v3739 = vadd.f32 %v3647, %v3738
    %v3740 = vpop.f32.mrb[0].mxu0
    %3741 = vdwg.mxu0
    %3742 = vst [vmem:[#allocation20] sm:$0x3] %v2987
    %3743 = vst [vmem:[#allocation20 + $0x2] sm:$0x3] %v2988
    %3744 = vst [vmem:[#allocation20 + $0x4] sm:$0x3] %v2989
    %3745 = vst [vmem:[#allocation20 + $0x6] sm:$0x3] %v2990
    %3746 = vst [vmem:[#allocation20 + $0x8] sm:$0x3] %v2991
    %3747 = vst [vmem:[#allocation20 + $0xa] sm:$0x3] %v2992
    %3748 = vst [vmem:[#allocation20 + $0xc] sm:$0x3] %v2993
    %3749 = vst [vmem:[#allocation20 + $0xe] sm:$0x3] %v2994
    %3750 = vst [vmem:[#allocation21] sm:$0xff] %v3739
    // Predicated region
    $region90: #{tpu_custom_call.1} parent=1 // pred_check
      _
    $region91: #{tpu_custom_call.1} parent=1 // pred_check_branch
      %3752 = sbr.rel (0) target = $region93
    $region92: #{tpu_custom_call.1} parent=1 // pred_region
      %s3754 = ssub.s32 256, 256
      %3755 = vsyncadd [#allocation4], %s3754
      %s3756 = sshll.u32 [#allocation20], 4
      %s3757 = int_to_ptr.vmem [resolvable:$true] %s3756
      %3762 = dma.vmem_to_hbm [thread:$0]  %s3757, 256, %s11, [#allocation4], 32, 32, 2
    $region93: #{tpu_custom_call.1} parent=1 // pred_fallthru
      _
    // Predicated region
    $region94: #{tpu_custom_call.1} parent=1 // pred_check
      _
    $region95: #{tpu_custom_call.1} parent=1 // pred_check_branch
      %3764 = sbr.rel (0) target = $region97
    $region96: #{tpu_custom_call.1} parent=1 // pred_region
      %s3766 = ssub.s32 128, 128
      %3767 = vsyncadd [#allocation22], %s3766
      %s3769 = sshll.u32 [#allocation21], 4
      %s3770 = int_to_ptr.vmem [resolvable:$true] %s3769
      %3772 = dma.vmem_to_hbm [thread:$0]  %s3770, 128, %s12, [#allocation22]
    $region97: #{tpu_custom_call.1} parent=1 // pred_fallthru
      _
    // Predicated region
    $region98: #{tpu_custom_call.1} parent=1 // pred_check
      _
    $region99: #{tpu_custom_call.1} parent=1 // pred_check_branch
      %3774 = sbr.rel (0) target = $region101
    $region100: #{tpu_custom_call.1} parent=1 // pred_region
      %3775 = dma.done [#allocation4], 256
    $region101: #{tpu_custom_call.1} parent=1 // pred_fallthru
      _
    // Predicated region
    $region102: #{tpu_custom_call.1} parent=1 // pred_check
      _
    $region103: #{tpu_custom_call.1} parent=1 // pred_check_branch
      %3777 = sbr.rel (0) target = $region105
    $region104: #{tpu_custom_call.1} parent=1 // pred_region
      %3778 = dma.done [#allocation22], 128
    $region105: #{tpu_custom_call.1} parent=1 // pred_fallthru
      _
    %3779 = vsyncpa [#allocation3], 1
    %3780 = vsyncpa [#allocation6], 1
    %3781 = vsyncpa [#allocation9], 1
    %3782 = vsyncpa [#allocation12], 1
    %3783 = vsyncpa [#allocation15], 1
    %3784 = vsyncpa [#allocation18], 1
    %3785 = vsyncpa [#allocation4], 1
    %3786 = vsyncpa [#allocation22], 1

</llo_original>
